<compile_context>
chip_gen: v5e
topology: v5e:2x2
jax: 0.10.0
libtpu: 0.0.40
codegen_flags: <defaults>
</compile_context>

<pallas_src>
import functools

import jax
import jax.numpy as jnp
from jax import lax
from jax.experimental import pallas as pl
from jax.experimental.pallas import tpu as pltpu


# ----------------------------------------------------------------------------
# Fused kernel: embedders + 4-way fused GRU recurrence + actor/critic heads
# ----------------------------------------------------------------------------

def fused_td3_kernel(x_ref, taken_ref,
                     W_emb_ref, Gih_ref, Ghh_ref, W_h0_ref,
                     pW1_ref, pW2_ref, Wca_ref, cW0a_ref, cW1_ref, cW2_ref,
                     bias_ref,
                     q_ref,
                     xg_scr, feat_scr,
                     *, T1, B, H, D1, boffs):
    f32 = jnp.float32
    HP = 4 * H            # fused hidden width   (= 128 at H=32)
    GP = 3 * HP           # fused gate width     (= 384)
    BW = 2 * D1           # fused twin-Q layer-0 width per critic

    def bias(name):
        s, w = boffs[name]
        return bias_ref[:, s:s + w]                      # (1, w)

    # ---- hoisted: fused embedders + input-to-hidden gates for ALL steps ----
    # x_ref = [prev_action | reward | obs | 1]; embedder biases folded into
    # the ones row of W_emb.
    emb = jax.nn.relu(jnp.dot(x_ref[...], W_emb_ref[...],
                              preferred_element_type=f32))          # (T1B, 4E)
    feat_scr[:, HP:HP + emb.shape[1]] = emb
    xg_scr[...] = (jnp.dot(emb, Gih_ref[...], preferred_element_type=f32)
                   + bias('b_ih'))                                   # (T1B, GP)

    # ---- sequential GRU recurrence (four RNNs fused along lanes) ----
    Ghh = Ghh_ref[...]                                               # (HP, GP)
    b_hh = jnp.broadcast_to(bias('b_hh'), (B, GP))

    def step(t, h):
        start = t * B
        if B % 8 == 0:
            start = pl.multiple_of(start, 8)
        xg_t = xg_scr[pl.ds(start, B), :]                            # (B, GP)
        hg = jnp.dot(h, Ghh, preferred_element_type=f32) + b_hh      # (B, GP)
        # one sigmoid over the contiguous r|z block (lane-tile aligned slices)
        rz = jax.nn.sigmoid(xg_t[:, 0:2 * HP] + hg[:, 0:2 * HP])
        r = rz[:, 0:HP]
        z = rz[:, HP:2 * HP]
        n = jnp.tanh(xg_t[:, 2 * HP:GP] + r * hg[:, 2 * HP:GP])
        h_new = (1.0 - z) * n + z * h
        feat_scr[pl.ds(start, B), 0:HP] = h_new
        return h_new

    lax.fori_loop(0, T1, step, jnp.zeros((B, HP), f32), unroll=(T1 <= 16))

    # ---- heads, batched over all T1*B rows ----
    feat = feat_scr[...]                                             # (T1B, HP+4E)
    head0 = (jnp.dot(feat, W_h0_ref[...], preferred_element_type=f32)
             + bias('b_head0'))                                      # (T1B, 8*D1)
    # column layout of head0:
    #   [ base(tgt critic) | base(onl critic) | base(onl critic) | z0(tgt actor) | z0(onl actor) ]
    base3 = head0[:, 0:3 * BW]                       # critic layer-0, no action term yet
    z0a = jax.nn.relu(head0[:, 3 * BW:3 * BW + 2 * D1])

    # actor MLP (both actors, block-diagonal weights)
    z1a = jax.nn.relu(jnp.dot(z0a, pW1_ref[...], preferred_element_type=f32)
                      + bias('pb1'))
    acts = jnp.tanh(jnp.dot(z1a, pW2_ref[...], preferred_element_type=f32)
                    + bias('pb2'))                   # (T1B, 2A): [tgt acts | onl acts]

    # critic Q heads: three (critic, action-set) pairs fused along lanes:
    #   (target critic, target-actor acts), (online critic, online-actor acts),
    #   (online critic, taken next actions)
    ca = jnp.concatenate([acts, taken_ref[...]], axis=1)             # (T1B, 3A)
    eca = jax.nn.relu(jnp.dot(ca, Wca_ref[...], preferred_element_type=f32)
                      + bias('bca'))                                 # (T1B, 3Ea)
    z0c = jax.nn.relu(base3 + jnp.dot(eca, cW0a_ref[...],
                                      preferred_element_type=f32))   # (T1B, 3*BW)
    z1c = jax.nn.relu(jnp.dot(z0c, cW1_ref[...], preferred_element_type=f32)
                      + bias('cb1'))                                 # (T1B, 6*D2)
    q_ref[...] = (jnp.dot(z1c, cW2_ref[...], preferred_element_type=f32)
                  + bias('cb2'))                                     # (T1B, 8)


def fused_forward(fused, boffs, x_in, taken, T1, B, H, D1):
    T1B = T1 * B
    HP = 4 * H
    GP = 3 * HP
    EP = fused['W_emb'].shape[1]
    kernel = functools.partial(fused_td3_kernel, T1=T1, B=B, H=H, D1=D1,
                               boffs=boffs)
    return pl.pallas_call(
        kernel,
        out_shape=jax.ShapeDtypeStruct((T1B, 8), jnp.float32),
        scratch_shapes=[pltpu.VMEM((T1B, GP), jnp.float32),       # xg (all steps)
                        pltpu.VMEM((T1B, HP + EP), jnp.float32)],  # [h | emb] feat
        compiler_params=pltpu.CompilerParams(vmem_limit_bytes=32 * 1024 * 1024),
    )(x_in, taken,
      fused['W_emb'], fused['Gih'], fused['Ghh'], fused['W_head0'],
      fused['pW1'], fused['pW2'], fused['Wca'], fused['cW0a'],
      fused['cW1'], fused['cW2'], fused['bias'])


# ----------------------------------------------------------------------------
# Parameter init (synthetic, shapes from the module __init__)
# ----------------------------------------------------------------------------

def _dense(key, fan_in, fan_out):
    k1, k2 = jax.random.split(key)
    s = 1.0 / (fan_in ** 0.5)
    W = jax.random.uniform(k1, (fan_in, fan_out), jnp.float32, -s, s)
    b = jax.random.uniform(k2, (1, fan_out), jnp.float32, -s, s)
    return W, b


def init_critic_params(key, obs_dim, action_dim, Ea, Er, Eo, H, D1, D2):
    ks = jax.random.split(key, 24)
    p = {}
    p['Wa'], p['ba'] = _dense(ks[0], action_dim, Ea)
    p['Wr'], p['br'] = _dense(ks[1], 1, Er)
    p['Wo'], p['bo'] = _dense(ks[2], obs_dim, Eo)
    p['Gih_a'], _ = _dense(ks[3], Ea, 3 * H)
    p['Gih_r'], _ = _dense(ks[4], Er, 3 * H)
    p['Gih_o'], p['b_ih'] = _dense(ks[5], Eo, 3 * H)
    p['Ghh'], p['b_hh'] = _dense(ks[6], H, 3 * H)
    p['Wca'], p['bca'] = _dense(ks[7], action_dim, Ea)
    for q, k0 in (('q1', 8), ('q2', 14)):
        p[f'{q}W0h'], _ = _dense(ks[k0], H, D1)
        p[f'{q}W0o'], _ = _dense(ks[k0 + 1], Eo, D1)
        p[f'{q}W0a'], p[f'{q}b0'] = _dense(ks[k0 + 2], Ea, D1)
        p[f'{q}W1'], p[f'{q}b1'] = _dense(ks[k0 + 3], D1, D2)
        p[f'{q}W2'], p[f'{q}b2'] = _dense(ks[k0 + 4], D2, 1)
    return p


def init_actor_params(key, obs_dim, action_dim, Ea, Er, Eo, H, D1, D2):
    ks = jax.random.split(key, 16)
    p = {}
    p['Wa'], p['ba'] = _dense(ks[0], action_dim, Ea)
    p['Wr'], p['br'] = _dense(ks[1], 1, Er)
    p['Wo'], p['bo'] = _dense(ks[2], obs_dim, Eo)
    p['Gih_a'], _ = _dense(ks[3], Ea, 3 * H)
    p['Gih_r'], _ = _dense(ks[4], Er, 3 * H)
    p['Gih_o'], p['b_ih'] = _dense(ks[5], Eo, 3 * H)
    p['Ghh'], p['b_hh'] = _dense(ks[6], H, 3 * H)
    p['pW0h'], _ = _dense(ks[7], H, D1)
    p['pW0o'], p['pb0'] = _dense(ks[8], Eo, D1)
    p['pW1'], p['pb1'] = _dense(ks[9], D1, D2)
    p['pW2'], p['pb2'] = _dense(ks[10], D2, action_dim)
    return p


# ----------------------------------------------------------------------------
# Offline fusion glue: fold the four networks into block-structured weights
# ----------------------------------------------------------------------------

def _pack_biases(parts):
    """Concatenate (1, w) bias rows into one slab with 128-aligned offsets."""
    offs, cur, arrs = {}, 0, []
    for name, a in parts:
        start = ((cur + 127) // 128) * 128
        if start > cur:
            arrs.append(jnp.zeros((1, start - cur), jnp.float32))
        arrs.append(a.astype(jnp.float32))
        offs[name] = (int(start), int(a.shape[1]))
        cur = start + a.shape[1]
    total = ((cur + 127) // 128) * 128
    if total > cur:
        arrs.append(jnp.zeros((1, total - cur), jnp.float32))
    return jnp.concatenate(arrs, axis=1), offs


def build_fused_params(actor_tgt, critic_tgt, actor_onl, critic_onl,
                       obs_dim, action_dim):
    A, O = action_dim, obs_dim
    Ea = actor_tgt['Wa'].shape[1]
    Er = actor_tgt['Wr'].shape[1]
    Eo = actor_tgt['Wo'].shape[1]
    E = Ea + Er + Eo
    H = actor_tgt['Ghh'].shape[0]
    D1 = actor_tgt['pW0h'].shape[1]
    D2 = actor_tgt['pW1'].shape[1]
    f32 = jnp.float32
    nets = (actor_tgt, critic_tgt, actor_onl, critic_onl)   # AT, CT, AO, CO
    HP, EP, GP = 4 * H, 4 * E, 12 * H
    Din = A + 1 + O + 1                                      # [a | r | o | 1]

    # fused embedders (biases folded via the trailing ones column of x_in)
    W_emb = jnp.zeros((Din, EP), f32)
    for k, p in enumerate(nets):
        c = k * E
        W_emb = W_emb.at[0:A, c:c + Ea].set(p['Wa'])
        W_emb = W_emb.at[A:A + 1, c + Ea:c + Ea + Er].set(p['Wr'])
        W_emb = W_emb.at[A + 1:A + 1 + O, c + Ea + Er:c + E].set(p['Wo'])
        W_emb = W_emb.at[Din - 1:Din, c:c + Ea].set(p['ba'])
        W_emb = W_emb.at[Din - 1:Din, c + Ea:c + Ea + Er].set(p['br'])
        W_emb = W_emb.at[Din - 1:Din, c + Ea + Er:c + E].set(p['bo'])

    # fused GRU: gate layout [r | z | n], each 4H wide; net k in cols k*H:(k+1)*H
    Gih = jnp.zeros((EP, GP), f32)
    Ghh = jnp.zeros((HP, GP), f32)
    b_ih = jnp.zeros((1, GP), f32)
    b_hh = jnp.zeros((1, GP), f32)
    for k, p in enumerate(nets):
        ce, ch = k * E, k * H
        for g in range(3):
            src = slice(g * H, (g + 1) * H)
            dst = slice(g * HP + ch, g * HP + ch + H)
            Gih = Gih.at[ce:ce + Ea, dst].set(p['Gih_a'][:, src])
            Gih = Gih.at[ce + Ea:ce + Ea + Er, dst].set(p['Gih_r'][:, src])
            Gih = Gih.at[ce + Ea + Er:ce + E, dst].set(p['Gih_o'][:, src])
            Ghh = Ghh.at[ch:ch + H, dst].set(p['Ghh'][:, src])
            b_ih = b_ih.at[:, dst].set(p['b_ih'][:, src])
            b_hh = b_hh.at[:, dst].set(p['b_hh'][:, src])

    def qcat(p, key):                                       # twin-Q concat on N
        return jnp.concatenate([p['q1' + key], p['q2' + key]], axis=1)

    # fused layer-0 head on feat = [h(4H) | emb(4E)]
    BW = 2 * D1
    W0w = 3 * BW + 2 * D1
    W_head0 = jnp.zeros((HP + EP, W0w), f32)
    b_head0 = jnp.zeros((1, W0w), f32)
    for col, k in ((0, 1), (BW, 3), (2 * BW, 3)):            # bases: CT, CO, CO
        p = nets[k]
        W_head0 = W_head0.at[k * H:(k + 1) * H, col:col + BW].set(qcat(p, 'W0h'))
        r0 = HP + k * E + Ea + Er
        W_head0 = W_head0.at[r0:r0 + Eo, col:col + BW].set(qcat(p, 'W0o'))
        b_head0 = b_head0.at[:, col:col + BW].set(qcat(p, 'b0'))
    for col, k in ((3 * BW, 0), (3 * BW + D1, 2)):           # actor z0: AT, AO
        p = nets[k]
        W_head0 = W_head0.at[k * H:(k + 1) * H, col:col + D1].set(p['pW0h'])
        r0 = HP + k * E + Ea + Er
        W_head0 = W_head0.at[r0:r0 + Eo, col:col + D1].set(p['pW0o'])
        b_head0 = b_head0.at[:, col:col + D1].set(p['pb0'])

    # actor MLP (both actors block-diagonal)
    pW1 = jnp.zeros((2 * D1, 2 * D2), f32)
    pW1 = pW1.at[0:D1, 0:D2].set(actor_tgt['pW1']).at[D1:, D2:].set(actor_onl['pW1'])
    pb1 = jnp.concatenate([actor_tgt['pb1'], actor_onl['pb1']], axis=1)
    pW2 = jnp.zeros((2 * D2, 2 * A), f32)
    pW2 = pW2.at[0:D2, 0:A].set(actor_tgt['pW2']).at[D2:, A:].set(actor_onl['pW2'])
    pb2 = jnp.concatenate([actor_tgt['pb2'], actor_onl['pb2']], axis=1)

    # critic Q heads: three (critic, action-set) blocks: (CT,a_tgt), (CO,a_onl), (CO,a_taken)
    crits = (critic_tgt, critic_onl, critic_onl)
    Wca = jnp.zeros((3 * A, 3 * Ea), f32)
    bca = jnp.zeros((1, 3 * Ea), f32)
    cW0a = jnp.zeros((3 * Ea, 3 * BW), f32)
    cW1 = jnp.zeros((3 * BW, 6 * D2), f32)
    cb1 = jnp.zeros((1, 6 * D2), f32)
    cW2 = jnp.zeros((6 * D2, 8), f32)
    cb2 = jnp.zeros((1, 8), f32)
    for j, p in enumerate(crits):
        Wca = Wca.at[j * A:(j + 1) * A, j * Ea:(j + 1) * Ea].set(p['Wca'])
        bca = bca.at[:, j * Ea:(j + 1) * Ea].set(p['bca'])
        cW0a = cW0a.at[j * Ea:(j + 1) * Ea, j * BW:(j + 1) * BW].set(qcat(p, 'W0a'))
        cW1 = cW1.at[j * BW:j * BW + D1, j * 2 * D2:j * 2 * D2 + D2].set(p['q1W1'])
        cW1 = cW1.at[j * BW + D1:(j + 1) * BW, j * 2 * D2 + D2:(j + 1) * 2 * D2].set(p['q2W1'])
        cb1 = cb1.at[:, j * 2 * D2:j * 2 * D2 + D2].set(p['q1b1'])
        cb1 = cb1.at[:, j * 2 * D2 + D2:(j + 1) * 2 * D2].set(p['q2b1'])
        cW2 = cW2.at[j * 2 * D2:j * 2 * D2 + D2, 2 * j:2 * j + 1].set(p['q1W2'])
        cW2 = cW2.at[j * 2 * D2 + D2:(j + 1) * 2 * D2, 2 * j + 1:2 * j + 2].set(p['q2W2'])
        cb2 = cb2.at[:, 2 * j:2 * j + 1].set(p['q1b2'])
        cb2 = cb2.at[:, 2 * j + 1:2 * j + 2].set(p['q2b2'])

    bias_slab, boffs = _pack_biases([
        ('b_ih', b_ih), ('b_hh', b_hh), ('b_head0', b_head0),
        ('pb1', pb1), ('pb2', pb2), ('bca', bca), ('cb1', cb1), ('cb2', cb2)])

    fused = dict(W_emb=W_emb, Gih=Gih, Ghh=Ghh, W_head0=W_head0,
                 pW1=pW1, pW2=pW2, Wca=Wca, cW0a=cW0a, cW1=cW1, cW2=cW2,
                 bias=bias_slab)
    dims = dict(H=H, D1=D1, D2=D2, A=A)
    return fused, boffs, dims


# ----------------------------------------------------------------------------
# ModelFreeOffPolicy_Separate_RNN.forward (loss computation, no grad/opt step)
# ----------------------------------------------------------------------------

def model_forward(actor_p, actor_tgt_p, critic_p, critic_tgt_p,
                  actions, rewards, observs, dones, masks, gamma=0.99):
    # actions/rewards/observs/dones: (T+1, B, dim); masks: (T, B, 1)
    T1, B, A = actions.shape
    obs_dim = observs.shape[-1]
    T1B = T1 * B
    num_valid = jnp.maximum(masks.sum(), 1.0)

    x_in = jnp.concatenate(
        [actions.reshape(T1B, A), rewards.reshape(T1B, 1),
         observs.reshape(T1B, obs_dim), jnp.ones((T1B, 1), jnp.float32)], axis=1)
    # "current action" a[t+1] taken from history-summary h[t] (zero-padded tail,
    # its Q only reaches rows sliced off by [:-1] below)
    taken_next = jnp.concatenate(
        [actions[1:], jnp.zeros_like(actions[:1])], axis=0).reshape(T1B, A)

    fused, boffs, dims = build_fused_params(
        actor_tgt_p, critic_tgt_p, actor_p, critic_p, obs_dim, A)

    q = fused_forward(fused, boffs, x_in, taken_next, T1, B,
                      dims['H'], dims['D1'])                 # (T1B, 8)
    q = q.reshape(T1, B, 8)
    q_tgt = q[..., 0:2]      # target critic  @ target-actor actions
    q_new = q[..., 2:4]      # online critic  @ online-policy actions
    q_pred = q[..., 4:6]     # online critic  @ taken actions

    # --- critic loss (TD3-style twin-Q with target networks) ---
    min_q_next = jnp.min(q_tgt, axis=-1, keepdims=True)                  # (T+1,B,1)
    q_target = rewards[1:] + gamma * (1.0 - dones[1:]) * min_q_next[1:]  # (T,B,1)
    q1_pred = q_pred[:-1, :, 0:1]
    q2_pred = q_pred[:-1, :, 1:2]
    q1m, q2m, qtm = q1_pred * masks, q2_pred * masks, q_target * masks
    qf1_loss = ((q1m - qtm) ** 2).sum() / num_valid
    qf2_loss = ((q2m - qtm) ** 2).sum() / num_valid

    # --- actor loss ---
    policy_loss_t = -jnp.min(q_new, axis=-1, keepdims=True)[:-1]         # (T,B,1)
    policy_loss = (policy_loss_t * masks).sum() / num_valid

    return qf1_loss, qf2_loss, policy_loss


def soft_update(src, tgt, tau):
    return jax.tree_util.tree_map(lambda s, t: tau * s + (1.0 - tau) * t, src, tgt)


# ----------------------------------------------------------------------------
if __name__ == "__main__":
    T, B = 8, 8                  # B multiple of 8 (sublane-aligned); T1*B = 72
    obs_dim, action_dim = 16, 4
    Ea, Er, Eo = 8, 8, 16        # action / reward / observ embedding sizes
    H = 32                       # rnn_hidden_size (rnn_num_layers=1)
    D1 = D2 = 32                 # dqn_layers / policy_layers

    key = jax.random.PRNGKey(0)
    k_data, k_actor, k_critic = jax.random.split(key, 3)
    kd = jax.random.split(k_data, 5)

    actions = jax.random.uniform(kd[0], (T + 1, B, action_dim), jnp.float32, -1.0, 1.0)
    actions = actions.at[0].set(0.0)
    rewards = jax.random.normal(kd[1], (T + 1, B, 1), jnp.float32)
    rewards = rewards.at[0].set(0.0)
    observs = jax.random.normal(kd[2], (T + 1, B, obs_dim), jnp.float32)
    dones = (jax.random.uniform(kd[3], (T + 1, B, 1)) < 0.1).astype(jnp.float32)
    dones = dones.at[0].set(0.0)
    masks = (jax.random.uniform(kd[4], (T, B, 1)) < 0.9).astype(jnp.float32)

    actor_params = init_actor_params(k_actor, obs_dim, action_dim, Ea, Er, Eo, H, D1, D2)
    critic_params = init_critic_params(k_critic, obs_dim, action_dim, Ea, Er, Eo, H, D1, D2)
    actor_target = dict(actor_params)       # deepcopy-equivalent (immutable arrays)
    critic_target = dict(critic_params)

    fwd = jax.jit(model_forward)
    qf1_loss, qf2_loss, policy_loss = fwd(
        actor_params, actor_target, critic_params, critic_target,
        actions, rewards, observs, dones, masks, 0.99)

    # soft_target_update (tau=0.005), plain JAX elementwise glue
    critic_target = soft_update(critic_params, critic_target, 0.005)
    actor_target = soft_update(actor_params, actor_target, 0.005)

    jax.block_until_ready((qf1_loss, qf2_loss, policy_loss))
    for v in (qf1_loss, qf2_loss, policy_loss):
        assert jnp.isfinite(v)
    print("KERNEL_OK")
</pallas_src>

<mosaic_0001>
module attributes {stable_mosaic.version = 11 : i64} {
  func.func @fused_td3_kernel(%arg0: memref<72x22xf32, #tpu.memory_space<vmem>>, %arg1: memref<72x4xf32, #tpu.memory_space<vmem>>, %arg2: memref<22x128xf32, #tpu.memory_space<vmem>>, %arg3: memref<128x384xf32, #tpu.memory_space<vmem>>, %arg4: memref<128x384xf32, #tpu.memory_space<vmem>>, %arg5: memref<256x256xf32, #tpu.memory_space<vmem>>, %arg6: memref<64x64xf32, #tpu.memory_space<vmem>>, %arg7: memref<64x8xf32, #tpu.memory_space<vmem>>, %arg8: memref<12x24xf32, #tpu.memory_space<vmem>>, %arg9: memref<24x192xf32, #tpu.memory_space<vmem>>, %arg10: memref<192x192xf32, #tpu.memory_space<vmem>>, %arg11: memref<192x8xf32, #tpu.memory_space<vmem>>, %arg12: memref<1x1792xf32, #tpu.memory_space<vmem>>, %arg13: memref<72x8xf32, #tpu.memory_space<vmem>>, %arg14: memref<72x384xf32, #tpu.memory_space<vmem>>, %arg15: memref<72x256xf32, #tpu.memory_space<vmem>>) attributes {dimension_semantics = [], scalar_prefetch = 0 : i64, scratch_operands = 2 : i64, tpu.core_type = #tpu.core_type<tc>} {
    %c0 = arith.constant 0 : index
    %c0_0 = arith.constant 0 : index
    %0 = vector.load %arg0[%c0, %c0_0] : memref<72x22xf32, #tpu.memory_space<vmem>>, vector<72x22xf32>
    %c0_1 = arith.constant 0 : index
    %c0_2 = arith.constant 0 : index
    %1 = vector.load %arg2[%c0_1, %c0_2] : memref<22x128xf32, #tpu.memory_space<vmem>>, vector<22x128xf32>
    %cst = arith.constant dense<0.000000e+00> : vector<72x128xf32>
    %2 = tpu.matmul %0, %1, %cst {dimension_numbers = #tpu.dot_dimension_numbers<[1], [0], [0], [1], [0, 0, 1, 1], [], []>} : vector<72x22xf32>, vector<22x128xf32>, vector<72x128xf32> -> vector<72x128xf32>
    %cst_3 = arith.constant 0.000000e+00 : f32
    %3 = vector.broadcast %cst_3 : f32 to vector<72x128xf32>
    %4 = arith.maximumf %2, %3 : vector<72x128xf32>
    %c0_4 = arith.constant 0 : index
    %c128 = arith.constant 128 : index
    %5 = vector.load %arg15[%c0_4, %c128] : memref<72x256xf32, #tpu.memory_space<vmem>>, vector<72x128xf32>
    tpu.vector_store %arg15[%c0_4, %c128], %4 {strides = array<i32>} : memref<72x256xf32, #tpu.memory_space<vmem>>, vector<72x128xf32>,
    %c0_5 = arith.constant 0 : index
    %c0_6 = arith.constant 0 : index
    %6 = vector.load %arg3[%c0_5, %c0_6] : memref<128x384xf32, #tpu.memory_space<vmem>>, vector<128x384xf32>
    %cst_7 = arith.constant dense<0.000000e+00> : vector<72x384xf32>
    %7 = tpu.matmul %4, %6, %cst_7 {dimension_numbers = #tpu.dot_dimension_numbers<[1], [0], [0], [1], [0, 0, 1, 1], [], []>} : vector<72x128xf32>, vector<128x384xf32>, vector<72x384xf32> -> vector<72x384xf32>
    %c0_8 = arith.constant 0 : index
    %c0_9 = arith.constant 0 : index
    %8 = vector.load %arg12[%c0_8, %c0_9] : memref<1x1792xf32, #tpu.memory_space<vmem>>, vector<1x384xf32>
    %9 = vector.broadcast %8 : vector<1x384xf32> to vector<72x384xf32>
    %10 = arith.addf %7, %9 : vector<72x384xf32>
    %c0_10 = arith.constant 0 : index
    %c0_11 = arith.constant 0 : index
    %11 = vector.load %arg14[%c0_10, %c0_11] : memref<72x384xf32, #tpu.memory_space<vmem>>, vector<72x384xf32>
    tpu.vector_store %arg14[%c0_10, %c0_11], %10 {strides = array<i32>} : memref<72x384xf32, #tpu.memory_space<vmem>>, vector<72x384xf32>,
    %c0_12 = arith.constant 0 : index
    %c0_13 = arith.constant 0 : index
    %12 = vector.load %arg4[%c0_12, %c0_13] : memref<128x384xf32, #tpu.memory_space<vmem>>, vector<128x384xf32>
    %c0_14 = arith.constant 0 : index
    %c384 = arith.constant 384 : index
    %13 = vector.load %arg12[%c0_14, %c384] : memref<1x1792xf32, #tpu.memory_space<vmem>>, vector<1x384xf32>
    %14 = vector.shape_cast %13 : vector<1x384xf32> to vector<1x384xf32>
    %15 = vector.broadcast %14 : vector<1x384xf32> to vector<8x384xf32>
    %cst_15 = arith.constant 0.000000e+00 : f32
    %16 = vector.broadcast %cst_15 : f32 to vector<8x128xf32>
    %c0_i32 = arith.constant 0 : i32
    %c8_i32 = arith.constant 8 : i32
    %17 = arith.muli %c0_i32, %c8_i32 : i32
    %18 = tpu.assume_multiple %17, 8 : i32
    %19 = arith.index_cast %18 : i32 to index
    %c0_16 = arith.constant 0 : index
    %20 = vector.load %arg14[%19, %c0_16] : memref<72x384xf32, #tpu.memory_space<vmem>>, vector<8x384xf32>
    %cst_17 = arith.constant dense<0.000000e+00> : vector<8x384xf32>
    %21 = tpu.matmul %16, %12, %cst_17 {dimension_numbers = #tpu.dot_dimension_numbers<[1], [0], [0], [1], [0, 0, 1, 1], [], []>} : vector<8x128xf32>, vector<128x384xf32>, vector<8x384xf32> -> vector<8x384xf32>
    %22 = arith.addf %21, %15 : vector<8x384xf32>
    %23 = vector.extract_strided_slice %20 {offsets = [0, 0], sizes = [8, 256], strides = [1, 1]} : vector<8x384xf32> to vector<8x256xf32>
    %24 = vector.extract_strided_slice %22 {offsets = [0, 0], sizes = [8, 256], strides = [1, 1]} : vector<8x384xf32> to vector<8x256xf32>
    %25 = arith.addf %23, %24 : vector<8x256xf32>
    %26 = arith.negf %25 : vector<8x256xf32>
    %27 = math.exp %26 : vector<8x256xf32>
    %cst_18 = arith.constant 1.000000e+00 : f32
    %28 = vector.broadcast %cst_18 : f32 to vector<8x256xf32>
    %29 = arith.addf %28, %27 : vector<8x256xf32>
    %30 = arith.divf %28, %29 : vector<8x256xf32>
    %31 = vector.extract_strided_slice %30 {offsets = [0, 0], sizes = [8, 128], strides = [1, 1]} : vector<8x256xf32> to vector<8x128xf32>
    %32 = vector.extract_strided_slice %30 {offsets = [0, 128], sizes = [8, 128], strides = [1, 1]} : vector<8x256xf32> to vector<8x128xf32>
    %33 = vector.extract_strided_slice %20 {offsets = [0, 256], sizes = [8, 128], strides = [1, 1]} : vector<8x384xf32> to vector<8x128xf32>
    %34 = vector.extract_strided_slice %22 {offsets = [0, 256], sizes = [8, 128], strides = [1, 1]} : vector<8x384xf32> to vector<8x128xf32>
    %35 = arith.mulf %31, %34 : vector<8x128xf32>
    %36 = arith.addf %33, %35 : vector<8x128xf32>
    %37 = math.tanh %36 : vector<8x128xf32>
    %cst_19 = arith.constant 1.000000e+00 : f32
    %38 = vector.broadcast %cst_19 : f32 to vector<8x128xf32>
    %39 = arith.subf %38, %32 : vector<8x128xf32>
    %40 = arith.mulf %39, %37 : vector<8x128xf32>
    %41 = arith.mulf %32, %16 : vector<8x128xf32>
    %42 = arith.addf %40, %41 : vector<8x128xf32>
    %43 = arith.index_cast %18 : i32 to index
    %c0_20 = arith.constant 0 : index
    %44 = vector.load %arg15[%43, %c0_20] : memref<72x256xf32, #tpu.memory_space<vmem>>, vector<8x128xf32>
    tpu.vector_store %arg15[%43, %c0_20], %42 {strides = array<i32>} : memref<72x256xf32, #tpu.memory_space<vmem>>, vector<8x128xf32>,
    %c1_i32 = arith.constant 1 : i32
    %c8_i32_21 = arith.constant 8 : i32
    %45 = arith.muli %c1_i32, %c8_i32_21 : i32
    %46 = tpu.assume_multiple %45, 8 : i32
    %47 = arith.index_cast %46 : i32 to index
    %c0_22 = arith.constant 0 : index
    %48 = vector.load %arg14[%47, %c0_22] : memref<72x384xf32, #tpu.memory_space<vmem>>, vector<8x384xf32>
    %cst_23 = arith.constant dense<0.000000e+00> : vector<8x384xf32>
    %49 = tpu.matmul %42, %12, %cst_23 {dimension_numbers = #tpu.dot_dimension_numbers<[1], [0], [0], [1], [0, 0, 1, 1], [], []>} : vector<8x128xf32>, vector<128x384xf32>, vector<8x384xf32> -> vector<8x384xf32>
    %50 = arith.addf %49, %15 : vector<8x384xf32>
    %51 = vector.extract_strided_slice %48 {offsets = [0, 0], sizes = [8, 256], strides = [1, 1]} : vector<8x384xf32> to vector<8x256xf32>
    %52 = vector.extract_strided_slice %50 {offsets = [0, 0], sizes = [8, 256], strides = [1, 1]} : vector<8x384xf32> to vector<8x256xf32>
    %53 = arith.addf %51, %52 : vector<8x256xf32>
    %54 = arith.negf %53 : vector<8x256xf32>
    %55 = math.exp %54 : vector<8x256xf32>
    %cst_24 = arith.constant 1.000000e+00 : f32
    %56 = vector.broadcast %cst_24 : f32 to vector<8x256xf32>
    %57 = arith.addf %56, %55 : vector<8x256xf32>
    %58 = arith.divf %56, %57 : vector<8x256xf32>
    %59 = vector.extract_strided_slice %58 {offsets = [0, 0], sizes = [8, 128], strides = [1, 1]} : vector<8x256xf32> to vector<8x128xf32>
    %60 = vector.extract_strided_slice %58 {offsets = [0, 128], sizes = [8, 128], strides = [1, 1]} : vector<8x256xf32> to vector<8x128xf32>
    %61 = vector.extract_strided_slice %48 {offsets = [0, 256], sizes = [8, 128], strides = [1, 1]} : vector<8x384xf32> to vector<8x128xf32>
    %62 = vector.extract_strided_slice %50 {offsets = [0, 256], sizes = [8, 128], strides = [1, 1]} : vector<8x384xf32> to vector<8x128xf32>
    %63 = arith.mulf %59, %62 : vector<8x128xf32>
    %64 = arith.addf %61, %63 : vector<8x128xf32>
    %65 = math.tanh %64 : vector<8x128xf32>
    %cst_25 = arith.constant 1.000000e+00 : f32
    %66 = vector.broadcast %cst_25 : f32 to vector<8x128xf32>
    %67 = arith.subf %66, %60 : vector<8x128xf32>
    %68 = arith.mulf %67, %65 : vector<8x128xf32>
    %69 = arith.mulf %60, %42 : vector<8x128xf32>
    %70 = arith.addf %68, %69 : vector<8x128xf32>
    %71 = arith.index_cast %46 : i32 to index
    %c0_26 = arith.constant 0 : index
    %72 = vector.load %arg15[%71, %c0_26] : memref<72x256xf32, #tpu.memory_space<vmem>>, vector<8x128xf32>
    tpu.vector_store %arg15[%71, %c0_26], %70 {strides = array<i32>} : memref<72x256xf32, #tpu.memory_space<vmem>>, vector<8x128xf32>,
    %c2_i32 = arith.constant 2 : i32
    %c8_i32_27 = arith.constant 8 : i32
    %73 = arith.muli %c2_i32, %c8_i32_27 : i32
    %74 = tpu.assume_multiple %73, 8 : i32
    %75 = arith.index_cast %74 : i32 to index
    %c0_28 = arith.constant 0 : index
    %76 = vector.load %arg14[%75, %c0_28] : memref<72x384xf32, #tpu.memory_space<vmem>>, vector<8x384xf32>
    %cst_29 = arith.constant dense<0.000000e+00> : vector<8x384xf32>
    %77 = tpu.matmul %70, %12, %cst_29 {dimension_numbers = #tpu.dot_dimension_numbers<[1], [0], [0], [1], [0, 0, 1, 1], [], []>} : vector<8x128xf32>, vector<128x384xf32>, vector<8x384xf32> -> vector<8x384xf32>
    %78 = arith.addf %77, %15 : vector<8x384xf32>
    %79 = vector.extract_strided_slice %76 {offsets = [0, 0], sizes = [8, 256], strides = [1, 1]} : vector<8x384xf32> to vector<8x256xf32>
    %80 = vector.extract_strided_slice %78 {offsets = [0, 0], sizes = [8, 256], strides = [1, 1]} : vector<8x384xf32> to vector<8x256xf32>
    %81 = arith.addf %79, %80 : vector<8x256xf32>
    %82 = arith.negf %81 : vector<8x256xf32>
    %83 = math.exp %82 : vector<8x256xf32>
    %cst_30 = arith.constant 1.000000e+00 : f32
    %84 = vector.broadcast %cst_30 : f32 to vector<8x256xf32>
    %85 = arith.addf %84, %83 : vector<8x256xf32>
    %86 = arith.divf %84, %85 : vector<8x256xf32>
    %87 = vector.extract_strided_slice %86 {offsets = [0, 0], sizes = [8, 128], strides = [1, 1]} : vector<8x256xf32> to vector<8x128xf32>
    %88 = vector.extract_strided_slice %86 {offsets = [0, 128], sizes = [8, 128], strides = [1, 1]} : vector<8x256xf32> to vector<8x128xf32>
    %89 = vector.extract_strided_slice %76 {offsets = [0, 256], sizes = [8, 128], strides = [1, 1]} : vector<8x384xf32> to vector<8x128xf32>
    %90 = vector.extract_strided_slice %78 {offsets = [0, 256], sizes = [8, 128], strides = [1, 1]} : vector<8x384xf32> to vector<8x128xf32>
    %91 = arith.mulf %87, %90 : vector<8x128xf32>
    %92 = arith.addf %89, %91 : vector<8x128xf32>
    %93 = math.tanh %92 : vector<8x128xf32>
    %cst_31 = arith.constant 1.000000e+00 : f32
    %94 = vector.broadcast %cst_31 : f32 to vector<8x128xf32>
    %95 = arith.subf %94, %88 : vector<8x128xf32>
    %96 = arith.mulf %95, %93 : vector<8x128xf32>
    %97 = arith.mulf %88, %70 : vector<8x128xf32>
    %98 = arith.addf %96, %97 : vector<8x128xf32>
    %99 = arith.index_cast %74 : i32 to index
    %c0_32 = arith.constant 0 : index
    %100 = vector.load %arg15[%99, %c0_32] : memref<72x256xf32, #tpu.memory_space<vmem>>, vector<8x128xf32>
    tpu.vector_store %arg15[%99, %c0_32], %98 {strides = array<i32>} : memref<72x256xf32, #tpu.memory_space<vmem>>, vector<8x128xf32>,
    %c3_i32 = arith.constant 3 : i32
    %c8_i32_33 = arith.constant 8 : i32
    %101 = arith.muli %c3_i32, %c8_i32_33 : i32
    %102 = tpu.assume_multiple %101, 8 : i32
    %103 = arith.index_cast %102 : i32 to index
    %c0_34 = arith.constant 0 : index
    %104 = vector.load %arg14[%103, %c0_34] : memref<72x384xf32, #tpu.memory_space<vmem>>, vector<8x384xf32>
    %cst_35 = arith.constant dense<0.000000e+00> : vector<8x384xf32>
    %105 = tpu.matmul %98, %12, %cst_35 {dimension_numbers = #tpu.dot_dimension_numbers<[1], [0], [0], [1], [0, 0, 1, 1], [], []>} : vector<8x128xf32>, vector<128x384xf32>, vector<8x384xf32> -> vector<8x384xf32>
    %106 = arith.addf %105, %15 : vector<8x384xf32>
    %107 = vector.extract_strided_slice %104 {offsets = [0, 0], sizes = [8, 256], strides = [1, 1]} : vector<8x384xf32> to vector<8x256xf32>
    %108 = vector.extract_strided_slice %106 {offsets = [0, 0], sizes = [8, 256], strides = [1, 1]} : vector<8x384xf32> to vector<8x256xf32>
    %109 = arith.addf %107, %108 : vector<8x256xf32>
    %110 = arith.negf %109 : vector<8x256xf32>
    %111 = math.exp %110 : vector<8x256xf32>
    %cst_36 = arith.constant 1.000000e+00 : f32
    %112 = vector.broadcast %cst_36 : f32 to vector<8x256xf32>
    %113 = arith.addf %112, %111 : vector<8x256xf32>
    %114 = arith.divf %112, %113 : vector<8x256xf32>
    %115 = vector.extract_strided_slice %114 {offsets = [0, 0], sizes = [8, 128], strides = [1, 1]} : vector<8x256xf32> to vector<8x128xf32>
    %116 = vector.extract_strided_slice %114 {offsets = [0, 128], sizes = [8, 128], strides = [1, 1]} : vector<8x256xf32> to vector<8x128xf32>
    %117 = vector.extract_strided_slice %104 {offsets = [0, 256], sizes = [8, 128], strides = [1, 1]} : vector<8x384xf32> to vector<8x128xf32>
    %118 = vector.extract_strided_slice %106 {offsets = [0, 256], sizes = [8, 128], strides = [1, 1]} : vector<8x384xf32> to vector<8x128xf32>
    %119 = arith.mulf %115, %118 : vector<8x128xf32>
    %120 = arith.addf %117, %119 : vector<8x128xf32>
    %121 = math.tanh %120 : vector<8x128xf32>
    %cst_37 = arith.constant 1.000000e+00 : f32
    %122 = vector.broadcast %cst_37 : f32 to vector<8x128xf32>
    %123 = arith.subf %122, %116 : vector<8x128xf32>
    %124 = arith.mulf %123, %121 : vector<8x128xf32>
    %125 = arith.mulf %116, %98 : vector<8x128xf32>
    %126 = arith.addf %124, %125 : vector<8x128xf32>
    %127 = arith.index_cast %102 : i32 to index
    %c0_38 = arith.constant 0 : index
    %128 = vector.load %arg15[%127, %c0_38] : memref<72x256xf32, #tpu.memory_space<vmem>>, vector<8x128xf32>
    tpu.vector_store %arg15[%127, %c0_38], %126 {strides = array<i32>} : memref<72x256xf32, #tpu.memory_space<vmem>>, vector<8x128xf32>,
    %c4_i32 = arith.constant 4 : i32
    %c8_i32_39 = arith.constant 8 : i32
    %129 = arith.muli %c4_i32, %c8_i32_39 : i32
    %130 = tpu.assume_multiple %129, 8 : i32
    %131 = arith.index_cast %130 : i32 to index
    %c0_40 = arith.constant 0 : index
    %132 = vector.load %arg14[%131, %c0_40] : memref<72x384xf32, #tpu.memory_space<vmem>>, vector<8x384xf32>
    %cst_41 = arith.constant dense<0.000000e+00> : vector<8x384xf32>
    %133 = tpu.matmul %126, %12, %cst_41 {dimension_numbers = #tpu.dot_dimension_numbers<[1], [0], [0], [1], [0, 0, 1, 1], [], []>} : vector<8x128xf32>, vector<128x384xf32>, vector<8x384xf32> -> vector<8x384xf32>
    %134 = arith.addf %133, %15 : vector<8x384xf32>
    %135 = vector.extract_strided_slice %132 {offsets = [0, 0], sizes = [8, 256], strides = [1, 1]} : vector<8x384xf32> to vector<8x256xf32>
    %136 = vector.extract_strided_slice %134 {offsets = [0, 0], sizes = [8, 256], strides = [1, 1]} : vector<8x384xf32> to vector<8x256xf32>
    %137 = arith.addf %135, %136 : vector<8x256xf32>
    %138 = arith.negf %137 : vector<8x256xf32>
    %139 = math.exp %138 : vector<8x256xf32>
    %cst_42 = arith.constant 1.000000e+00 : f32
    %140 = vector.broadcast %cst_42 : f32 to vector<8x256xf32>
    %141 = arith.addf %140, %139 : vector<8x256xf32>
    %142 = arith.divf %140, %141 : vector<8x256xf32>
    %143 = vector.extract_strided_slice %142 {offsets = [0, 0], sizes = [8, 128], strides = [1, 1]} : vector<8x256xf32> to vector<8x128xf32>
    %144 = vector.extract_strided_slice %142 {offsets = [0, 128], sizes = [8, 128], strides = [1, 1]} : vector<8x256xf32> to vector<8x128xf32>
    %145 = vector.extract_strided_slice %132 {offsets = [0, 256], sizes = [8, 128], strides = [1, 1]} : vector<8x384xf32> to vector<8x128xf32>
    %146 = vector.extract_strided_slice %134 {offsets = [0, 256], sizes = [8, 128], strides = [1, 1]} : vector<8x384xf32> to vector<8x128xf32>
    %147 = arith.mulf %143, %146 : vector<8x128xf32>
    %148 = arith.addf %145, %147 : vector<8x128xf32>
    %149 = math.tanh %148 : vector<8x128xf32>
    %cst_43 = arith.constant 1.000000e+00 : f32
    %150 = vector.broadcast %cst_43 : f32 to vector<8x128xf32>
    %151 = arith.subf %150, %144 : vector<8x128xf32>
    %152 = arith.mulf %151, %149 : vector<8x128xf32>
    %153 = arith.mulf %144, %126 : vector<8x128xf32>
    %154 = arith.addf %152, %153 : vector<8x128xf32>
    %155 = arith.index_cast %130 : i32 to index
    %c0_44 = arith.constant 0 : index
    %156 = vector.load %arg15[%155, %c0_44] : memref<72x256xf32, #tpu.memory_space<vmem>>, vector<8x128xf32>
    tpu.vector_store %arg15[%155, %c0_44], %154 {strides = array<i32>} : memref<72x256xf32, #tpu.memory_space<vmem>>, vector<8x128xf32>,
    %c5_i32 = arith.constant 5 : i32
    %c8_i32_45 = arith.constant 8 : i32
    %157 = arith.muli %c5_i32, %c8_i32_45 : i32
    %158 = tpu.assume_multiple %157, 8 : i32
    %159 = arith.index_cast %158 : i32 to index
    %c0_46 = arith.constant 0 : index
    %160 = vector.load %arg14[%159, %c0_46] : memref<72x384xf32, #tpu.memory_space<vmem>>, vector<8x384xf32>
    %cst_47 = arith.constant dense<0.000000e+00> : vector<8x384xf32>
    %161 = tpu.matmul %154, %12, %cst_47 {dimension_numbers = #tpu.dot_dimension_numbers<[1], [0], [0], [1], [0, 0, 1, 1], [], []>} : vector<8x128xf32>, vector<128x384xf32>, vector<8x384xf32> -> vector<8x384xf32>
    %162 = arith.addf %161, %15 : vector<8x384xf32>
    %163 = vector.extract_strided_slice %160 {offsets = [0, 0], sizes = [8, 256], strides = [1, 1]} : vector<8x384xf32> to vector<8x256xf32>
    %164 = vector.extract_strided_slice %162 {offsets = [0, 0], sizes = [8, 256], strides = [1, 1]} : vector<8x384xf32> to vector<8x256xf32>
    %165 = arith.addf %163, %164 : vector<8x256xf32>
    %166 = arith.negf %165 : vector<8x256xf32>
    %167 = math.exp %166 : vector<8x256xf32>
    %cst_48 = arith.constant 1.000000e+00 : f32
    %168 = vector.broadcast %cst_48 : f32 to vector<8x256xf32>
    %169 = arith.addf %168, %167 : vector<8x256xf32>
    %170 = arith.divf %168, %169 : vector<8x256xf32>
    %171 = vector.extract_strided_slice %170 {offsets = [0, 0], sizes = [8, 128], strides = [1, 1]} : vector<8x256xf32> to vector<8x128xf32>
    %172 = vector.extract_strided_slice %170 {offsets = [0, 128], sizes = [8, 128], strides = [1, 1]} : vector<8x256xf32> to vector<8x128xf32>
    %173 = vector.extract_strided_slice %160 {offsets = [0, 256], sizes = [8, 128], strides = [1, 1]} : vector<8x384xf32> to vector<8x128xf32>
    %174 = vector.extract_strided_slice %162 {offsets = [0, 256], sizes = [8, 128], strides = [1, 1]} : vector<8x384xf32> to vector<8x128xf32>
    %175 = arith.mulf %171, %174 : vector<8x128xf32>
    %176 = arith.addf %173, %175 : vector<8x128xf32>
    %177 = math.tanh %176 : vector<8x128xf32>
    %cst_49 = arith.constant 1.000000e+00 : f32
    %178 = vector.broadcast %cst_49 : f32 to vector<8x128xf32>
    %179 = arith.subf %178, %172 : vector<8x128xf32>
    %180 = arith.mulf %179, %177 : vector<8x128xf32>
    %181 = arith.mulf %172, %154 : vector<8x128xf32>
    %182 = arith.addf %180, %181 : vector<8x128xf32>
    %183 = arith.index_cast %158 : i32 to index
    %c0_50 = arith.constant 0 : index
    %184 = vector.load %arg15[%183, %c0_50] : memref<72x256xf32, #tpu.memory_space<vmem>>, vector<8x128xf32>
    tpu.vector_store %arg15[%183, %c0_50], %182 {strides = array<i32>} : memref<72x256xf32, #tpu.memory_space<vmem>>, vector<8x128xf32>,
    %c6_i32 = arith.constant 6 : i32
    %c8_i32_51 = arith.constant 8 : i32
    %185 = arith.muli %c6_i32, %c8_i32_51 : i32
    %186 = tpu.assume_multiple %185, 8 : i32
    %187 = arith.index_cast %186 : i32 to index
    %c0_52 = arith.constant 0 : index
    %188 = vector.load %arg14[%187, %c0_52] : memref<72x384xf32, #tpu.memory_space<vmem>>, vector<8x384xf32>
    %cst_53 = arith.constant dense<0.000000e+00> : vector<8x384xf32>
    %189 = tpu.matmul %182, %12, %cst_53 {dimension_numbers = #tpu.dot_dimension_numbers<[1], [0], [0], [1], [0, 0, 1, 1], [], []>} : vector<8x128xf32>, vector<128x384xf32>, vector<8x384xf32> -> vector<8x384xf32>
    %190 = arith.addf %189, %15 : vector<8x384xf32>
    %191 = vector.extract_strided_slice %188 {offsets = [0, 0], sizes = [8, 256], strides = [1, 1]} : vector<8x384xf32> to vector<8x256xf32>
    %192 = vector.extract_strided_slice %190 {offsets = [0, 0], sizes = [8, 256], strides = [1, 1]} : vector<8x384xf32> to vector<8x256xf32>
    %193 = arith.addf %191, %192 : vector<8x256xf32>
    %194 = arith.negf %193 : vector<8x256xf32>
    %195 = math.exp %194 : vector<8x256xf32>
    %cst_54 = arith.constant 1.000000e+00 : f32
    %196 = vector.broadcast %cst_54 : f32 to vector<8x256xf32>
    %197 = arith.addf %196, %195 : vector<8x256xf32>
    %198 = arith.divf %196, %197 : vector<8x256xf32>
    %199 = vector.extract_strided_slice %198 {offsets = [0, 0], sizes = [8, 128], strides = [1, 1]} : vector<8x256xf32> to vector<8x128xf32>
    %200 = vector.extract_strided_slice %198 {offsets = [0, 128], sizes = [8, 128], strides = [1, 1]} : vector<8x256xf32> to vector<8x128xf32>
    %201 = vector.extract_strided_slice %188 {offsets = [0, 256], sizes = [8, 128], strides = [1, 1]} : vector<8x384xf32> to vector<8x128xf32>
    %202 = vector.extract_strided_slice %190 {offsets = [0, 256], sizes = [8, 128], strides = [1, 1]} : vector<8x384xf32> to vector<8x128xf32>
    %203 = arith.mulf %199, %202 : vector<8x128xf32>
    %204 = arith.addf %201, %203 : vector<8x128xf32>
    %205 = math.tanh %204 : vector<8x128xf32>
    %cst_55 = arith.constant 1.000000e+00 : f32
    %206 = vector.broadcast %cst_55 : f32 to vector<8x128xf32>
    %207 = arith.subf %206, %200 : vector<8x128xf32>
    %208 = arith.mulf %207, %205 : vector<8x128xf32>
    %209 = arith.mulf %200, %182 : vector<8x128xf32>
    %210 = arith.addf %208, %209 : vector<8x128xf32>
    %211 = arith.index_cast %186 : i32 to index
    %c0_56 = arith.constant 0 : index
    %212 = vector.load %arg15[%211, %c0_56] : memref<72x256xf32, #tpu.memory_space<vmem>>, vector<8x128xf32>
    tpu.vector_store %arg15[%211, %c0_56], %210 {strides = array<i32>} : memref<72x256xf32, #tpu.memory_space<vmem>>, vector<8x128xf32>,
    %c7_i32 = arith.constant 7 : i32
    %c8_i32_57 = arith.constant 8 : i32
    %213 = arith.muli %c7_i32, %c8_i32_57 : i32
    %214 = tpu.assume_multiple %213, 8 : i32
    %215 = arith.index_cast %214 : i32 to index
    %c0_58 = arith.constant 0 : index
    %216 = vector.load %arg14[%215, %c0_58] : memref<72x384xf32, #tpu.memory_space<vmem>>, vector<8x384xf32>
    %cst_59 = arith.constant dense<0.000000e+00> : vector<8x384xf32>
    %217 = tpu.matmul %210, %12, %cst_59 {dimension_numbers = #tpu.dot_dimension_numbers<[1], [0], [0], [1], [0, 0, 1, 1], [], []>} : vector<8x128xf32>, vector<128x384xf32>, vector<8x384xf32> -> vector<8x384xf32>
    %218 = arith.addf %217, %15 : vector<8x384xf32>
    %219 = vector.extract_strided_slice %216 {offsets = [0, 0], sizes = [8, 256], strides = [1, 1]} : vector<8x384xf32> to vector<8x256xf32>
    %220 = vector.extract_strided_slice %218 {offsets = [0, 0], sizes = [8, 256], strides = [1, 1]} : vector<8x384xf32> to vector<8x256xf32>
    %221 = arith.addf %219, %220 : vector<8x256xf32>
    %222 = arith.negf %221 : vector<8x256xf32>
    %223 = math.exp %222 : vector<8x256xf32>
    %cst_60 = arith.constant 1.000000e+00 : f32
    %224 = vector.broadcast %cst_60 : f32 to vector<8x256xf32>
    %225 = arith.addf %224, %223 : vector<8x256xf32>
    %226 = arith.divf %224, %225 : vector<8x256xf32>
    %227 = vector.extract_strided_slice %226 {offsets = [0, 0], sizes = [8, 128], strides = [1, 1]} : vector<8x256xf32> to vector<8x128xf32>
    %228 = vector.extract_strided_slice %226 {offsets = [0, 128], sizes = [8, 128], strides = [1, 1]} : vector<8x256xf32> to vector<8x128xf32>
    %229 = vector.extract_strided_slice %216 {offsets = [0, 256], sizes = [8, 128], strides = [1, 1]} : vector<8x384xf32> to vector<8x128xf32>
    %230 = vector.extract_strided_slice %218 {offsets = [0, 256], sizes = [8, 128], strides = [1, 1]} : vector<8x384xf32> to vector<8x128xf32>
    %231 = arith.mulf %227, %230 : vector<8x128xf32>
    %232 = arith.addf %229, %231 : vector<8x128xf32>
    %233 = math.tanh %232 : vector<8x128xf32>
    %cst_61 = arith.constant 1.000000e+00 : f32
    %234 = vector.broadcast %cst_61 : f32 to vector<8x128xf32>
    %235 = arith.subf %234, %228 : vector<8x128xf32>
    %236 = arith.mulf %235, %233 : vector<8x128xf32>
    %237 = arith.mulf %228, %210 : vector<8x128xf32>
    %238 = arith.addf %236, %237 : vector<8x128xf32>
    %239 = arith.index_cast %214 : i32 to index
    %c0_62 = arith.constant 0 : index
    %240 = vector.load %arg15[%239, %c0_62] : memref<72x256xf32, #tpu.memory_space<vmem>>, vector<8x128xf32>
    tpu.vector_store %arg15[%239, %c0_62], %238 {strides = array<i32>} : memref<72x256xf32, #tpu.memory_space<vmem>>, vector<8x128xf32>,
    %c8_i32_63 = arith.constant 8 : i32
    %c8_i32_64 = arith.constant 8 : i32
    %241 = arith.muli %c8_i32_63, %c8_i32_64 : i32
    %242 = tpu.assume_multiple %241, 8 : i32
    %243 = arith.index_cast %242 : i32 to index
    %c0_65 = arith.constant 0 : index
    %244 = vector.load %arg14[%243, %c0_65] : memref<72x384xf32, #tpu.memory_space<vmem>>, vector<8x384xf32>
    %cst_66 = arith.constant dense<0.000000e+00> : vector<8x384xf32>
    %245 = tpu.matmul %238, %12, %cst_66 {dimension_numbers = #tpu.dot_dimension_numbers<[1], [0], [0], [1], [0, 0, 1, 1], [], []>} : vector<8x128xf32>, vector<128x384xf32>, vector<8x384xf32> -> vector<8x384xf32>
    %246 = arith.addf %245, %15 : vector<8x384xf32>
    %247 = vector.extract_strided_slice %244 {offsets = [0, 0], sizes = [8, 256], strides = [1, 1]} : vector<8x384xf32> to vector<8x256xf32>
    %248 = vector.extract_strided_slice %246 {offsets = [0, 0], sizes = [8, 256], strides = [1, 1]} : vector<8x384xf32> to vector<8x256xf32>
    %249 = arith.addf %247, %248 : vector<8x256xf32>
    %250 = arith.negf %249 : vector<8x256xf32>
    %251 = math.exp %250 : vector<8x256xf32>
    %cst_67 = arith.constant 1.000000e+00 : f32
    %252 = vector.broadcast %cst_67 : f32 to vector<8x256xf32>
    %253 = arith.addf %252, %251 : vector<8x256xf32>
    %254 = arith.divf %252, %253 : vector<8x256xf32>
    %255 = vector.extract_strided_slice %254 {offsets = [0, 0], sizes = [8, 128], strides = [1, 1]} : vector<8x256xf32> to vector<8x128xf32>
    %256 = vector.extract_strided_slice %254 {offsets = [0, 128], sizes = [8, 128], strides = [1, 1]} : vector<8x256xf32> to vector<8x128xf32>
    %257 = vector.extract_strided_slice %244 {offsets = [0, 256], sizes = [8, 128], strides = [1, 1]} : vector<8x384xf32> to vector<8x128xf32>
    %258 = vector.extract_strided_slice %246 {offsets = [0, 256], sizes = [8, 128], strides = [1, 1]} : vector<8x384xf32> to vector<8x128xf32>
    %259 = arith.mulf %255, %258 : vector<8x128xf32>
    %260 = arith.addf %257, %259 : vector<8x128xf32>
    %261 = math.tanh %260 : vector<8x128xf32>
    %cst_68 = arith.constant 1.000000e+00 : f32
    %262 = vector.broadcast %cst_68 : f32 to vector<8x128xf32>
    %263 = arith.subf %262, %256 : vector<8x128xf32>
    %264 = arith.mulf %263, %261 : vector<8x128xf32>
    %265 = arith.mulf %256, %238 : vector<8x128xf32>
    %266 = arith.addf %264, %265 : vector<8x128xf32>
    %267 = arith.index_cast %242 : i32 to index
    %c0_69 = arith.constant 0 : index
    %268 = vector.load %arg15[%267, %c0_69] : memref<72x256xf32, #tpu.memory_space<vmem>>, vector<8x128xf32>
    tpu.vector_store %arg15[%267, %c0_69], %266 {strides = array<i32>} : memref<72x256xf32, #tpu.memory_space<vmem>>, vector<8x128xf32>,
    %c9_i32 = arith.constant 9 : i32
    %c0_70 = arith.constant 0 : index
    %c0_71 = arith.constant 0 : index
    %269 = vector.load %arg15[%c0_70, %c0_71] : memref<72x256xf32, #tpu.memory_space<vmem>>, vector<72x256xf32>
    %c0_72 = arith.constant 0 : index
    %c0_73 = arith.constant 0 : index
    %270 = vector.load %arg5[%c0_72, %c0_73] : memref<256x256xf32, #tpu.memory_space<vmem>>, vector<256x256xf32>
    %cst_74 = arith.constant dense<0.000000e+00> : vector<72x256xf32>
    %271 = tpu.matmul %269, %270, %cst_74 {dimension_numbers = #tpu.dot_dimension_numbers<[1], [0], [0], [1], [0, 0, 1, 1], [], []>} : vector<72x256xf32>, vector<256x256xf32>, vector<72x256xf32> -> vector<72x256xf32>
    %c0_75 = arith.constant 0 : index
    %c768 = arith.constant 768 : index
    %272 = vector.load %arg12[%c0_75, %c768] : memref<1x1792xf32, #tpu.memory_space<vmem>>, vector<1x256xf32>
    %273 = vector.broadcast %272 : vector<1x256xf32> to vector<72x256xf32>
    %274 = arith.addf %271, %273 : vector<72x256xf32>
    %275 = vector.extract_strided_slice %274 {offsets = [0, 0], sizes = [72, 192], strides = [1, 1]} : vector<72x256xf32> to vector<72x192xf32>
    %276 = vector.extract_strided_slice %274 {offsets = [0, 192], sizes = [72, 64], strides = [1, 1]} : vector<72x256xf32> to vector<72x64xf32>
    %cst_76 = arith.constant 0.000000e+00 : f32
    %277 = vector.broadcast %cst_76 : f32 to vector<72x64xf32>
    %278 = arith.maximumf %276, %277 : vector<72x64xf32>
    %c0_77 = arith.constant 0 : index
    %c0_78 = arith.constant 0 : index
    %279 = vector.load %arg6[%c0_77, %c0_78] : memref<64x64xf32, #tpu.memory_space<vmem>>, vector<64x64xf32>
    %cst_79 = arith.constant dense<0.000000e+00> : vector<72x64xf32>
    %280 = tpu.matmul %278, %279, %cst_79 {dimension_numbers = #tpu.dot_dimension_numbers<[1], [0], [0], [1], [0, 0, 1, 1], [], []>} : vector<72x64xf32>, vector<64x64xf32>, vector<72x64xf32> -> vector<72x64xf32>
    %c0_80 = arith.constant 0 : index
    %c1024 = arith.constant 1024 : index
    %281 = vector.load %arg12[%c0_80, %c1024] : memref<1x1792xf32, #tpu.memory_space<vmem>>, vector<1x64xf32>
    %282 = vector.broadcast %281 : vector<1x64xf32> to vector<72x64xf32>
    %283 = arith.addf %280, %282 : vector<72x64xf32>
    %cst_81 = arith.constant 0.000000e+00 : f32
    %284 = vector.broadcast %cst_81 : f32 to vector<72x64xf32>
    %285 = arith.maximumf %283, %284 : vector<72x64xf32>
    %c0_82 = arith.constant 0 : index
    %c0_83 = arith.constant 0 : index
    %286 = vector.load %arg7[%c0_82, %c0_83] : memref<64x8xf32, #tpu.memory_space<vmem>>, vector<64x8xf32>
    %cst_84 = arith.constant dense<0.000000e+00> : vector<72x8xf32>
    %287 = tpu.matmul %285, %286, %cst_84 {dimension_numbers = #tpu.dot_dimension_numbers<[1], [0], [0], [1], [0, 0, 1, 1], [], []>} : vector<72x64xf32>, vector<64x8xf32>, vector<72x8xf32> -> vector<72x8xf32>
    %c0_85 = arith.constant 0 : index
    %c1152 = arith.constant 1152 : index
    %288 = vector.load %arg12[%c0_85, %c1152] : memref<1x1792xf32, #tpu.memory_space<vmem>>, vector<1x8xf32>
    %289 = vector.broadcast %288 : vector<1x8xf32> to vector<72x8xf32>
    %290 = arith.addf %287, %289 : vector<72x8xf32>
    %291 = math.tanh %290 : vector<72x8xf32>
    %c0_86 = arith.constant 0 : index
    %c0_87 = arith.constant 0 : index
    %292 = vector.load %arg1[%c0_86, %c0_87] : memref<72x4xf32, #tpu.memory_space<vmem>>, vector<72x4xf32>
    %293 = tpu.concatenate %291, %292 in 1 : vector<72x8xf32>, vector<72x4xf32> -> vector<72x12xf32>
    %c0_88 = arith.constant 0 : index
    %c0_89 = arith.constant 0 : index
    %294 = vector.load %arg8[%c0_88, %c0_89] : memref<12x24xf32, #tpu.memory_space<vmem>>, vector<12x24xf32>
    %cst_90 = arith.constant dense<0.000000e+00> : vector<72x24xf32>
    %295 = tpu.matmul %293, %294, %cst_90 {dimension_numbers = #tpu.dot_dimension_numbers<[1], [0], [0], [1], [0, 0, 1, 1], [], []>} : vector<72x12xf32>, vector<12x24xf32>, vector<72x24xf32> -> vector<72x24xf32>
    %c0_91 = arith.constant 0 : index
    %c1280 = arith.constant 1280 : index
    %296 = vector.load %arg12[%c0_91, %c1280] : memref<1x1792xf32, #tpu.memory_space<vmem>>, vector<1x24xf32>
    %297 = vector.broadcast %296 : vector<1x24xf32> to vector<72x24xf32>
    %298 = arith.addf %295, %297 : vector<72x24xf32>
    %cst_92 = arith.constant 0.000000e+00 : f32
    %299 = vector.broadcast %cst_92 : f32 to vector<72x24xf32>
    %300 = arith.maximumf %298, %299 : vector<72x24xf32>
    %c0_93 = arith.constant 0 : index
    %c0_94 = arith.constant 0 : index
    %301 = vector.load %arg9[%c0_93, %c0_94] : memref<24x192xf32, #tpu.memory_space<vmem>>, vector<24x192xf32>
    %cst_95 = arith.constant dense<0.000000e+00> : vector<72x192xf32>
    %302 = tpu.matmul %300, %301, %cst_95 {dimension_numbers = #tpu.dot_dimension_numbers<[1], [0], [0], [1], [0, 0, 1, 1], [], []>} : vector<72x24xf32>, vector<24x192xf32>, vector<72x192xf32> -> vector<72x192xf32>
    %303 = arith.addf %275, %302 : vector<72x192xf32>
    %cst_96 = arith.constant 0.000000e+00 : f32
    %304 = vector.broadcast %cst_96 : f32 to vector<72x192xf32>
    %305 = arith.maximumf %303, %304 : vector<72x192xf32>
    %c0_97 = arith.constant 0 : index
    %c0_98 = arith.constant 0 : index
    %306 = vector.load %arg10[%c0_97, %c0_98] : memref<192x192xf32, #tpu.memory_space<vmem>>, vector<192x192xf32>
    %cst_99 = arith.constant dense<0.000000e+00> : vector<72x192xf32>
    %307 = tpu.matmul %305, %306, %cst_99 {dimension_numbers = #tpu.dot_dimension_numbers<[1], [0], [0], [1], [0, 0, 1, 1], [], []>} : vector<72x192xf32>, vector<192x192xf32>, vector<72x192xf32> -> vector<72x192xf32>
    %c0_100 = arith.constant 0 : index
    %c1408 = arith.constant 1408 : index
    %308 = vector.load %arg12[%c0_100, %c1408] : memref<1x1792xf32, #tpu.memory_space<vmem>>, vector<1x192xf32>
    %309 = vector.broadcast %308 : vector<1x192xf32> to vector<72x192xf32>
    %310 = arith.addf %307, %309 : vector<72x192xf32>
    %cst_101 = arith.constant 0.000000e+00 : f32
    %311 = vector.broadcast %cst_101 : f32 to vector<72x192xf32>
    %312 = arith.maximumf %310, %311 : vector<72x192xf32>
    %c0_102 = arith.constant 0 : index
    %c0_103 = arith.constant 0 : index
    %313 = vector.load %arg11[%c0_102, %c0_103] : memref<192x8xf32, #tpu.memory_space<vmem>>, vector<192x8xf32>
    %cst_104 = arith.constant dense<0.000000e+00> : vector<72x8xf32>
    %314 = tpu.matmul %312, %313, %cst_104 {dimension_numbers = #tpu.dot_dimension_numbers<[1], [0], [0], [1], [0, 0, 1, 1], [], []>} : vector<72x192xf32>, vector<192x8xf32>, vector<72x8xf32> -> vector<72x8xf32>
    %c0_105 = arith.constant 0 : index
    %c1664 = arith.constant 1664 : index
    %315 = vector.load %arg12[%c0_105, %c1664] : memref<1x1792xf32, #tpu.memory_space<vmem>>, vector<1x8xf32>
    %316 = vector.broadcast %315 : vector<1x8xf32> to vector<72x8xf32>
    %317 = arith.addf %314, %316 : vector<72x8xf32>
    %c0_106 = arith.constant 0 : index
    %c0_107 = arith.constant 0 : index
    %318 = vector.load %arg13[%c0_106, %c0_107] : memref<72x8xf32, #tpu.memory_space<vmem>>, vector<72x8xf32>
    tpu.vector_store %arg13[%c0_106, %c0_107], %317 {strides = array<i32>} : memref<72x8xf32, #tpu.memory_space<vmem>>, vector<72x8xf32>,
    return
  }
}

</mosaic_0001>

<llo_original>
// kernel: model_forward.1
$region0: #{model_forward.1}
  #allocation0 [shape = 'u32[]', space=smem, size = 0x4, offset = 0x4, fixed_abs, tag = 'smem constant byte address 0x4 - core index']
  #allocation1 [shape = 'u32[72,128]{1,0:T(1,128)}', space=vmem, size = 0x9000, scoped, tag = 'internal scratch']
  #allocation2 [shape = 'f32[72,384]{1,0:T(8,128)}', space=vmem, size = 0x1b000, scoped, tag = 'scratch operand']
  #allocation3 [shape = 'f32[72,256]{1,0:T(8,128)}', space=vmem, size = 0x12000, scoped, tag = 'scratch operand']
  %s0 = inlined_call_operand.vmem [shape: f32[72,22], index: 0, kind: input, shape index: {}]
  %s1 = inlined_call_operand.vmem [shape: f32[72,4], index: 1, kind: input, shape index: {}]
  %s2 = inlined_call_operand.vmem [shape: f32[22,128], index: 2, kind: input, shape index: {}]
  %s3 = inlined_call_operand.vmem [shape: f32[128,384], index: 3, kind: input, shape index: {}]
  %s4 = inlined_call_operand.vmem [shape: f32[128,384], index: 4, kind: input, shape index: {}]
  %s5 = inlined_call_operand.vmem [shape: f32[256,256], index: 5, kind: input, shape index: {}]
  %s6 = inlined_call_operand.vmem [shape: f32[64,64], index: 6, kind: input, shape index: {}]
  %s7 = inlined_call_operand.vmem [shape: f32[64,8], index: 7, kind: input, shape index: {}]
  %s8 = inlined_call_operand.vmem [shape: f32[12,24], index: 8, kind: input, shape index: {}]
  %s9 = inlined_call_operand.vmem [shape: f32[24,192], index: 9, kind: input, shape index: {}]
  %s10 = inlined_call_operand.vmem [shape: f32[192,192], index: 10, kind: input, shape index: {}]
  %s11 = inlined_call_operand.vmem [shape: f32[192,8], index: 11, kind: input, shape index: {}]
  %s12 = inlined_call_operand.vmem [shape: f32[1,1792], index: 12, kind: input, shape index: {}]
  %s13 = inlined_call_operand.vmem [shape: f32[72,8], index: 13, kind: output, shape index: {}]
  %s14 = sld [smem:[#allocation0]]
  $region62: #{model_forward.1} parent=0
    _
  %s16 = ssub.s32 1, %s14
  %s17 = scalar_select 0, %s16, %s14
  // Predicated region
  $region2: #{model_forward.1} parent=0 // pred_check
    _
  $region3: #{model_forward.1} parent=0 // pred_check_branch
    %19 = sbr.rel (0) target = $region5
  $region4: #{model_forward.1} parent=0 // pred_region
    _
  $region5: #{model_forward.1} parent=0 // pred_fallthru
    _
  // Predicated region
  $region6: #{model_forward.1} parent=0 // pred_check
    _
  $region7: #{model_forward.1} parent=0 // pred_check_branch
    %21 = sbr.rel (0) target = $region9
  $region8: #{model_forward.1} parent=0 // pred_region
    _
  $region9: #{model_forward.1} parent=0 // pred_fallthru
    _
  // Predicated region
  $region10: #{model_forward.1} parent=0 // pred_check
    _
  $region11: #{model_forward.1} parent=0 // pred_check_branch
    %23 = sbr.rel (0) target = $region13
  $region12: #{model_forward.1} parent=0 // pred_region
    _
  $region13: #{model_forward.1} parent=0 // pred_fallthru
    _
  // Predicated region
  $region14: #{model_forward.1} parent=0 // pred_check
    _
  $region15: #{model_forward.1} parent=0 // pred_check_branch
    %25 = sbr.rel (0) target = $region17
  $region16: #{model_forward.1} parent=0 // pred_region
    _
  $region17: #{model_forward.1} parent=0 // pred_fallthru
    _
  // Predicated region
  $region18: #{model_forward.1} parent=0 // pred_check
    _
  $region19: #{model_forward.1} parent=0 // pred_check_branch
    %27 = sbr.rel (0) target = $region21
  $region20: #{model_forward.1} parent=0 // pred_region
    _
  $region21: #{model_forward.1} parent=0 // pred_fallthru
    _
  // Predicated region
  $region22: #{model_forward.1} parent=0 // pred_check
    _
  $region23: #{model_forward.1} parent=0 // pred_check_branch
    %29 = sbr.rel (0) target = $region25
  $region24: #{model_forward.1} parent=0 // pred_region
    _
  $region25: #{model_forward.1} parent=0 // pred_fallthru
    _
  // Predicated region
  $region26: #{model_forward.1} parent=0 // pred_check
    _
  $region27: #{model_forward.1} parent=0 // pred_check_branch
    %31 = sbr.rel (0) target = $region29
  $region28: #{model_forward.1} parent=0 // pred_region
    _
  $region29: #{model_forward.1} parent=0 // pred_fallthru
    _
  // Predicated region
  $region30: #{model_forward.1} parent=0 // pred_check
    _
  $region31: #{model_forward.1} parent=0 // pred_check_branch
    %33 = sbr.rel (0) target = $region33
  $region32: #{model_forward.1} parent=0 // pred_region
    _
  $region33: #{model_forward.1} parent=0 // pred_fallthru
    _
  // Predicated region
  $region34: #{model_forward.1} parent=0 // pred_check
    _
  $region35: #{model_forward.1} parent=0 // pred_check_branch
    %35 = sbr.rel (0) target = $region37
  $region36: #{model_forward.1} parent=0 // pred_region
    _
  $region37: #{model_forward.1} parent=0 // pred_fallthru
    _
  // Predicated region
  $region38: #{model_forward.1} parent=0 // pred_check
    _
  $region39: #{model_forward.1} parent=0 // pred_check_branch
    %37 = sbr.rel (0) target = $region41
  $region40: #{model_forward.1} parent=0 // pred_region
    _
  $region41: #{model_forward.1} parent=0 // pred_fallthru
    _
  // Predicated region
  $region42: #{model_forward.1} parent=0 // pred_check
    _
  $region43: #{model_forward.1} parent=0 // pred_check_branch
    %39 = sbr.rel (0) target = $region45
  $region44: #{model_forward.1} parent=0 // pred_region
    _
  $region45: #{model_forward.1} parent=0 // pred_fallthru
    _
  // Predicated region
  $region46: #{model_forward.1} parent=0 // pred_check
    _
  $region47: #{model_forward.1} parent=0 // pred_check_branch
    %41 = sbr.rel (0) target = $region49
  $region48: #{model_forward.1} parent=0 // pred_region
    _
  $region49: #{model_forward.1} parent=0 // pred_fallthru
    _
  // Predicated region
  $region50: #{model_forward.1} parent=0 // pred_check
    _
  $region51: #{model_forward.1} parent=0 // pred_check_branch
    %43 = sbr.rel (0) target = $region53
  $region52: #{model_forward.1} parent=0 // pred_region
    _
  $region53: #{model_forward.1} parent=0 // pred_fallthru
    _
  %v44 = vld [vmem:[%s0] sm:$0xff]
  %v45 = vld [vmem:[%s0 + $0x8] sm:$0xff]
  %v46 = vld [vmem:[%s0 + $0x10] sm:$0xff]
  %v47 = vld [vmem:[%s0 + $0x18] sm:$0xff]
  %v48 = vld [vmem:[%s0 + $0x20] sm:$0xff]
  %v49 = vld [vmem:[%s0 + $0x28] sm:$0xff]
  %v50 = vld [vmem:[%s0 + $0x30] sm:$0xff]
  %v51 = vld [vmem:[%s0 + $0x38] sm:$0xff]
  %v52 = vld [vmem:[%s0 + $0x40] sm:$0xff]
  %v53 = vld [vmem:[%s2] sm:$0xff]
  %v54 = vld [vmem:[%s2 + $0x8] sm:$0xff]
  %v55 = vld [vmem:[%s2 + $0x10] sm:$0x3f]
  %vm56 = vcmask 179200
  %v58 = vsel %vm56, %v44, 0
  %v61 = vsel %vm56, %v45, 0
  %v64 = vsel %vm56, %v46, 0
  %v67 = vsel %vm56, %v47, 0
  %v70 = vsel %vm56, %v48, 0
  %v73 = vsel %vm56, %v49, 0
  %v76 = vsel %vm56, %v50, 0
  %v79 = vsel %vm56, %v51, 0
  %v82 = vsel %vm56, %v52, 0
  %vm84 = vcmask 1045504
  %v86 = vsel %vm84, %v55, 0
  %88 = vmatpush.msra.mxu0 0.0
  %89 = vmatpush.msra.mxu0 0.0
  %90 = vmatpush.msra.mxu0 0.0
  %91 = vmatpush.msra.mxu0 0.0
  %92 = vmatpush.msra.mxu0 0.0
  %93 = vmatpush.msra.mxu0 0.0
  %94 = vmatpush.msra.mxu0 0.0
  %95 = vmatpush.msra.mxu0 0.0
  %96 = vmatpush.msra.mxu0 0.0
  %97 = vmatpush.msra.mxu0 0.0
  %98 = vmatpush.msra.mxu0 0.0
  %99 = vmatpush.msra.mxu0 0.0
  %100 = vmatpush.msra.mxu0 0.0
  %101 = vmatpush.msra.mxu0 %v86
  %102 = vmatpush.msra.mxu0 %v54
  %103 = vmatpush.msra.mxu0 %v53
  %104 = vmatmul.f32.gmra.mxu0 %v58
  %v105 = vpop.f32.mrf.mxu0
  %v106 = vadd.f32 0.0, %v105
  %107 = vmatmul.f32.gmra.mxu0 %v61
  %v108 = vpop.f32.mrf.mxu0
  %v109 = vadd.f32 0.0, %v108
  %110 = vmatmul.f32.gmra.mxu0 %v64
  %v111 = vpop.f32.mrf.mxu0
  %v112 = vadd.f32 0.0, %v111
  %113 = vmatmul.f32.gmra.mxu0 %v67
  %v114 = vpop.f32.mrf.mxu0
  %v115 = vadd.f32 0.0, %v114
  %116 = vmatmul.f32.gmra.mxu0 %v70
  %v117 = vpop.f32.mrf.mxu0
  %v118 = vadd.f32 0.0, %v117
  %119 = vmatmul.f32.gmra.mxu0 %v73
  %v120 = vpop.f32.mrf.mxu0
  %v121 = vadd.f32 0.0, %v120
  %122 = vmatmul.f32.gmra.mxu0 %v76
  %v123 = vpop.f32.mrf.mxu0
  %v124 = vadd.f32 0.0, %v123
  %125 = vmatmul.f32.gmra.mxu0 %v79
  %v126 = vpop.f32.mrf.mxu0
  %v127 = vadd.f32 0.0, %v126
  %128 = vmatmul.f32.gmra.mxu0 %v82
  %v129 = vpop.f32.mrf.mxu0
  %v130 = vadd.f32 0.0, %v129
  %131 = vdwg.mxu0
  %v132 = vmax.f32 %v106, 0.0
  %v133 = vmax.f32 %v109, 0.0
  %v134 = vmax.f32 %v112, 0.0
  %v135 = vmax.f32 %v115, 0.0
  %v136 = vmax.f32 %v118, 0.0
  %v137 = vmax.f32 %v121, 0.0
  %v138 = vmax.f32 %v124, 0.0
  %v139 = vmax.f32 %v127, 0.0
  %v140 = vmax.f32 %v130, 0.0
  %141 = vst [vmem:[#allocation3 + $0x8] sm:$0xff] %v132
  %142 = vst [vmem:[#allocation3 + $0x18] sm:$0xff] %v133
  %143 = vst [vmem:[#allocation3 + $0x28] sm:$0xff] %v134
  %144 = vst [vmem:[#allocation3 + $0x38] sm:$0xff] %v135
  %145 = vst [vmem:[#allocation3 + $0x48] sm:$0xff] %v136
  %146 = vst [vmem:[#allocation3 + $0x58] sm:$0xff] %v137
  %147 = vst [vmem:[#allocation3 + $0x68] sm:$0xff] %v138
  %148 = vst [vmem:[#allocation3 + $0x78] sm:$0xff] %v139
  %149 = vst [vmem:[#allocation3 + $0x88] sm:$0xff] %v140
  %v150 = vld [vmem:[%s3] sm:$0xff]
  %v151 = vld [vmem:[%s3 + $0x8] sm:$0xff]
  %v152 = vld [vmem:[%s3 + $0x10] sm:$0xff]
  %v153 = vld [vmem:[%s3 + $0x18] sm:$0xff]
  %v154 = vld [vmem:[%s3 + $0x20] sm:$0xff]
  %v155 = vld [vmem:[%s3 + $0x28] sm:$0xff]
  %v156 = vld [vmem:[%s3 + $0x30] sm:$0xff]
  %v157 = vld [vmem:[%s3 + $0x38] sm:$0xff]
  %v158 = vld [vmem:[%s3 + $0x40] sm:$0xff]
  %v159 = vld [vmem:[%s3 + $0x48] sm:$0xff]
  %v160 = vld [vmem:[%s3 + $0x50] sm:$0xff]
  %v161 = vld [vmem:[%s3 + $0x58] sm:$0xff]
  %v162 = vld [vmem:[%s3 + $0x60] sm:$0xff]
  %v163 = vld [vmem:[%s3 + $0x68] sm:$0xff]
  %v164 = vld [vmem:[%s3 + $0x70] sm:$0xff]
  %v165 = vld [vmem:[%s3 + $0x78] sm:$0xff]
  %v166 = vld [vmem:[%s3 + $0x80] sm:$0xff]
  %v167 = vld [vmem:[%s3 + $0x88] sm:$0xff]
  %v168 = vld [vmem:[%s3 + $0x90] sm:$0xff]
  %v169 = vld [vmem:[%s3 + $0x98] sm:$0xff]
  %v170 = vld [vmem:[%s3 + $0xa0] sm:$0xff]
  %v171 = vld [vmem:[%s3 + $0xa8] sm:$0xff]
  %v172 = vld [vmem:[%s3 + $0xb0] sm:$0xff]
  %v173 = vld [vmem:[%s3 + $0xb8] sm:$0xff]
  %v174 = vld [vmem:[%s3 + $0xc0] sm:$0xff]
  %v175 = vld [vmem:[%s3 + $0xc8] sm:$0xff]
  %v176 = vld [vmem:[%s3 + $0xd0] sm:$0xff]
  %v177 = vld [vmem:[%s3 + $0xd8] sm:$0xff]
  %v178 = vld [vmem:[%s3 + $0xe0] sm:$0xff]
  %v179 = vld [vmem:[%s3 + $0xe8] sm:$0xff]
  %v180 = vld [vmem:[%s3 + $0xf0] sm:$0xff]
  %v181 = vld [vmem:[%s3 + $0xf8] sm:$0xff]
  %v182 = vld [vmem:[%s3 + $0x100] sm:$0xff]
  %v183 = vld [vmem:[%s3 + $0x108] sm:$0xff]
  %v184 = vld [vmem:[%s3 + $0x110] sm:$0xff]
  %v185 = vld [vmem:[%s3 + $0x118] sm:$0xff]
  %v186 = vld [vmem:[%s3 + $0x120] sm:$0xff]
  %v187 = vld [vmem:[%s3 + $0x128] sm:$0xff]
  %v188 = vld [vmem:[%s3 + $0x130] sm:$0xff]
  %v189 = vld [vmem:[%s3 + $0x138] sm:$0xff]
  %v190 = vld [vmem:[%s3 + $0x140] sm:$0xff]
  %v191 = vld [vmem:[%s3 + $0x148] sm:$0xff]
  %v192 = vld [vmem:[%s3 + $0x150] sm:$0xff]
  %v193 = vld [vmem:[%s3 + $0x158] sm:$0xff]
  %v194 = vld [vmem:[%s3 + $0x160] sm:$0xff]
  %v195 = vld [vmem:[%s3 + $0x168] sm:$0xff]
  %v196 = vld [vmem:[%s3 + $0x170] sm:$0xff]
  %v197 = vld [vmem:[%s3 + $0x178] sm:$0xff]
  %v198 = vld [vmem:[%s12] sm:$0x7]
  %v200 = vperm.slane %v198, 0
  %v201 = vperm.slane %v198, 1
  %v202 = vperm.slane %v198, 2
  %206 = vmatpush.msra.mxu0 %v195
  %207 = vmatpush.msra.mxu0 %v192
  %208 = vmatpush.msra.mxu0 %v189
  %209 = vmatpush.msra.mxu0 %v186
  %210 = vmatpush.msra.mxu0 %v183
  %211 = vmatpush.msra.mxu0 %v180
  %212 = vmatpush.msra.mxu0 %v177
  %213 = vmatpush.msra.mxu0 %v174
  %214 = vmatpush.msra.mxu0 %v171
  %215 = vmatpush.msra.mxu0 %v168
  %216 = vmatpush.msra.mxu0 %v165
  %217 = vmatpush.msra.mxu0 %v162
  %218 = vmatpush.msra.mxu0 %v159
  %219 = vmatpush.msra.mxu0 %v156
  %220 = vmatpush.msra.mxu0 %v153
  %221 = vmatpush.msra.mxu0 %v150
  %222 = vmatmul.f32.gmra.mxu0 %v132
  %v223 = vpop.f32.mrf.mxu0
  %v224 = vadd.f32 %v200, %v223
  %225 = vmatmul.f32.gmra.mxu0 %v133
  %v226 = vpop.f32.mrf.mxu0
  %v227 = vadd.f32 %v200, %v226
  %228 = vmatmul.f32.gmra.mxu0 %v134
  %v229 = vpop.f32.mrf.mxu0
  %v230 = vadd.f32 %v200, %v229
  %231 = vmatmul.f32.gmra.mxu0 %v135
  %v232 = vpop.f32.mrf.mxu0
  %v233 = vadd.f32 %v200, %v232
  %234 = vmatmul.f32.gmra.mxu0 %v136
  %v235 = vpop.f32.mrf.mxu0
  %v236 = vadd.f32 %v200, %v235
  %237 = vmatmul.f32.gmra.mxu0 %v137
  %v238 = vpop.f32.mrf.mxu0
  %v239 = vadd.f32 %v200, %v238
  %240 = vmatmul.f32.gmra.mxu0 %v138
  %v241 = vpop.f32.mrf.mxu0
  %v242 = vadd.f32 %v200, %v241
  %243 = vmatmul.f32.gmra.mxu0 %v139
  %v244 = vpop.f32.mrf.mxu0
  %v245 = vadd.f32 %v200, %v244
  %246 = vmatmul.f32.gmra.mxu0 %v140
  %v247 = vpop.f32.mrf.mxu0
  %v248 = vadd.f32 %v200, %v247
  %249 = vdwg.mxu0
  %250 = vmatpush.msra.mxu0 %v196
  %251 = vmatpush.msra.mxu0 %v193
  %252 = vmatpush.msra.mxu0 %v190
  %253 = vmatpush.msra.mxu0 %v187
  %254 = vmatpush.msra.mxu0 %v184
  %255 = vmatpush.msra.mxu0 %v181
  %256 = vmatpush.msra.mxu0 %v178
  %257 = vmatpush.msra.mxu0 %v175
  %258 = vmatpush.msra.mxu0 %v172
  %259 = vmatpush.msra.mxu0 %v169
  %260 = vmatpush.msra.mxu0 %v166
  %261 = vmatpush.msra.mxu0 %v163
  %262 = vmatpush.msra.mxu0 %v160
  %263 = vmatpush.msra.mxu0 %v157
  %264 = vmatpush.msra.mxu0 %v154
  %265 = vmatpush.msra.mxu0 %v151
  %266 = vmatmul.f32.gmra.mxu0 %v132
  %v267 = vpop.f32.mrf.mxu0
  %v268 = vadd.f32 %v201, %v267
  %269 = vmatmul.f32.gmra.mxu0 %v133
  %v270 = vpop.f32.mrf.mxu0
  %v271 = vadd.f32 %v201, %v270
  %272 = vmatmul.f32.gmra.mxu0 %v134
  %v273 = vpop.f32.mrf.mxu0
  %v274 = vadd.f32 %v201, %v273
  %275 = vmatmul.f32.gmra.mxu0 %v135
  %v276 = vpop.f32.mrf.mxu0
  %v277 = vadd.f32 %v201, %v276
  %278 = vmatmul.f32.gmra.mxu0 %v136
  %v279 = vpop.f32.mrf.mxu0
  %v280 = vadd.f32 %v201, %v279
  %281 = vmatmul.f32.gmra.mxu0 %v137
  %v282 = vpop.f32.mrf.mxu0
  %v283 = vadd.f32 %v201, %v282
  %284 = vmatmul.f32.gmra.mxu0 %v138
  %v285 = vpop.f32.mrf.mxu0
  %v286 = vadd.f32 %v201, %v285
  %287 = vmatmul.f32.gmra.mxu0 %v139
  %v288 = vpop.f32.mrf.mxu0
  %v289 = vadd.f32 %v201, %v288
  %290 = vmatmul.f32.gmra.mxu0 %v140
  %v291 = vpop.f32.mrf.mxu0
  %v292 = vadd.f32 %v201, %v291
  %293 = vdwg.mxu0
  %294 = vmatpush.msra.mxu0 %v197
  %295 = vmatpush.msra.mxu0 %v194
  %296 = vmatpush.msra.mxu0 %v191
  %297 = vmatpush.msra.mxu0 %v188
  %298 = vmatpush.msra.mxu0 %v185
  %299 = vmatpush.msra.mxu0 %v182
  %300 = vmatpush.msra.mxu0 %v179
  %301 = vmatpush.msra.mxu0 %v176
  %302 = vmatpush.msra.mxu0 %v173
  %303 = vmatpush.msra.mxu0 %v170
  %304 = vmatpush.msra.mxu0 %v167
  %305 = vmatpush.msra.mxu0 %v164
  %306 = vmatpush.msra.mxu0 %v161
  %307 = vmatpush.msra.mxu0 %v158
  %308 = vmatpush.msra.mxu0 %v155
  %309 = vmatpush.msra.mxu0 %v152
  %310 = vmatmul.f32.gmra.mxu0 %v132
  %v311 = vpop.f32.mrf.mxu0
  %v312 = vadd.f32 %v202, %v311
  %313 = vmatmul.f32.gmra.mxu0 %v133
  %v314 = vpop.f32.mrf.mxu0
  %v315 = vadd.f32 %v202, %v314
  %316 = vmatmul.f32.gmra.mxu0 %v134
  %v317 = vpop.f32.mrf.mxu0
  %v318 = vadd.f32 %v202, %v317
  %319 = vmatmul.f32.gmra.mxu0 %v135
  %v320 = vpop.f32.mrf.mxu0
  %v321 = vadd.f32 %v202, %v320
  %322 = vmatmul.f32.gmra.mxu0 %v136
  %v323 = vpop.f32.mrf.mxu0
  %v324 = vadd.f32 %v202, %v323
  %325 = vmatmul.f32.gmra.mxu0 %v137
  %v326 = vpop.f32.mrf.mxu0
  %v327 = vadd.f32 %v202, %v326
  %328 = vmatmul.f32.gmra.mxu0 %v138
  %v329 = vpop.f32.mrf.mxu0
  %v330 = vadd.f32 %v202, %v329
  %331 = vmatmul.f32.gmra.mxu0 %v139
  %v332 = vpop.f32.mrf.mxu0
  %v333 = vadd.f32 %v202, %v332
  %334 = vmatmul.f32.gmra.mxu0 %v140
  %v335 = vpop.f32.mrf.mxu0
  %v336 = vadd.f32 %v202, %v335
  %337 = vdwg.mxu0
  %338 = vst [vmem:[#allocation2] sm:$0xff] %v224
  %339 = vst [vmem:[#allocation2 + $0x8] sm:$0xff] %v268
  %340 = vst [vmem:[#allocation2 + $0x10] sm:$0xff] %v312
  %341 = vst [vmem:[#allocation2 + $0x18] sm:$0xff] %v227
  %342 = vst [vmem:[#allocation2 + $0x20] sm:$0xff] %v271
  %343 = vst [vmem:[#allocation2 + $0x28] sm:$0xff] %v315
  %344 = vst [vmem:[#allocation2 + $0x30] sm:$0xff] %v230
  %345 = vst [vmem:[#allocation2 + $0x38] sm:$0xff] %v274
  %346 = vst [vmem:[#allocation2 + $0x40] sm:$0xff] %v318
  %347 = vst [vmem:[#allocation2 + $0x48] sm:$0xff] %v233
  %348 = vst [vmem:[#allocation2 + $0x50] sm:$0xff] %v277
  %349 = vst [vmem:[#allocation2 + $0x58] sm:$0xff] %v321
  %350 = vst [vmem:[#allocation2 + $0x60] sm:$0xff] %v236
  %351 = vst [vmem:[#allocation2 + $0x68] sm:$0xff] %v280
  %352 = vst [vmem:[#allocation2 + $0x70] sm:$0xff] %v324
  %353 = vst [vmem:[#allocation2 + $0x78] sm:$0xff] %v239
  %354 = vst [vmem:[#allocation2 + $0x80] sm:$0xff] %v283
  %355 = vst [vmem:[#allocation2 + $0x88] sm:$0xff] %v327
  %356 = vst [vmem:[#allocation2 + $0x90] sm:$0xff] %v242
  %357 = vst [vmem:[#allocation2 + $0x98] sm:$0xff] %v286
  %358 = vst [vmem:[#allocation2 + $0xa0] sm:$0xff] %v330
  %359 = vst [vmem:[#allocation2 + $0xa8] sm:$0xff] %v245
  %360 = vst [vmem:[#allocation2 + $0xb0] sm:$0xff] %v289
  %361 = vst [vmem:[#allocation2 + $0xb8] sm:$0xff] %v333
  %362 = vst [vmem:[#allocation2 + $0xc0] sm:$0xff] %v248
  %363 = vst [vmem:[#allocation2 + $0xc8] sm:$0xff] %v292
  %364 = vst [vmem:[#allocation2 + $0xd0] sm:$0xff] %v336
  %v365 = vld [vmem:[%s4] sm:$0xff]
  %v366 = vld [vmem:[%s4 + $0x8] sm:$0xff]
  %v367 = vld [vmem:[%s4 + $0x10] sm:$0xff]
  %v368 = vld [vmem:[%s4 + $0x18] sm:$0xff]
  %v369 = vld [vmem:[%s4 + $0x20] sm:$0xff]
  %v370 = vld [vmem:[%s4 + $0x28] sm:$0xff]
  %v371 = vld [vmem:[%s4 + $0x30] sm:$0xff]
  %v372 = vld [vmem:[%s4 + $0x38] sm:$0xff]
  %v373 = vld [vmem:[%s4 + $0x40] sm:$0xff]
  %v374 = vld [vmem:[%s4 + $0x48] sm:$0xff]
  %v375 = vld [vmem:[%s4 + $0x50] sm:$0xff]
  %v376 = vld [vmem:[%s4 + $0x58] sm:$0xff]
  %v377 = vld [vmem:[%s4 + $0x60] sm:$0xff]
  %v378 = vld [vmem:[%s4 + $0x68] sm:$0xff]
  %v379 = vld [vmem:[%s4 + $0x70] sm:$0xff]
  %v380 = vld [vmem:[%s4 + $0x78] sm:$0xff]
  %v381 = vld [vmem:[%s4 + $0x80] sm:$0xff]
  %v382 = vld [vmem:[%s4 + $0x88] sm:$0xff]
  %v383 = vld [vmem:[%s4 + $0x90] sm:$0xff]
  %v384 = vld [vmem:[%s4 + $0x98] sm:$0xff]
  %v385 = vld [vmem:[%s4 + $0xa0] sm:$0xff]
  %v386 = vld [vmem:[%s4 + $0xa8] sm:$0xff]
  %v387 = vld [vmem:[%s4 + $0xb0] sm:$0xff]
  %v388 = vld [vmem:[%s4 + $0xb8] sm:$0xff]
  %v389 = vld [vmem:[%s4 + $0xc0] sm:$0xff]
  %v390 = vld [vmem:[%s4 + $0xc8] sm:$0xff]
  %v391 = vld [vmem:[%s4 + $0xd0] sm:$0xff]
  %v392 = vld [vmem:[%s4 + $0xd8] sm:$0xff]
  %v393 = vld [vmem:[%s4 + $0xe0] sm:$0xff]
  %v394 = vld [vmem:[%s4 + $0xe8] sm:$0xff]
  %v395 = vld [vmem:[%s4 + $0xf0] sm:$0xff]
  %v396 = vld [vmem:[%s4 + $0xf8] sm:$0xff]
  %v397 = vld [vmem:[%s4 + $0x100] sm:$0xff]
  %v398 = vld [vmem:[%s4 + $0x108] sm:$0xff]
  %v399 = vld [vmem:[%s4 + $0x110] sm:$0xff]
  %v400 = vld [vmem:[%s4 + $0x118] sm:$0xff]
  %v401 = vld [vmem:[%s4 + $0x120] sm:$0xff]
  %v402 = vld [vmem:[%s4 + $0x128] sm:$0xff]
  %v403 = vld [vmem:[%s4 + $0x130] sm:$0xff]
  %v404 = vld [vmem:[%s4 + $0x138] sm:$0xff]
  %v405 = vld [vmem:[%s4 + $0x140] sm:$0xff]
  %v406 = vld [vmem:[%s4 + $0x148] sm:$0xff]
  %v407 = vld [vmem:[%s4 + $0x150] sm:$0xff]
  %v408 = vld [vmem:[%s4 + $0x158] sm:$0xff]
  %v409 = vld [vmem:[%s4 + $0x160] sm:$0xff]
  %v410 = vld [vmem:[%s4 + $0x168] sm:$0xff]
  %v411 = vld [vmem:[%s4 + $0x170] sm:$0xff]
  %v412 = vld [vmem:[%s4 + $0x178] sm:$0xff]
  %v413 = vld [vmem:[%s12 + $0x3] sm:$0x7]
  %v415 = vperm.slane %v413, 0
  %v416 = vperm.slane %v413, 1
  %v417 = vperm.slane %v413, 2
  %s421 = smul.u32 0, 3
  %s422 = smul.addr %s421, 8
  %s423 = scalar_lea.vmem [#allocation2], %s422
  %v424 = vld [vmem:[%s423] sm:$0xff]
  %v425 = vld [vmem:[%s423 + $0x8] sm:$0xff]
  %v426 = vld [vmem:[%s423 + $0x10] sm:$0xff]
  %427 = vmatpush.msra.mxu0 %v410
  %428 = vmatpush.msra.mxu0 %v407
  %429 = vmatpush.msra.mxu0 %v404
  %430 = vmatpush.msra.mxu0 %v401
  %431 = vmatpush.msra.mxu0 %v398
  %432 = vmatpush.msra.mxu0 %v395
  %433 = vmatpush.msra.mxu0 %v392
  %434 = vmatpush.msra.mxu0 %v389
  %435 = vmatpush.msra.mxu0 %v386
  %436 = vmatpush.msra.mxu0 %v383
  %437 = vmatpush.msra.mxu0 %v380
  %438 = vmatpush.msra.mxu0 %v377
  %439 = vmatpush.msra.mxu0 %v374
  %440 = vmatpush.msra.mxu0 %v371
  %441 = vmatpush.msra.mxu0 %v368
  %442 = vmatpush.msra.mxu0 %v365
  %443 = vmatmul.f32.gmra.mxu0 0.0
  %v444 = vpop.f32.mrf.mxu0
  %v445 = vadd.f32 %v415, %v444
  %446 = vdwg.mxu0
  %447 = vmatpush.msra.mxu0 %v411
  %448 = vmatpush.msra.mxu0 %v408
  %449 = vmatpush.msra.mxu0 %v405
  %450 = vmatpush.msra.mxu0 %v402
  %451 = vmatpush.msra.mxu0 %v399
  %452 = vmatpush.msra.mxu0 %v396
  %453 = vmatpush.msra.mxu0 %v393
  %454 = vmatpush.msra.mxu0 %v390
  %455 = vmatpush.msra.mxu0 %v387
  %456 = vmatpush.msra.mxu0 %v384
  %457 = vmatpush.msra.mxu0 %v381
  %458 = vmatpush.msra.mxu0 %v378
  %459 = vmatpush.msra.mxu0 %v375
  %460 = vmatpush.msra.mxu0 %v372
  %461 = vmatpush.msra.mxu0 %v369
  %462 = vmatpush.msra.mxu0 %v366
  %463 = vmatmul.f32.gmra.mxu0 0.0
  %v464 = vpop.f32.mrf.mxu0
  %v465 = vadd.f32 %v416, %v464
  %466 = vdwg.mxu0
  %467 = vmatpush.msra.mxu0 %v412
  %468 = vmatpush.msra.mxu0 %v409
  %469 = vmatpush.msra.mxu0 %v406
  %470 = vmatpush.msra.mxu0 %v403
  %471 = vmatpush.msra.mxu0 %v400
  %472 = vmatpush.msra.mxu0 %v397
  %473 = vmatpush.msra.mxu0 %v394
  %474 = vmatpush.msra.mxu0 %v391
  %475 = vmatpush.msra.mxu0 %v388
  %476 = vmatpush.msra.mxu0 %v385
  %477 = vmatpush.msra.mxu0 %v382
  %478 = vmatpush.msra.mxu0 %v379
  %479 = vmatpush.msra.mxu0 %v376
  %480 = vmatpush.msra.mxu0 %v373
  %481 = vmatpush.msra.mxu0 %v370
  %482 = vmatpush.msra.mxu0 %v367
  %483 = vmatmul.f32.gmra.mxu0 0.0
  %v484 = vpop.f32.mrf.mxu0
  %v485 = vadd.f32 %v417, %v484
  %486 = vdwg.mxu0
  %v487 = vadd.f32 %v424, %v445
  %v488 = vadd.f32 %v425, %v465
  %v489 = vxor.u32 %v487, 2147483648
  %v490 = vxor.u32 %v488, 2147483648
  %v491 = vmul.f32 %v489, 1.442695
  %v492 = vpow.pop %v491
  %v493 = vmul.f32 %v490, 1.442695
  %v494 = vpow.pop %v493
  %v495 = vadd.f32 %v492, 1.0
  %v496 = vadd.f32 %v494, 1.0
  %v497 = vrcp.pop %v495
  %v498 = vmul.f32 %v495, %v497
  %v499 = vsub.f32 1.0, %v498
  %v500 = vmul.f32 %v497, %v499
  %v501 = vadd.f32 %v497, %v500
  %vm502 = vweird.f32 %v495
  %vm503 = vweird.f32 %v497
  %vm504 = vmor %vm502, %vm503
  %v505 = vsel %vm504, %v497, %v501
  %v506 = vand.u32 2147483647, %v495
  %vm507 = vcmp.eq.f32.partialorder %v506, 8.507059e+37
  %v508 = vand.u32 %v495, 2147483648
  %v509 = vor.u32 1.1754944e-38, %v508
  %v510 = vsel %vm507, %v509, %v505
  %v511 = vmul.f32 1.0, %v510
  %v512 = vrcp.pop %v496
  %v513 = vmul.f32 %v496, %v512
  %v514 = vsub.f32 1.0, %v513
  %v515 = vmul.f32 %v512, %v514
  %v516 = vadd.f32 %v512, %v515
  %vm517 = vweird.f32 %v496
  %vm518 = vweird.f32 %v512
  %vm519 = vmor %vm517, %vm518
  %v520 = vsel %vm519, %v512, %v516
  %v521 = vand.u32 2147483647, %v496
  %vm522 = vcmp.eq.f32.partialorder %v521, 8.507059e+37
  %v523 = vand.u32 %v496, 2147483648
  %v524 = vor.u32 1.1754944e-38, %v523
  %v525 = vsel %vm522, %v524, %v520
  %v526 = vmul.f32 1.0, %v525
  %v527 = vmul.f32 %v511, %v485
  %v528 = vadd.f32 %v426, %v527
  %v529 = vtanh.pop %v528
  %v530 = vsub.f32 1.0, %v526
  %v531 = vmul.f32 %v530, %v529
  %v532 = vmul.f32 %v526, 0.0
  %v533 = vadd.f32 %v531, %v532
  %s534 = smul.u32 0, 2
  %s535 = smul.addr %s534, 8
  %s536 = scalar_lea.vmem [#allocation3], %s535
  %537 = vst [vmem:[%s536] sm:$0xff] %v533
  %s538 = smul.u32 1, 3
  %s539 = smul.addr %s538, 8
  %s540 = scalar_lea.vmem [#allocation2], %s539
  %v541 = vld [vmem:[%s540] sm:$0xff]
  %v542 = vld [vmem:[%s540 + $0x8] sm:$0xff]
  %v543 = vld [vmem:[%s540 + $0x10] sm:$0xff]
  %544 = vmatpush.msra.mxu0 %v410
  %545 = vmatpush.msra.mxu0 %v407
  %546 = vmatpush.msra.mxu0 %v404
  %547 = vmatpush.msra.mxu0 %v401
  %548 = vmatpush.msra.mxu0 %v398
  %549 = vmatpush.msra.mxu0 %v395
  %550 = vmatpush.msra.mxu0 %v392
  %551 = vmatpush.msra.mxu0 %v389
  %552 = vmatpush.msra.mxu0 %v386
  %553 = vmatpush.msra.mxu0 %v383
  %554 = vmatpush.msra.mxu0 %v380
  %555 = vmatpush.msra.mxu0 %v377
  %556 = vmatpush.msra.mxu0 %v374
  %557 = vmatpush.msra.mxu0 %v371
  %558 = vmatpush.msra.mxu0 %v368
  %559 = vmatpush.msra.mxu0 %v365
  %560 = vmatmul.f32.gmra.mxu0 %v533
  %v561 = vpop.f32.mrf.mxu0
  %v562 = vadd.f32 %v415, %v561
  %563 = vdwg.mxu0
  %564 = vmatpush.msra.mxu0 %v411
  %565 = vmatpush.msra.mxu0 %v408
  %566 = vmatpush.msra.mxu0 %v405
  %567 = vmatpush.msra.mxu0 %v402
  %568 = vmatpush.msra.mxu0 %v399
  %569 = vmatpush.msra.mxu0 %v396
  %570 = vmatpush.msra.mxu0 %v393
  %571 = vmatpush.msra.mxu0 %v390
  %572 = vmatpush.msra.mxu0 %v387
  %573 = vmatpush.msra.mxu0 %v384
  %574 = vmatpush.msra.mxu0 %v381
  %575 = vmatpush.msra.mxu0 %v378
  %576 = vmatpush.msra.mxu0 %v375
  %577 = vmatpush.msra.mxu0 %v372
  %578 = vmatpush.msra.mxu0 %v369
  %579 = vmatpush.msra.mxu0 %v366
  %580 = vmatmul.f32.gmra.mxu0 %v533
  %v581 = vpop.f32.mrf.mxu0
  %v582 = vadd.f32 %v416, %v581
  %583 = vdwg.mxu0
  %584 = vmatpush.msra.mxu0 %v412
  %585 = vmatpush.msra.mxu0 %v409
  %586 = vmatpush.msra.mxu0 %v406
  %587 = vmatpush.msra.mxu0 %v403
  %588 = vmatpush.msra.mxu0 %v400
  %589 = vmatpush.msra.mxu0 %v397
  %590 = vmatpush.msra.mxu0 %v394
  %591 = vmatpush.msra.mxu0 %v391
  %592 = vmatpush.msra.mxu0 %v388
  %593 = vmatpush.msra.mxu0 %v385
  %594 = vmatpush.msra.mxu0 %v382
  %595 = vmatpush.msra.mxu0 %v379
  %596 = vmatpush.msra.mxu0 %v376
  %597 = vmatpush.msra.mxu0 %v373
  %598 = vmatpush.msra.mxu0 %v370
  %599 = vmatpush.msra.mxu0 %v367
  %600 = vmatmul.f32.gmra.mxu0 %v533
  %v601 = vpop.f32.mrf.mxu0
  %v602 = vadd.f32 %v417, %v601
  %603 = vdwg.mxu0
  %v604 = vadd.f32 %v541, %v562
  %v605 = vadd.f32 %v542, %v582
  %v606 = vxor.u32 %v604, 2147483648
  %v607 = vxor.u32 %v605, 2147483648
  %v608 = vmul.f32 %v606, 1.442695
  %v609 = vpow.pop %v608
  %v610 = vmul.f32 %v607, 1.442695
  %v611 = vpow.pop %v610
  %v612 = vadd.f32 %v609, 1.0
  %v613 = vadd.f32 %v611, 1.0
  %v614 = vrcp.pop %v612
  %v615 = vmul.f32 %v612, %v614
  %v616 = vsub.f32 1.0, %v615
  %v617 = vmul.f32 %v614, %v616
  %v618 = vadd.f32 %v614, %v617
  %vm619 = vweird.f32 %v612
  %vm620 = vweird.f32 %v614
  %vm621 = vmor %vm619, %vm620
  %v622 = vsel %vm621, %v614, %v618
  %v623 = vand.u32 2147483647, %v612
  %vm624 = vcmp.eq.f32.partialorder %v623, 8.507059e+37
  %v625 = vand.u32 %v612, 2147483648
  %v626 = vor.u32 1.1754944e-38, %v625
  %v627 = vsel %vm624, %v626, %v622
  %v628 = vmul.f32 1.0, %v627
  %v629 = vrcp.pop %v613
  %v630 = vmul.f32 %v613, %v629
  %v631 = vsub.f32 1.0, %v630
  %v632 = vmul.f32 %v629, %v631
  %v633 = vadd.f32 %v629, %v632
  %vm634 = vweird.f32 %v613
  %vm635 = vweird.f32 %v629
  %vm636 = vmor %vm634, %vm635
  %v637 = vsel %vm636, %v629, %v633
  %v638 = vand.u32 2147483647, %v613
  %vm639 = vcmp.eq.f32.partialorder %v638, 8.507059e+37
  %v640 = vand.u32 %v613, 2147483648
  %v641 = vor.u32 1.1754944e-38, %v640
  %v642 = vsel %vm639, %v641, %v637
  %v643 = vmul.f32 1.0, %v642
  %v644 = vmul.f32 %v628, %v602
  %v645 = vadd.f32 %v543, %v644
  %v646 = vtanh.pop %v645
  %v647 = vsub.f32 1.0, %v643
  %v648 = vmul.f32 %v647, %v646
  %v649 = vmul.f32 %v643, %v533
  %v650 = vadd.f32 %v648, %v649
  %s651 = smul.u32 1, 2
  %s652 = smul.addr %s651, 8
  %s653 = scalar_lea.vmem [#allocation3], %s652
  %654 = vst [vmem:[%s653] sm:$0xff] %v650
  %s655 = smul.u32 2, 3
  %s656 = smul.addr %s655, 8
  %s657 = scalar_lea.vmem [#allocation2], %s656
  %v658 = vld [vmem:[%s657] sm:$0xff]
  %v659 = vld [vmem:[%s657 + $0x8] sm:$0xff]
  %v660 = vld [vmem:[%s657 + $0x10] sm:$0xff]
  %661 = vmatpush.msra.mxu0 %v410
  %662 = vmatpush.msra.mxu0 %v407
  %663 = vmatpush.msra.mxu0 %v404
  %664 = vmatpush.msra.mxu0 %v401
  %665 = vmatpush.msra.mxu0 %v398
  %666 = vmatpush.msra.mxu0 %v395
  %667 = vmatpush.msra.mxu0 %v392
  %668 = vmatpush.msra.mxu0 %v389
  %669 = vmatpush.msra.mxu0 %v386
  %670 = vmatpush.msra.mxu0 %v383
  %671 = vmatpush.msra.mxu0 %v380
  %672 = vmatpush.msra.mxu0 %v377
  %673 = vmatpush.msra.mxu0 %v374
  %674 = vmatpush.msra.mxu0 %v371
  %675 = vmatpush.msra.mxu0 %v368
  %676 = vmatpush.msra.mxu0 %v365
  %677 = vmatmul.f32.gmra.mxu0 %v650
  %v678 = vpop.f32.mrf.mxu0
  %v679 = vadd.f32 %v415, %v678
  %680 = vdwg.mxu0
  %681 = vmatpush.msra.mxu0 %v411
  %682 = vmatpush.msra.mxu0 %v408
  %683 = vmatpush.msra.mxu0 %v405
  %684 = vmatpush.msra.mxu0 %v402
  %685 = vmatpush.msra.mxu0 %v399
  %686 = vmatpush.msra.mxu0 %v396
  %687 = vmatpush.msra.mxu0 %v393
  %688 = vmatpush.msra.mxu0 %v390
  %689 = vmatpush.msra.mxu0 %v387
  %690 = vmatpush.msra.mxu0 %v384
  %691 = vmatpush.msra.mxu0 %v381
  %692 = vmatpush.msra.mxu0 %v378
  %693 = vmatpush.msra.mxu0 %v375
  %694 = vmatpush.msra.mxu0 %v372
  %695 = vmatpush.msra.mxu0 %v369
  %696 = vmatpush.msra.mxu0 %v366
  %697 = vmatmul.f32.gmra.mxu0 %v650
  %v698 = vpop.f32.mrf.mxu0
  %v699 = vadd.f32 %v416, %v698
  %700 = vdwg.mxu0
  %701 = vmatpush.msra.mxu0 %v412
  %702 = vmatpush.msra.mxu0 %v409
  %703 = vmatpush.msra.mxu0 %v406
  %704 = vmatpush.msra.mxu0 %v403
  %705 = vmatpush.msra.mxu0 %v400
  %706 = vmatpush.msra.mxu0 %v397
  %707 = vmatpush.msra.mxu0 %v394
  %708 = vmatpush.msra.mxu0 %v391
  %709 = vmatpush.msra.mxu0 %v388
  %710 = vmatpush.msra.mxu0 %v385
  %711 = vmatpush.msra.mxu0 %v382
  %712 = vmatpush.msra.mxu0 %v379
  %713 = vmatpush.msra.mxu0 %v376
  %714 = vmatpush.msra.mxu0 %v373
  %715 = vmatpush.msra.mxu0 %v370
  %716 = vmatpush.msra.mxu0 %v367
  %717 = vmatmul.f32.gmra.mxu0 %v650
  %v718 = vpop.f32.mrf.mxu0
  %v719 = vadd.f32 %v417, %v718
  %720 = vdwg.mxu0
  %v721 = vadd.f32 %v658, %v679
  %v722 = vadd.f32 %v659, %v699
  %v723 = vxor.u32 %v721, 2147483648
  %v724 = vxor.u32 %v722, 2147483648
  %v725 = vmul.f32 %v723, 1.442695
  %v726 = vpow.pop %v725
  %v727 = vmul.f32 %v724, 1.442695
  %v728 = vpow.pop %v727
  %v729 = vadd.f32 %v726, 1.0
  %v730 = vadd.f32 %v728, 1.0
  %v731 = vrcp.pop %v729
  %v732 = vmul.f32 %v729, %v731
  %v733 = vsub.f32 1.0, %v732
  %v734 = vmul.f32 %v731, %v733
  %v735 = vadd.f32 %v731, %v734
  %vm736 = vweird.f32 %v729
  %vm737 = vweird.f32 %v731
  %vm738 = vmor %vm736, %vm737
  %v739 = vsel %vm738, %v731, %v735
  %v740 = vand.u32 2147483647, %v729
  %vm741 = vcmp.eq.f32.partialorder %v740, 8.507059e+37
  %v742 = vand.u32 %v729, 2147483648
  %v743 = vor.u32 1.1754944e-38, %v742
  %v744 = vsel %vm741, %v743, %v739
  %v745 = vmul.f32 1.0, %v744
  %v746 = vrcp.pop %v730
  %v747 = vmul.f32 %v730, %v746
  %v748 = vsub.f32 1.0, %v747
  %v749 = vmul.f32 %v746, %v748
  %v750 = vadd.f32 %v746, %v749
  %vm751 = vweird.f32 %v730
  %vm752 = vweird.f32 %v746
  %vm753 = vmor %vm751, %vm752
  %v754 = vsel %vm753, %v746, %v750
  %v755 = vand.u32 2147483647, %v730
  %vm756 = vcmp.eq.f32.partialorder %v755, 8.507059e+37
  %v757 = vand.u32 %v730, 2147483648
  %v758 = vor.u32 1.1754944e-38, %v757
  %v759 = vsel %vm756, %v758, %v754
  %v760 = vmul.f32 1.0, %v759
  %v761 = vmul.f32 %v745, %v719
  %v762 = vadd.f32 %v660, %v761
  %v763 = vtanh.pop %v762
  %v764 = vsub.f32 1.0, %v760
  %v765 = vmul.f32 %v764, %v763
  %v766 = vmul.f32 %v760, %v650
  %v767 = vadd.f32 %v765, %v766
  %s768 = smul.u32 2, 2
  %s769 = smul.addr %s768, 8
  %s770 = scalar_lea.vmem [#allocation3], %s769
  %771 = vst [vmem:[%s770] sm:$0xff] %v767
  %s772 = smul.u32 3, 3
  %s773 = smul.addr %s772, 8
  %s774 = scalar_lea.vmem [#allocation2], %s773
  %v775 = vld [vmem:[%s774] sm:$0xff]
  %v776 = vld [vmem:[%s774 + $0x8] sm:$0xff]
  %v777 = vld [vmem:[%s774 + $0x10] sm:$0xff]
  %778 = vmatpush.msra.mxu0 %v410
  %779 = vmatpush.msra.mxu0 %v407
  %780 = vmatpush.msra.mxu0 %v404
  %781 = vmatpush.msra.mxu0 %v401
  %782 = vmatpush.msra.mxu0 %v398
  %783 = vmatpush.msra.mxu0 %v395
  %784 = vmatpush.msra.mxu0 %v392
  %785 = vmatpush.msra.mxu0 %v389
  %786 = vmatpush.msra.mxu0 %v386
  %787 = vmatpush.msra.mxu0 %v383
  %788 = vmatpush.msra.mxu0 %v380
  %789 = vmatpush.msra.mxu0 %v377
  %790 = vmatpush.msra.mxu0 %v374
  %791 = vmatpush.msra.mxu0 %v371
  %792 = vmatpush.msra.mxu0 %v368
  %793 = vmatpush.msra.mxu0 %v365
  %794 = vmatmul.f32.gmra.mxu0 %v767
  %v795 = vpop.f32.mrf.mxu0
  %v796 = vadd.f32 %v415, %v795
  %797 = vdwg.mxu0
  %798 = vmatpush.msra.mxu0 %v411
  %799 = vmatpush.msra.mxu0 %v408
  %800 = vmatpush.msra.mxu0 %v405
  %801 = vmatpush.msra.mxu0 %v402
  %802 = vmatpush.msra.mxu0 %v399
  %803 = vmatpush.msra.mxu0 %v396
  %804 = vmatpush.msra.mxu0 %v393
  %805 = vmatpush.msra.mxu0 %v390
  %806 = vmatpush.msra.mxu0 %v387
  %807 = vmatpush.msra.mxu0 %v384
  %808 = vmatpush.msra.mxu0 %v381
  %809 = vmatpush.msra.mxu0 %v378
  %810 = vmatpush.msra.mxu0 %v375
  %811 = vmatpush.msra.mxu0 %v372
  %812 = vmatpush.msra.mxu0 %v369
  %813 = vmatpush.msra.mxu0 %v366
  %814 = vmatmul.f32.gmra.mxu0 %v767
  %v815 = vpop.f32.mrf.mxu0
  %v816 = vadd.f32 %v416, %v815
  %817 = vdwg.mxu0
  %818 = vmatpush.msra.mxu0 %v412
  %819 = vmatpush.msra.mxu0 %v409
  %820 = vmatpush.msra.mxu0 %v406
  %821 = vmatpush.msra.mxu0 %v403
  %822 = vmatpush.msra.mxu0 %v400
  %823 = vmatpush.msra.mxu0 %v397
  %824 = vmatpush.msra.mxu0 %v394
  %825 = vmatpush.msra.mxu0 %v391
  %826 = vmatpush.msra.mxu0 %v388
  %827 = vmatpush.msra.mxu0 %v385
  %828 = vmatpush.msra.mxu0 %v382
  %829 = vmatpush.msra.mxu0 %v379
  %830 = vmatpush.msra.mxu0 %v376
  %831 = vmatpush.msra.mxu0 %v373
  %832 = vmatpush.msra.mxu0 %v370
  %833 = vmatpush.msra.mxu0 %v367
  %834 = vmatmul.f32.gmra.mxu0 %v767
  %v835 = vpop.f32.mrf.mxu0
  %v836 = vadd.f32 %v417, %v835
  %837 = vdwg.mxu0
  %v838 = vadd.f32 %v775, %v796
  %v839 = vadd.f32 %v776, %v816
  %v840 = vxor.u32 %v838, 2147483648
  %v841 = vxor.u32 %v839, 2147483648
  %v842 = vmul.f32 %v840, 1.442695
  %v843 = vpow.pop %v842
  %v844 = vmul.f32 %v841, 1.442695
  %v845 = vpow.pop %v844
  %v846 = vadd.f32 %v843, 1.0
  %v847 = vadd.f32 %v845, 1.0
  %v848 = vrcp.pop %v846
  %v849 = vmul.f32 %v846, %v848
  %v850 = vsub.f32 1.0, %v849
  %v851 = vmul.f32 %v848, %v850
  %v852 = vadd.f32 %v848, %v851
  %vm853 = vweird.f32 %v846
  %vm854 = vweird.f32 %v848
  %vm855 = vmor %vm853, %vm854
  %v856 = vsel %vm855, %v848, %v852
  %v857 = vand.u32 2147483647, %v846
  %vm858 = vcmp.eq.f32.partialorder %v857, 8.507059e+37
  %v859 = vand.u32 %v846, 2147483648
  %v860 = vor.u32 1.1754944e-38, %v859
  %v861 = vsel %vm858, %v860, %v856
  %v862 = vmul.f32 1.0, %v861
  %v863 = vrcp.pop %v847
  %v864 = vmul.f32 %v847, %v863
  %v865 = vsub.f32 1.0, %v864
  %v866 = vmul.f32 %v863, %v865
  %v867 = vadd.f32 %v863, %v866
  %vm868 = vweird.f32 %v847
  %vm869 = vweird.f32 %v863
  %vm870 = vmor %vm868, %vm869
  %v871 = vsel %vm870, %v863, %v867
  %v872 = vand.u32 2147483647, %v847
  %vm873 = vcmp.eq.f32.partialorder %v872, 8.507059e+37
  %v874 = vand.u32 %v847, 2147483648
  %v875 = vor.u32 1.1754944e-38, %v874
  %v876 = vsel %vm873, %v875, %v871
  %v877 = vmul.f32 1.0, %v876
  %v878 = vmul.f32 %v862, %v836
  %v879 = vadd.f32 %v777, %v878
  %v880 = vtanh.pop %v879
  %v881 = vsub.f32 1.0, %v877
  %v882 = vmul.f32 %v881, %v880
  %v883 = vmul.f32 %v877, %v767
  %v884 = vadd.f32 %v882, %v883
  %s885 = smul.u32 3, 2
  %s886 = smul.addr %s885, 8
  %s887 = scalar_lea.vmem [#allocation3], %s886
  %888 = vst [vmem:[%s887] sm:$0xff] %v884
  %s889 = smul.u32 4, 3
  %s890 = smul.addr %s889, 8
  %s891 = scalar_lea.vmem [#allocation2], %s890
  %v892 = vld [vmem:[%s891] sm:$0xff]
  %v893 = vld [vmem:[%s891 + $0x8] sm:$0xff]
  %v894 = vld [vmem:[%s891 + $0x10] sm:$0xff]
  %895 = vmatpush.msra.mxu0 %v410
  %896 = vmatpush.msra.mxu0 %v407
  %897 = vmatpush.msra.mxu0 %v404
  %898 = vmatpush.msra.mxu0 %v401
  %899 = vmatpush.msra.mxu0 %v398
  %900 = vmatpush.msra.mxu0 %v395
  %901 = vmatpush.msra.mxu0 %v392
  %902 = vmatpush.msra.mxu0 %v389
  %903 = vmatpush.msra.mxu0 %v386
  %904 = vmatpush.msra.mxu0 %v383
  %905 = vmatpush.msra.mxu0 %v380
  %906 = vmatpush.msra.mxu0 %v377
  %907 = vmatpush.msra.mxu0 %v374
  %908 = vmatpush.msra.mxu0 %v371
  %909 = vmatpush.msra.mxu0 %v368
  %910 = vmatpush.msra.mxu0 %v365
  %911 = vmatmul.f32.gmra.mxu0 %v884
  %v912 = vpop.f32.mrf.mxu0
  %v913 = vadd.f32 %v415, %v912
  %914 = vdwg.mxu0
  %915 = vmatpush.msra.mxu0 %v411
  %916 = vmatpush.msra.mxu0 %v408
  %917 = vmatpush.msra.mxu0 %v405
  %918 = vmatpush.msra.mxu0 %v402
  %919 = vmatpush.msra.mxu0 %v399
  %920 = vmatpush.msra.mxu0 %v396
  %921 = vmatpush.msra.mxu0 %v393
  %922 = vmatpush.msra.mxu0 %v390
  %923 = vmatpush.msra.mxu0 %v387
  %924 = vmatpush.msra.mxu0 %v384
  %925 = vmatpush.msra.mxu0 %v381
  %926 = vmatpush.msra.mxu0 %v378
  %927 = vmatpush.msra.mxu0 %v375
  %928 = vmatpush.msra.mxu0 %v372
  %929 = vmatpush.msra.mxu0 %v369
  %930 = vmatpush.msra.mxu0 %v366
  %931 = vmatmul.f32.gmra.mxu0 %v884
  %v932 = vpop.f32.mrf.mxu0
  %v933 = vadd.f32 %v416, %v932
  %934 = vdwg.mxu0
  %935 = vmatpush.msra.mxu0 %v412
  %936 = vmatpush.msra.mxu0 %v409
  %937 = vmatpush.msra.mxu0 %v406
  %938 = vmatpush.msra.mxu0 %v403
  %939 = vmatpush.msra.mxu0 %v400
  %940 = vmatpush.msra.mxu0 %v397
  %941 = vmatpush.msra.mxu0 %v394
  %942 = vmatpush.msra.mxu0 %v391
  %943 = vmatpush.msra.mxu0 %v388
  %944 = vmatpush.msra.mxu0 %v385
  %945 = vmatpush.msra.mxu0 %v382
  %946 = vmatpush.msra.mxu0 %v379
  %947 = vmatpush.msra.mxu0 %v376
  %948 = vmatpush.msra.mxu0 %v373
  %949 = vmatpush.msra.mxu0 %v370
  %950 = vmatpush.msra.mxu0 %v367
  %951 = vmatmul.f32.gmra.mxu0 %v884
  %v952 = vpop.f32.mrf.mxu0
  %v953 = vadd.f32 %v417, %v952
  %954 = vdwg.mxu0
  %v955 = vadd.f32 %v892, %v913
  %v956 = vadd.f32 %v893, %v933
  %v957 = vxor.u32 %v955, 2147483648
  %v958 = vxor.u32 %v956, 2147483648
  %v959 = vmul.f32 %v957, 1.442695
  %v960 = vpow.pop %v959
  %v961 = vmul.f32 %v958, 1.442695
  %v962 = vpow.pop %v961
  %v963 = vadd.f32 %v960, 1.0
  %v964 = vadd.f32 %v962, 1.0
  %v965 = vrcp.pop %v963
  %v966 = vmul.f32 %v963, %v965
  %v967 = vsub.f32 1.0, %v966
  %v968 = vmul.f32 %v965, %v967
  %v969 = vadd.f32 %v965, %v968
  %vm970 = vweird.f32 %v963
  %vm971 = vweird.f32 %v965
  %vm972 = vmor %vm970, %vm971
  %v973 = vsel %vm972, %v965, %v969
  %v974 = vand.u32 2147483647, %v963
  %vm975 = vcmp.eq.f32.partialorder %v974, 8.507059e+37
  %v976 = vand.u32 %v963, 2147483648
  %v977 = vor.u32 1.1754944e-38, %v976
  %v978 = vsel %vm975, %v977, %v973
  %v979 = vmul.f32 1.0, %v978
  %v980 = vrcp.pop %v964
  %v981 = vmul.f32 %v964, %v980
  %v982 = vsub.f32 1.0, %v981
  %v983 = vmul.f32 %v980, %v982
  %v984 = vadd.f32 %v980, %v983
  %vm985 = vweird.f32 %v964
  %vm986 = vweird.f32 %v980
  %vm987 = vmor %vm985, %vm986
  %v988 = vsel %vm987, %v980, %v984
  %v989 = vand.u32 2147483647, %v964
  %vm990 = vcmp.eq.f32.partialorder %v989, 8.507059e+37
  %v991 = vand.u32 %v964, 2147483648
  %v992 = vor.u32 1.1754944e-38, %v991
  %v993 = vsel %vm990, %v992, %v988
  %v994 = vmul.f32 1.0, %v993
  %v995 = vmul.f32 %v979, %v953
  %v996 = vadd.f32 %v894, %v995
  %v997 = vtanh.pop %v996
  %v998 = vsub.f32 1.0, %v994
  %v999 = vmul.f32 %v998, %v997
  %v1000 = vmul.f32 %v994, %v884
  %v1001 = vadd.f32 %v999, %v1000
  %s1002 = smul.u32 4, 2
  %s1003 = smul.addr %s1002, 8
  %s1004 = scalar_lea.vmem [#allocation3], %s1003
  %1005 = vst [vmem:[%s1004] sm:$0xff] %v1001
  %s1006 = smul.u32 5, 3
  %s1007 = smul.addr %s1006, 8
  %s1008 = scalar_lea.vmem [#allocation2], %s1007
  %v1009 = vld [vmem:[%s1008] sm:$0xff]
  %v1010 = vld [vmem:[%s1008 + $0x8] sm:$0xff]
  %v1011 = vld [vmem:[%s1008 + $0x10] sm:$0xff]
  %1012 = vmatpush.msra.mxu0 %v410
  %1013 = vmatpush.msra.mxu0 %v407
  %1014 = vmatpush.msra.mxu0 %v404
  %1015 = vmatpush.msra.mxu0 %v401
  %1016 = vmatpush.msra.mxu0 %v398
  %1017 = vmatpush.msra.mxu0 %v395
  %1018 = vmatpush.msra.mxu0 %v392
  %1019 = vmatpush.msra.mxu0 %v389
  %1020 = vmatpush.msra.mxu0 %v386
  %1021 = vmatpush.msra.mxu0 %v383
  %1022 = vmatpush.msra.mxu0 %v380
  %1023 = vmatpush.msra.mxu0 %v377
  %1024 = vmatpush.msra.mxu0 %v374
  %1025 = vmatpush.msra.mxu0 %v371
  %1026 = vmatpush.msra.mxu0 %v368
  %1027 = vmatpush.msra.mxu0 %v365
  %1028 = vmatmul.f32.gmra.mxu0 %v1001
  %v1029 = vpop.f32.mrf.mxu0
  %v1030 = vadd.f32 %v415, %v1029
  %1031 = vdwg.mxu0
  %1032 = vmatpush.msra.mxu0 %v411
  %1033 = vmatpush.msra.mxu0 %v408
  %1034 = vmatpush.msra.mxu0 %v405
  %1035 = vmatpush.msra.mxu0 %v402
  %1036 = vmatpush.msra.mxu0 %v399
  %1037 = vmatpush.msra.mxu0 %v396
  %1038 = vmatpush.msra.mxu0 %v393
  %1039 = vmatpush.msra.mxu0 %v390
  %1040 = vmatpush.msra.mxu0 %v387
  %1041 = vmatpush.msra.mxu0 %v384
  %1042 = vmatpush.msra.mxu0 %v381
  %1043 = vmatpush.msra.mxu0 %v378
  %1044 = vmatpush.msra.mxu0 %v375
  %1045 = vmatpush.msra.mxu0 %v372
  %1046 = vmatpush.msra.mxu0 %v369
  %1047 = vmatpush.msra.mxu0 %v366
  %1048 = vmatmul.f32.gmra.mxu0 %v1001
  %v1049 = vpop.f32.mrf.mxu0
  %v1050 = vadd.f32 %v416, %v1049
  %1051 = vdwg.mxu0
  %1052 = vmatpush.msra.mxu0 %v412
  %1053 = vmatpush.msra.mxu0 %v409
  %1054 = vmatpush.msra.mxu0 %v406
  %1055 = vmatpush.msra.mxu0 %v403
  %1056 = vmatpush.msra.mxu0 %v400
  %1057 = vmatpush.msra.mxu0 %v397
  %1058 = vmatpush.msra.mxu0 %v394
  %1059 = vmatpush.msra.mxu0 %v391
  %1060 = vmatpush.msra.mxu0 %v388
  %1061 = vmatpush.msra.mxu0 %v385
  %1062 = vmatpush.msra.mxu0 %v382
  %1063 = vmatpush.msra.mxu0 %v379
  %1064 = vmatpush.msra.mxu0 %v376
  %1065 = vmatpush.msra.mxu0 %v373
  %1066 = vmatpush.msra.mxu0 %v370
  %1067 = vmatpush.msra.mxu0 %v367
  %1068 = vmatmul.f32.gmra.mxu0 %v1001
  %v1069 = vpop.f32.mrf.mxu0
  %v1070 = vadd.f32 %v417, %v1069
  %1071 = vdwg.mxu0
  %v1072 = vadd.f32 %v1009, %v1030
  %v1073 = vadd.f32 %v1010, %v1050
  %v1074 = vxor.u32 %v1072, 2147483648
  %v1075 = vxor.u32 %v1073, 2147483648
  %v1076 = vmul.f32 %v1074, 1.442695
  %v1077 = vpow.pop %v1076
  %v1078 = vmul.f32 %v1075, 1.442695
  %v1079 = vpow.pop %v1078
  %v1080 = vadd.f32 %v1077, 1.0
  %v1081 = vadd.f32 %v1079, 1.0
  %v1082 = vrcp.pop %v1080
  %v1083 = vmul.f32 %v1080, %v1082
  %v1084 = vsub.f32 1.0, %v1083
  %v1085 = vmul.f32 %v1082, %v1084
  %v1086 = vadd.f32 %v1082, %v1085
  %vm1087 = vweird.f32 %v1080
  %vm1088 = vweird.f32 %v1082
  %vm1089 = vmor %vm1087, %vm1088
  %v1090 = vsel %vm1089, %v1082, %v1086
  %v1091 = vand.u32 2147483647, %v1080
  %vm1092 = vcmp.eq.f32.partialorder %v1091, 8.507059e+37
  %v1093 = vand.u32 %v1080, 2147483648
  %v1094 = vor.u32 1.1754944e-38, %v1093
  %v1095 = vsel %vm1092, %v1094, %v1090
  %v1096 = vmul.f32 1.0, %v1095
  %v1097 = vrcp.pop %v1081
  %v1098 = vmul.f32 %v1081, %v1097
  %v1099 = vsub.f32 1.0, %v1098
  %v1100 = vmul.f32 %v1097, %v1099
  %v1101 = vadd.f32 %v1097, %v1100
  %vm1102 = vweird.f32 %v1081
  %vm1103 = vweird.f32 %v1097
  %vm1104 = vmor %vm1102, %vm1103
  %v1105 = vsel %vm1104, %v1097, %v1101
  %v1106 = vand.u32 2147483647, %v1081
  %vm1107 = vcmp.eq.f32.partialorder %v1106, 8.507059e+37
  %v1108 = vand.u32 %v1081, 2147483648
  %v1109 = vor.u32 1.1754944e-38, %v1108
  %v1110 = vsel %vm1107, %v1109, %v1105
  %v1111 = vmul.f32 1.0, %v1110
  %v1112 = vmul.f32 %v1096, %v1070
  %v1113 = vadd.f32 %v1011, %v1112
  %v1114 = vtanh.pop %v1113
  %v1115 = vsub.f32 1.0, %v1111
  %v1116 = vmul.f32 %v1115, %v1114
  %v1117 = vmul.f32 %v1111, %v1001
  %v1118 = vadd.f32 %v1116, %v1117
  %s1119 = smul.u32 5, 2
  %s1120 = smul.addr %s1119, 8
  %s1121 = scalar_lea.vmem [#allocation3], %s1120
  %1122 = vst [vmem:[%s1121] sm:$0xff] %v1118
  %s1123 = smul.u32 6, 3
  %s1124 = smul.addr %s1123, 8
  %s1125 = scalar_lea.vmem [#allocation2], %s1124
  %v1126 = vld [vmem:[%s1125] sm:$0xff]
  %v1127 = vld [vmem:[%s1125 + $0x8] sm:$0xff]
  %v1128 = vld [vmem:[%s1125 + $0x10] sm:$0xff]
  %1129 = vmatpush.msra.mxu0 %v410
  %1130 = vmatpush.msra.mxu0 %v407
  %1131 = vmatpush.msra.mxu0 %v404
  %1132 = vmatpush.msra.mxu0 %v401
  %1133 = vmatpush.msra.mxu0 %v398
  %1134 = vmatpush.msra.mxu0 %v395
  %1135 = vmatpush.msra.mxu0 %v392
  %1136 = vmatpush.msra.mxu0 %v389
  %1137 = vmatpush.msra.mxu0 %v386
  %1138 = vmatpush.msra.mxu0 %v383
  %1139 = vmatpush.msra.mxu0 %v380
  %1140 = vmatpush.msra.mxu0 %v377
  %1141 = vmatpush.msra.mxu0 %v374
  %1142 = vmatpush.msra.mxu0 %v371
  %1143 = vmatpush.msra.mxu0 %v368
  %1144 = vmatpush.msra.mxu0 %v365
  %1145 = vmatmul.f32.gmra.mxu0 %v1118
  %v1146 = vpop.f32.mrf.mxu0
  %v1147 = vadd.f32 %v415, %v1146
  %1148 = vdwg.mxu0
  %1149 = vmatpush.msra.mxu0 %v411
  %1150 = vmatpush.msra.mxu0 %v408
  %1151 = vmatpush.msra.mxu0 %v405
  %1152 = vmatpush.msra.mxu0 %v402
  %1153 = vmatpush.msra.mxu0 %v399
  %1154 = vmatpush.msra.mxu0 %v396
  %1155 = vmatpush.msra.mxu0 %v393
  %1156 = vmatpush.msra.mxu0 %v390
  %1157 = vmatpush.msra.mxu0 %v387
  %1158 = vmatpush.msra.mxu0 %v384
  %1159 = vmatpush.msra.mxu0 %v381
  %1160 = vmatpush.msra.mxu0 %v378
  %1161 = vmatpush.msra.mxu0 %v375
  %1162 = vmatpush.msra.mxu0 %v372
  %1163 = vmatpush.msra.mxu0 %v369
  %1164 = vmatpush.msra.mxu0 %v366
  %1165 = vmatmul.f32.gmra.mxu0 %v1118
  %v1166 = vpop.f32.mrf.mxu0
  %v1167 = vadd.f32 %v416, %v1166
  %1168 = vdwg.mxu0
  %1169 = vmatpush.msra.mxu0 %v412
  %1170 = vmatpush.msra.mxu0 %v409
  %1171 = vmatpush.msra.mxu0 %v406
  %1172 = vmatpush.msra.mxu0 %v403
  %1173 = vmatpush.msra.mxu0 %v400
  %1174 = vmatpush.msra.mxu0 %v397
  %1175 = vmatpush.msra.mxu0 %v394
  %1176 = vmatpush.msra.mxu0 %v391
  %1177 = vmatpush.msra.mxu0 %v388
  %1178 = vmatpush.msra.mxu0 %v385
  %1179 = vmatpush.msra.mxu0 %v382
  %1180 = vmatpush.msra.mxu0 %v379
  %1181 = vmatpush.msra.mxu0 %v376
  %1182 = vmatpush.msra.mxu0 %v373
  %1183 = vmatpush.msra.mxu0 %v370
  %1184 = vmatpush.msra.mxu0 %v367
  %1185 = vmatmul.f32.gmra.mxu0 %v1118
  %v1186 = vpop.f32.mrf.mxu0
  %v1187 = vadd.f32 %v417, %v1186
  %1188 = vdwg.mxu0
  %v1189 = vadd.f32 %v1126, %v1147
  %v1190 = vadd.f32 %v1127, %v1167
  %v1191 = vxor.u32 %v1189, 2147483648
  %v1192 = vxor.u32 %v1190, 2147483648
  %v1193 = vmul.f32 %v1191, 1.442695
  %v1194 = vpow.pop %v1193
  %v1195 = vmul.f32 %v1192, 1.442695
  %v1196 = vpow.pop %v1195
  %v1197 = vadd.f32 %v1194, 1.0
  %v1198 = vadd.f32 %v1196, 1.0
  %v1199 = vrcp.pop %v1197
  %v1200 = vmul.f32 %v1197, %v1199
  %v1201 = vsub.f32 1.0, %v1200
  %v1202 = vmul.f32 %v1199, %v1201
  %v1203 = vadd.f32 %v1199, %v1202
  %vm1204 = vweird.f32 %v1197
  %vm1205 = vweird.f32 %v1199
  %vm1206 = vmor %vm1204, %vm1205
  %v1207 = vsel %vm1206, %v1199, %v1203
  %v1208 = vand.u32 2147483647, %v1197
  %vm1209 = vcmp.eq.f32.partialorder %v1208, 8.507059e+37
  %v1210 = vand.u32 %v1197, 2147483648
  %v1211 = vor.u32 1.1754944e-38, %v1210
  %v1212 = vsel %vm1209, %v1211, %v1207
  %v1213 = vmul.f32 1.0, %v1212
  %v1214 = vrcp.pop %v1198
  %v1215 = vmul.f32 %v1198, %v1214
  %v1216 = vsub.f32 1.0, %v1215
  %v1217 = vmul.f32 %v1214, %v1216
  %v1218 = vadd.f32 %v1214, %v1217
  %vm1219 = vweird.f32 %v1198
  %vm1220 = vweird.f32 %v1214
  %vm1221 = vmor %vm1219, %vm1220
  %v1222 = vsel %vm1221, %v1214, %v1218
  %v1223 = vand.u32 2147483647, %v1198
  %vm1224 = vcmp.eq.f32.partialorder %v1223, 8.507059e+37
  %v1225 = vand.u32 %v1198, 2147483648
  %v1226 = vor.u32 1.1754944e-38, %v1225
  %v1227 = vsel %vm1224, %v1226, %v1222
  %v1228 = vmul.f32 1.0, %v1227
  %v1229 = vmul.f32 %v1213, %v1187
  %v1230 = vadd.f32 %v1128, %v1229
  %v1231 = vtanh.pop %v1230
  %v1232 = vsub.f32 1.0, %v1228
  %v1233 = vmul.f32 %v1232, %v1231
  %v1234 = vmul.f32 %v1228, %v1118
  %v1235 = vadd.f32 %v1233, %v1234
  %s1236 = smul.u32 6, 2
  %s1237 = smul.addr %s1236, 8
  %s1238 = scalar_lea.vmem [#allocation3], %s1237
  %1239 = vst [vmem:[%s1238] sm:$0xff] %v1235
  %s1240 = smul.u32 7, 3
  %s1241 = smul.addr %s1240, 8
  %s1242 = scalar_lea.vmem [#allocation2], %s1241
  %v1243 = vld [vmem:[%s1242] sm:$0xff]
  %v1244 = vld [vmem:[%s1242 + $0x8] sm:$0xff]
  %v1245 = vld [vmem:[%s1242 + $0x10] sm:$0xff]
  %1246 = vmatpush.msra.mxu0 %v410
  %1247 = vmatpush.msra.mxu0 %v407
  %1248 = vmatpush.msra.mxu0 %v404
  %1249 = vmatpush.msra.mxu0 %v401
  %1250 = vmatpush.msra.mxu0 %v398
  %1251 = vmatpush.msra.mxu0 %v395
  %1252 = vmatpush.msra.mxu0 %v392
  %1253 = vmatpush.msra.mxu0 %v389
  %1254 = vmatpush.msra.mxu0 %v386
  %1255 = vmatpush.msra.mxu0 %v383
  %1256 = vmatpush.msra.mxu0 %v380
  %1257 = vmatpush.msra.mxu0 %v377
  %1258 = vmatpush.msra.mxu0 %v374
  %1259 = vmatpush.msra.mxu0 %v371
  %1260 = vmatpush.msra.mxu0 %v368
  %1261 = vmatpush.msra.mxu0 %v365
  %1262 = vmatmul.f32.gmra.mxu0 %v1235
  %v1263 = vpop.f32.mrf.mxu0
  %v1264 = vadd.f32 %v415, %v1263
  %1265 = vdwg.mxu0
  %1266 = vmatpush.msra.mxu0 %v411
  %1267 = vmatpush.msra.mxu0 %v408
  %1268 = vmatpush.msra.mxu0 %v405
  %1269 = vmatpush.msra.mxu0 %v402
  %1270 = vmatpush.msra.mxu0 %v399
  %1271 = vmatpush.msra.mxu0 %v396
  %1272 = vmatpush.msra.mxu0 %v393
  %1273 = vmatpush.msra.mxu0 %v390
  %1274 = vmatpush.msra.mxu0 %v387
  %1275 = vmatpush.msra.mxu0 %v384
  %1276 = vmatpush.msra.mxu0 %v381
  %1277 = vmatpush.msra.mxu0 %v378
  %1278 = vmatpush.msra.mxu0 %v375
  %1279 = vmatpush.msra.mxu0 %v372
  %1280 = vmatpush.msra.mxu0 %v369
  %1281 = vmatpush.msra.mxu0 %v366
  %1282 = vmatmul.f32.gmra.mxu0 %v1235
  %v1283 = vpop.f32.mrf.mxu0
  %v1284 = vadd.f32 %v416, %v1283
  %1285 = vdwg.mxu0
  %1286 = vmatpush.msra.mxu0 %v412
  %1287 = vmatpush.msra.mxu0 %v409
  %1288 = vmatpush.msra.mxu0 %v406
  %1289 = vmatpush.msra.mxu0 %v403
  %1290 = vmatpush.msra.mxu0 %v400
  %1291 = vmatpush.msra.mxu0 %v397
  %1292 = vmatpush.msra.mxu0 %v394
  %1293 = vmatpush.msra.mxu0 %v391
  %1294 = vmatpush.msra.mxu0 %v388
  %1295 = vmatpush.msra.mxu0 %v385
  %1296 = vmatpush.msra.mxu0 %v382
  %1297 = vmatpush.msra.mxu0 %v379
  %1298 = vmatpush.msra.mxu0 %v376
  %1299 = vmatpush.msra.mxu0 %v373
  %1300 = vmatpush.msra.mxu0 %v370
  %1301 = vmatpush.msra.mxu0 %v367
  %1302 = vmatmul.f32.gmra.mxu0 %v1235
  %v1303 = vpop.f32.mrf.mxu0
  %v1304 = vadd.f32 %v417, %v1303
  %1305 = vdwg.mxu0
  %v1306 = vadd.f32 %v1243, %v1264
  %v1307 = vadd.f32 %v1244, %v1284
  %v1308 = vxor.u32 %v1306, 2147483648
  %v1309 = vxor.u32 %v1307, 2147483648
  %v1310 = vmul.f32 %v1308, 1.442695
  %v1311 = vpow.pop %v1310
  %v1312 = vmul.f32 %v1309, 1.442695
  %v1313 = vpow.pop %v1312
  %v1314 = vadd.f32 %v1311, 1.0
  %v1315 = vadd.f32 %v1313, 1.0
  %v1316 = vrcp.pop %v1314
  %v1317 = vmul.f32 %v1314, %v1316
  %v1318 = vsub.f32 1.0, %v1317
  %v1319 = vmul.f32 %v1316, %v1318
  %v1320 = vadd.f32 %v1316, %v1319
  %vm1321 = vweird.f32 %v1314
  %vm1322 = vweird.f32 %v1316
  %vm1323 = vmor %vm1321, %vm1322
  %v1324 = vsel %vm1323, %v1316, %v1320
  %v1325 = vand.u32 2147483647, %v1314
  %vm1326 = vcmp.eq.f32.partialorder %v1325, 8.507059e+37
  %v1327 = vand.u32 %v1314, 2147483648
  %v1328 = vor.u32 1.1754944e-38, %v1327
  %v1329 = vsel %vm1326, %v1328, %v1324
  %v1330 = vmul.f32 1.0, %v1329
  %v1331 = vrcp.pop %v1315
  %v1332 = vmul.f32 %v1315, %v1331
  %v1333 = vsub.f32 1.0, %v1332
  %v1334 = vmul.f32 %v1331, %v1333
  %v1335 = vadd.f32 %v1331, %v1334
  %vm1336 = vweird.f32 %v1315
  %vm1337 = vweird.f32 %v1331
  %vm1338 = vmor %vm1336, %vm1337
  %v1339 = vsel %vm1338, %v1331, %v1335
  %v1340 = vand.u32 2147483647, %v1315
  %vm1341 = vcmp.eq.f32.partialorder %v1340, 8.507059e+37
  %v1342 = vand.u32 %v1315, 2147483648
  %v1343 = vor.u32 1.1754944e-38, %v1342
  %v1344 = vsel %vm1341, %v1343, %v1339
  %v1345 = vmul.f32 1.0, %v1344
  %v1346 = vmul.f32 %v1330, %v1304
  %v1347 = vadd.f32 %v1245, %v1346
  %v1348 = vtanh.pop %v1347
  %v1349 = vsub.f32 1.0, %v1345
  %v1350 = vmul.f32 %v1349, %v1348
  %v1351 = vmul.f32 %v1345, %v1235
  %v1352 = vadd.f32 %v1350, %v1351
  %s1353 = smul.u32 7, 2
  %s1354 = smul.addr %s1353, 8
  %s1355 = scalar_lea.vmem [#allocation3], %s1354
  %1356 = vst [vmem:[%s1355] sm:$0xff] %v1352
  %s1357 = smul.u32 8, 3
  %s1358 = smul.addr %s1357, 8
  %s1359 = scalar_lea.vmem [#allocation2], %s1358
  %v1360 = vld [vmem:[%s1359] sm:$0xff]
  %v1361 = vld [vmem:[%s1359 + $0x8] sm:$0xff]
  %v1362 = vld [vmem:[%s1359 + $0x10] sm:$0xff]
  %1363 = vmatpush.msra.mxu0 %v410
  %1364 = vmatpush.msra.mxu0 %v407
  %1365 = vmatpush.msra.mxu0 %v404
  %1366 = vmatpush.msra.mxu0 %v401
  %1367 = vmatpush.msra.mxu0 %v398
  %1368 = vmatpush.msra.mxu0 %v395
  %1369 = vmatpush.msra.mxu0 %v392
  %1370 = vmatpush.msra.mxu0 %v389
  %1371 = vmatpush.msra.mxu0 %v386
  %1372 = vmatpush.msra.mxu0 %v383
  %1373 = vmatpush.msra.mxu0 %v380
  %1374 = vmatpush.msra.mxu0 %v377
  %1375 = vmatpush.msra.mxu0 %v374
  %1376 = vmatpush.msra.mxu0 %v371
  %1377 = vmatpush.msra.mxu0 %v368
  %1378 = vmatpush.msra.mxu0 %v365
  %1379 = vmatmul.f32.gmra.mxu0 %v1352
  %v1380 = vpop.f32.mrf.mxu0
  %v1381 = vadd.f32 %v415, %v1380
  %1382 = vdwg.mxu0
  %1383 = vmatpush.msra.mxu0 %v411
  %1384 = vmatpush.msra.mxu0 %v408
  %1385 = vmatpush.msra.mxu0 %v405
  %1386 = vmatpush.msra.mxu0 %v402
  %1387 = vmatpush.msra.mxu0 %v399
  %1388 = vmatpush.msra.mxu0 %v396
  %1389 = vmatpush.msra.mxu0 %v393
  %1390 = vmatpush.msra.mxu0 %v390
  %1391 = vmatpush.msra.mxu0 %v387
  %1392 = vmatpush.msra.mxu0 %v384
  %1393 = vmatpush.msra.mxu0 %v381
  %1394 = vmatpush.msra.mxu0 %v378
  %1395 = vmatpush.msra.mxu0 %v375
  %1396 = vmatpush.msra.mxu0 %v372
  %1397 = vmatpush.msra.mxu0 %v369
  %1398 = vmatpush.msra.mxu0 %v366
  %1399 = vmatmul.f32.gmra.mxu0 %v1352
  %v1400 = vpop.f32.mrf.mxu0
  %v1401 = vadd.f32 %v416, %v1400
  %1402 = vdwg.mxu0
  %1403 = vmatpush.msra.mxu0 %v412
  %1404 = vmatpush.msra.mxu0 %v409
  %1405 = vmatpush.msra.mxu0 %v406
  %1406 = vmatpush.msra.mxu0 %v403
  %1407 = vmatpush.msra.mxu0 %v400
  %1408 = vmatpush.msra.mxu0 %v397
  %1409 = vmatpush.msra.mxu0 %v394
  %1410 = vmatpush.msra.mxu0 %v391
  %1411 = vmatpush.msra.mxu0 %v388
  %1412 = vmatpush.msra.mxu0 %v385
  %1413 = vmatpush.msra.mxu0 %v382
  %1414 = vmatpush.msra.mxu0 %v379
  %1415 = vmatpush.msra.mxu0 %v376
  %1416 = vmatpush.msra.mxu0 %v373
  %1417 = vmatpush.msra.mxu0 %v370
  %1418 = vmatpush.msra.mxu0 %v367
  %1419 = vmatmul.f32.gmra.mxu0 %v1352
  %v1420 = vpop.f32.mrf.mxu0
  %v1421 = vadd.f32 %v417, %v1420
  %1422 = vdwg.mxu0
  %v1423 = vadd.f32 %v1360, %v1381
  %v1424 = vadd.f32 %v1361, %v1401
  %v1425 = vxor.u32 %v1423, 2147483648
  %v1426 = vxor.u32 %v1424, 2147483648
  %v1427 = vmul.f32 %v1425, 1.442695
  %v1428 = vpow.pop %v1427
  %v1429 = vmul.f32 %v1426, 1.442695
  %v1430 = vpow.pop %v1429
  %v1431 = vadd.f32 %v1428, 1.0
  %v1432 = vadd.f32 %v1430, 1.0
  %v1433 = vrcp.pop %v1431
  %v1434 = vmul.f32 %v1431, %v1433
  %v1435 = vsub.f32 1.0, %v1434
  %v1436 = vmul.f32 %v1433, %v1435
  %v1437 = vadd.f32 %v1433, %v1436
  %vm1438 = vweird.f32 %v1431
  %vm1439 = vweird.f32 %v1433
  %vm1440 = vmor %vm1438, %vm1439
  %v1441 = vsel %vm1440, %v1433, %v1437
  %v1442 = vand.u32 2147483647, %v1431
  %vm1443 = vcmp.eq.f32.partialorder %v1442, 8.507059e+37
  %v1444 = vand.u32 %v1431, 2147483648
  %v1445 = vor.u32 1.1754944e-38, %v1444
  %v1446 = vsel %vm1443, %v1445, %v1441
  %v1447 = vmul.f32 1.0, %v1446
  %v1448 = vrcp.pop %v1432
  %v1449 = vmul.f32 %v1432, %v1448
  %v1450 = vsub.f32 1.0, %v1449
  %v1451 = vmul.f32 %v1448, %v1450
  %v1452 = vadd.f32 %v1448, %v1451
  %vm1453 = vweird.f32 %v1432
  %vm1454 = vweird.f32 %v1448
  %vm1455 = vmor %vm1453, %vm1454
  %v1456 = vsel %vm1455, %v1448, %v1452
  %v1457 = vand.u32 2147483647, %v1432
  %vm1458 = vcmp.eq.f32.partialorder %v1457, 8.507059e+37
  %v1459 = vand.u32 %v1432, 2147483648
  %v1460 = vor.u32 1.1754944e-38, %v1459
  %v1461 = vsel %vm1458, %v1460, %v1456
  %v1462 = vmul.f32 1.0, %v1461
  %v1463 = vmul.f32 %v1447, %v1421
  %v1464 = vadd.f32 %v1362, %v1463
  %v1465 = vtanh.pop %v1464
  %v1466 = vsub.f32 1.0, %v1462
  %v1467 = vmul.f32 %v1466, %v1465
  %v1468 = vmul.f32 %v1462, %v1352
  %v1469 = vadd.f32 %v1467, %v1468
  %s1470 = smul.u32 8, 2
  %s1471 = smul.addr %s1470, 8
  %s1472 = scalar_lea.vmem [#allocation3], %s1471
  %1473 = vst [vmem:[%s1472] sm:$0xff] %v1469
  %v1474 = vld [vmem:[#allocation3] sm:$0xff]
  %v1475 = vld [vmem:[#allocation3 + $0x8] sm:$0xff]
  %v1476 = vld [vmem:[#allocation3 + $0x10] sm:$0xff]
  %v1477 = vld [vmem:[#allocation3 + $0x18] sm:$0xff]
  %v1478 = vld [vmem:[#allocation3 + $0x20] sm:$0xff]
  %v1479 = vld [vmem:[#allocation3 + $0x28] sm:$0xff]
  %v1480 = vld [vmem:[#allocation3 + $0x30] sm:$0xff]
  %v1481 = vld [vmem:[#allocation3 + $0x38] sm:$0xff]
  %v1482 = vld [vmem:[#allocation3 + $0x40] sm:$0xff]
  %v1483 = vld [vmem:[#allocation3 + $0x48] sm:$0xff]
  %v1484 = vld [vmem:[#allocation3 + $0x50] sm:$0xff]
  %v1485 = vld [vmem:[#allocation3 + $0x58] sm:$0xff]
  %v1486 = vld [vmem:[#allocation3 + $0x60] sm:$0xff]
  %v1487 = vld [vmem:[#allocation3 + $0x68] sm:$0xff]
  %v1488 = vld [vmem:[#allocation3 + $0x70] sm:$0xff]
  %v1489 = vld [vmem:[#allocation3 + $0x78] sm:$0xff]
  %v1490 = vld [vmem:[#allocation3 + $0x80] sm:$0xff]
  %v1491 = vld [vmem:[#allocation3 + $0x88] sm:$0xff]
  %v1492 = vld [vmem:[%s5] sm:$0xff]
  %v1493 = vld [vmem:[%s5 + $0x8] sm:$0xff]
  %v1494 = vld [vmem:[%s5 + $0x10] sm:$0xff]
  %v1495 = vld [vmem:[%s5 + $0x18] sm:$0xff]
  %v1496 = vld [vmem:[%s5 + $0x20] sm:$0xff]
  %v1497 = vld [vmem:[%s5 + $0x28] sm:$0xff]
  %v1498 = vld [vmem:[%s5 + $0x30] sm:$0xff]
  %v1499 = vld [vmem:[%s5 + $0x38] sm:$0xff]
  %v1500 = vld [vmem:[%s5 + $0x40] sm:$0xff]
  %v1501 = vld [vmem:[%s5 + $0x48] sm:$0xff]
  %v1502 = vld [vmem:[%s5 + $0x50] sm:$0xff]
  %v1503 = vld [vmem:[%s5 + $0x58] sm:$0xff]
  %v1504 = vld [vmem:[%s5 + $0x60] sm:$0xff]
  %v1505 = vld [vmem:[%s5 + $0x68] sm:$0xff]
  %v1506 = vld [vmem:[%s5 + $0x70] sm:$0xff]
  %v1507 = vld [vmem:[%s5 + $0x78] sm:$0xff]
  %v1508 = vld [vmem:[%s5 + $0x80] sm:$0xff]
  %v1509 = vld [vmem:[%s5 + $0x88] sm:$0xff]
  %v1510 = vld [vmem:[%s5 + $0x90] sm:$0xff]
  %v1511 = vld [vmem:[%s5 + $0x98] sm:$0xff]
  %v1512 = vld [vmem:[%s5 + $0xa0] sm:$0xff]
  %v1513 = vld [vmem:[%s5 + $0xa8] sm:$0xff]
  %v1514 = vld [vmem:[%s5 + $0xb0] sm:$0xff]
  %v1515 = vld [vmem:[%s5 + $0xb8] sm:$0xff]
  %v1516 = vld [vmem:[%s5 + $0xc0] sm:$0xff]
  %v1517 = vld [vmem:[%s5 + $0xc8] sm:$0xff]
  %v1518 = vld [vmem:[%s5 + $0xd0] sm:$0xff]
  %v1519 = vld [vmem:[%s5 + $0xd8] sm:$0xff]
  %v1520 = vld [vmem:[%s5 + $0xe0] sm:$0xff]
  %v1521 = vld [vmem:[%s5 + $0xe8] sm:$0xff]
  %v1522 = vld [vmem:[%s5 + $0xf0] sm:$0xff]
  %v1523 = vld [vmem:[%s5 + $0xf8] sm:$0xff]
  %v1524 = vld [vmem:[%s5 + $0x100] sm:$0xff]
  %v1525 = vld [vmem:[%s5 + $0x108] sm:$0xff]
  %v1526 = vld [vmem:[%s5 + $0x110] sm:$0xff]
  %v1527 = vld [vmem:[%s5 + $0x118] sm:$0xff]
  %v1528 = vld [vmem:[%s5 + $0x120] sm:$0xff]
  %v1529 = vld [vmem:[%s5 + $0x128] sm:$0xff]
  %v1530 = vld [vmem:[%s5 + $0x130] sm:$0xff]
  %v1531 = vld [vmem:[%s5 + $0x138] sm:$0xff]
  %v1532 = vld [vmem:[%s5 + $0x140] sm:$0xff]
  %v1533 = vld [vmem:[%s5 + $0x148] sm:$0xff]
  %v1534 = vld [vmem:[%s5 + $0x150] sm:$0xff]
  %v1535 = vld [vmem:[%s5 + $0x158] sm:$0xff]
  %v1536 = vld [vmem:[%s5 + $0x160] sm:$0xff]
  %v1537 = vld [vmem:[%s5 + $0x168] sm:$0xff]
  %v1538 = vld [vmem:[%s5 + $0x170] sm:$0xff]
  %v1539 = vld [vmem:[%s5 + $0x178] sm:$0xff]
  %v1540 = vld [vmem:[%s5 + $0x180] sm:$0xff]
  %v1541 = vld [vmem:[%s5 + $0x188] sm:$0xff]
  %v1542 = vld [vmem:[%s5 + $0x190] sm:$0xff]
  %v1543 = vld [vmem:[%s5 + $0x198] sm:$0xff]
  %v1544 = vld [vmem:[%s5 + $0x1a0] sm:$0xff]
  %v1545 = vld [vmem:[%s5 + $0x1a8] sm:$0xff]
  %v1546 = vld [vmem:[%s5 + $0x1b0] sm:$0xff]
  %v1547 = vld [vmem:[%s5 + $0x1b8] sm:$0xff]
  %v1548 = vld [vmem:[%s5 + $0x1c0] sm:$0xff]
  %v1549 = vld [vmem:[%s5 + $0x1c8] sm:$0xff]
  %v1550 = vld [vmem:[%s5 + $0x1d0] sm:$0xff]
  %v1551 = vld [vmem:[%s5 + $0x1d8] sm:$0xff]
  %v1552 = vld [vmem:[%s5 + $0x1e0] sm:$0xff]
  %v1553 = vld [vmem:[%s5 + $0x1e8] sm:$0xff]
  %v1554 = vld [vmem:[%s5 + $0x1f0] sm:$0xff]
  %v1555 = vld [vmem:[%s5 + $0x1f8] sm:$0xff]
  %v1556 = vld [vmem:[%s12 + $0x6] sm:$0x3]
  %v1558 = vperm.slane %v1556, 0
  %v1559 = vperm.slane %v1556, 1
  %1562 = vmatpush.msra.mxu0 %v1522
  %1563 = vmatpush.msra.mxu0 %v1520
  %1564 = vmatpush.msra.mxu0 %v1518
  %1565 = vmatpush.msra.mxu0 %v1516
  %1566 = vmatpush.msra.mxu0 %v1514
  %1567 = vmatpush.msra.mxu0 %v1512
  %1568 = vmatpush.msra.mxu0 %v1510
  %1569 = vmatpush.msra.mxu0 %v1508
  %1570 = vmatpush.msra.mxu0 %v1506
  %1571 = vmatpush.msra.mxu0 %v1504
  %1572 = vmatpush.msra.mxu0 %v1502
  %1573 = vmatpush.msra.mxu0 %v1500
  %1574 = vmatpush.msra.mxu0 %v1498
  %1575 = vmatpush.msra.mxu0 %v1496
  %1576 = vmatpush.msra.mxu0 %v1494
  %1577 = vmatpush.msra.mxu0 %v1492
  %1578 = vmatmul.f32.gmra.mxu0 %v1474
  %v1579 = vpop.f32.mrf.mxu0
  %v1580 = vadd.f32 %v1558, %v1579
  %1581 = vmatmul.f32.gmra.mxu0 %v1476
  %v1582 = vpop.f32.mrf.mxu0
  %v1583 = vadd.f32 %v1558, %v1582
  %1584 = vmatmul.f32.gmra.mxu0 %v1478
  %v1585 = vpop.f32.mrf.mxu0
  %v1586 = vadd.f32 %v1558, %v1585
  %1587 = vmatmul.f32.gmra.mxu0 %v1480
  %v1588 = vpop.f32.mrf.mxu0
  %v1589 = vadd.f32 %v1558, %v1588
  %1590 = vmatmul.f32.gmra.mxu0 %v1482
  %v1591 = vpop.f32.mrf.mxu0
  %v1592 = vadd.f32 %v1558, %v1591
  %1593 = vmatmul.f32.gmra.mxu0 %v1484
  %v1594 = vpop.f32.mrf.mxu0
  %v1595 = vadd.f32 %v1558, %v1594
  %1596 = vmatmul.f32.gmra.mxu0 %v1486
  %v1597 = vpop.f32.mrf.mxu0
  %v1598 = vadd.f32 %v1558, %v1597
  %1599 = vmatmul.f32.gmra.mxu0 %v1488
  %v1600 = vpop.f32.mrf.mxu0
  %v1601 = vadd.f32 %v1558, %v1600
  %1602 = vmatmul.f32.gmra.mxu0 %v1490
  %v1603 = vpop.f32.mrf.mxu0
  %v1604 = vadd.f32 %v1558, %v1603
  %1605 = vdwg.mxu0
  %1606 = vmatpush.msra.mxu0 %v1554
  %1607 = vmatpush.msra.mxu0 %v1552
  %1608 = vmatpush.msra.mxu0 %v1550
  %1609 = vmatpush.msra.mxu0 %v1548
  %1610 = vmatpush.msra.mxu0 %v1546
  %1611 = vmatpush.msra.mxu0 %v1544
  %1612 = vmatpush.msra.mxu0 %v1542
  %1613 = vmatpush.msra.mxu0 %v1540
  %1614 = vmatpush.msra.mxu0 %v1538
  %1615 = vmatpush.msra.mxu0 %v1536
  %1616 = vmatpush.msra.mxu0 %v1534
  %1617 = vmatpush.msra.mxu0 %v1532
  %1618 = vmatpush.msra.mxu0 %v1530
  %1619 = vmatpush.msra.mxu0 %v1528
  %1620 = vmatpush.msra.mxu0 %v1526
  %1621 = vmatpush.msra.mxu0 %v1524
  %1622 = vmatmul.f32.gmra.mxu0 %v1475
  %v1623 = vpop.f32.mrf.mxu0
  %v1624 = vadd.f32 %v1580, %v1623
  %1625 = vmatmul.f32.gmra.mxu0 %v1477
  %v1626 = vpop.f32.mrf.mxu0
  %v1627 = vadd.f32 %v1583, %v1626
  %1628 = vmatmul.f32.gmra.mxu0 %v1479
  %v1629 = vpop.f32.mrf.mxu0
  %v1630 = vadd.f32 %v1586, %v1629
  %1631 = vmatmul.f32.gmra.mxu0 %v1481
  %v1632 = vpop.f32.mrf.mxu0
  %v1633 = vadd.f32 %v1589, %v1632
  %1634 = vmatmul.f32.gmra.mxu0 %v1483
  %v1635 = vpop.f32.mrf.mxu0
  %v1636 = vadd.f32 %v1592, %v1635
  %1637 = vmatmul.f32.gmra.mxu0 %v1485
  %v1638 = vpop.f32.mrf.mxu0
  %v1639 = vadd.f32 %v1595, %v1638
  %1640 = vmatmul.f32.gmra.mxu0 %v1487
  %v1641 = vpop.f32.mrf.mxu0
  %v1642 = vadd.f32 %v1598, %v1641
  %1643 = vmatmul.f32.gmra.mxu0 %v1489
  %v1644 = vpop.f32.mrf.mxu0
  %v1645 = vadd.f32 %v1601, %v1644
  %1646 = vmatmul.f32.gmra.mxu0 %v1491
  %v1647 = vpop.f32.mrf.mxu0
  %v1648 = vadd.f32 %v1604, %v1647
  %1649 = vdwg.mxu0
  %1650 = vmatpush.msra.mxu0 %v1523
  %1651 = vmatpush.msra.mxu0 %v1521
  %1652 = vmatpush.msra.mxu0 %v1519
  %1653 = vmatpush.msra.mxu0 %v1517
  %1654 = vmatpush.msra.mxu0 %v1515
  %1655 = vmatpush.msra.mxu0 %v1513
  %1656 = vmatpush.msra.mxu0 %v1511
  %1657 = vmatpush.msra.mxu0 %v1509
  %1658 = vmatpush.msra.mxu0 %v1507
  %1659 = vmatpush.msra.mxu0 %v1505
  %1660 = vmatpush.msra.mxu0 %v1503
  %1661 = vmatpush.msra.mxu0 %v1501
  %1662 = vmatpush.msra.mxu0 %v1499
  %1663 = vmatpush.msra.mxu0 %v1497
  %1664 = vmatpush.msra.mxu0 %v1495
  %1665 = vmatpush.msra.mxu0 %v1493
  %1666 = vmatmul.f32.gmra.mxu0 %v1474
  %v1667 = vpop.f32.mrf.mxu0
  %v1668 = vadd.f32 %v1559, %v1667
  %1669 = vmatmul.f32.gmra.mxu0 %v1476
  %v1670 = vpop.f32.mrf.mxu0
  %v1671 = vadd.f32 %v1559, %v1670
  %1672 = vmatmul.f32.gmra.mxu0 %v1478
  %v1673 = vpop.f32.mrf.mxu0
  %v1674 = vadd.f32 %v1559, %v1673
  %1675 = vmatmul.f32.gmra.mxu0 %v1480
  %v1676 = vpop.f32.mrf.mxu0
  %v1677 = vadd.f32 %v1559, %v1676
  %1678 = vmatmul.f32.gmra.mxu0 %v1482
  %v1679 = vpop.f32.mrf.mxu0
  %v1680 = vadd.f32 %v1559, %v1679
  %1681 = vmatmul.f32.gmra.mxu0 %v1484
  %v1682 = vpop.f32.mrf.mxu0
  %v1683 = vadd.f32 %v1559, %v1682
  %1684 = vmatmul.f32.gmra.mxu0 %v1486
  %v1685 = vpop.f32.mrf.mxu0
  %v1686 = vadd.f32 %v1559, %v1685
  %1687 = vmatmul.f32.gmra.mxu0 %v1488
  %v1688 = vpop.f32.mrf.mxu0
  %v1689 = vadd.f32 %v1559, %v1688
  %1690 = vmatmul.f32.gmra.mxu0 %v1490
  %v1691 = vpop.f32.mrf.mxu0
  %v1692 = vadd.f32 %v1559, %v1691
  %1693 = vdwg.mxu0
  %1694 = vmatpush.msra.mxu0 %v1555
  %1695 = vmatpush.msra.mxu0 %v1553
  %1696 = vmatpush.msra.mxu0 %v1551
  %1697 = vmatpush.msra.mxu0 %v1549
  %1698 = vmatpush.msra.mxu0 %v1547
  %1699 = vmatpush.msra.mxu0 %v1545
  %1700 = vmatpush.msra.mxu0 %v1543
  %1701 = vmatpush.msra.mxu0 %v1541
  %1702 = vmatpush.msra.mxu0 %v1539
  %1703 = vmatpush.msra.mxu0 %v1537
  %1704 = vmatpush.msra.mxu0 %v1535
  %1705 = vmatpush.msra.mxu0 %v1533
  %1706 = vmatpush.msra.mxu0 %v1531
  %1707 = vmatpush.msra.mxu0 %v1529
  %1708 = vmatpush.msra.mxu0 %v1527
  %1709 = vmatpush.msra.mxu0 %v1525
  %1710 = vmatmul.f32.gmra.mxu0 %v1475
  %v1711 = vpop.f32.mrf.mxu0
  %v1712 = vadd.f32 %v1668, %v1711
  %1713 = vmatmul.f32.gmra.mxu0 %v1477
  %v1714 = vpop.f32.mrf.mxu0
  %v1715 = vadd.f32 %v1671, %v1714
  %1716 = vmatmul.f32.gmra.mxu0 %v1479
  %v1717 = vpop.f32.mrf.mxu0
  %v1718 = vadd.f32 %v1674, %v1717
  %1719 = vmatmul.f32.gmra.mxu0 %v1481
  %v1720 = vpop.f32.mrf.mxu0
  %v1721 = vadd.f32 %v1677, %v1720
  %1722 = vmatmul.f32.gmra.mxu0 %v1483
  %v1723 = vpop.f32.mrf.mxu0
  %v1724 = vadd.f32 %v1680, %v1723
  %1725 = vmatmul.f32.gmra.mxu0 %v1485
  %v1726 = vpop.f32.mrf.mxu0
  %v1727 = vadd.f32 %v1683, %v1726
  %1728 = vmatmul.f32.gmra.mxu0 %v1487
  %v1729 = vpop.f32.mrf.mxu0
  %v1730 = vadd.f32 %v1686, %v1729
  %1731 = vmatmul.f32.gmra.mxu0 %v1489
  %v1732 = vpop.f32.mrf.mxu0
  %v1733 = vadd.f32 %v1689, %v1732
  %1734 = vmatmul.f32.gmra.mxu0 %v1491
  %v1735 = vpop.f32.mrf.mxu0
  %v1736 = vadd.f32 %v1692, %v1735
  %1737 = vdwg.mxu0
  %v1738 = vmax.f32 %v1712, 0.0
  %v1739 = vmax.f32 %v1715, 0.0
  %v1740 = vmax.f32 %v1718, 0.0
  %v1741 = vmax.f32 %v1721, 0.0
  %v1742 = vmax.f32 %v1724, 0.0
  %v1743 = vmax.f32 %v1727, 0.0
  %v1744 = vmax.f32 %v1730, 0.0
  %v1745 = vmax.f32 %v1733, 0.0
  %v1746 = vmax.f32 %v1736, 0.0
  %v1747 = vld [vmem:[%s6] sm:$0xff]
  %v1748 = vld [vmem:[%s6 + $0x8] sm:$0xff]
  %v1749 = vld [vmem:[%s6 + $0x10] sm:$0xff]
  %v1750 = vld [vmem:[%s6 + $0x18] sm:$0xff]
  %v1751 = vld [vmem:[%s6 + $0x20] sm:$0xff]
  %v1752 = vld [vmem:[%s6 + $0x28] sm:$0xff]
  %v1753 = vld [vmem:[%s6 + $0x30] sm:$0xff]
  %v1754 = vld [vmem:[%s6 + $0x38] sm:$0xff]
  %v1755 = vld [vmem:[%s12 + $0x8] sm:$0x1]
  %v1757 = vperm.slane %v1755, 0
  %1768 = vrot.lane.b32.xlu0 %v1738, 64
  %v1769 = vpop.permute.xlu0 %1768
  %1770 = vrot.lane.b32.xlu0 %v1739, 64
  %v1771 = vpop.permute.xlu0 %1770
  %1772 = vrot.lane.b32.xlu0 %v1740, 64
  %v1773 = vpop.permute.xlu0 %1772
  %1774 = vrot.lane.b32.xlu0 %v1741, 64
  %v1775 = vpop.permute.xlu0 %1774
  %1776 = vrot.lane.b32.xlu0 %v1742, 64
  %v1777 = vpop.permute.xlu0 %1776
  %1778 = vrot.lane.b32.xlu0 %v1743, 64
  %v1779 = vpop.permute.xlu0 %1778
  %1780 = vrot.lane.b32.xlu0 %v1744, 64
  %v1781 = vpop.permute.xlu0 %1780
  %1782 = vrot.lane.b32.xlu0 %v1745, 64
  %v1783 = vpop.permute.xlu0 %1782
  %1784 = vrot.lane.b32.xlu0 %v1746, 64
  %v1785 = vpop.permute.xlu0 %1784
  %vm1786 = vcmask 523264
  %v1787 = vsel %vm1786, %v1769, 0
  %v1789 = vsel %vm1786, %v1771, 0
  %v1791 = vsel %vm1786, %v1773, 0
  %v1793 = vsel %vm1786, %v1775, 0
  %v1795 = vsel %vm1786, %v1777, 0
  %v1797 = vsel %vm1786, %v1779, 0
  %v1799 = vsel %vm1786, %v1781, 0
  %v1801 = vsel %vm1786, %v1783, 0
  %v1803 = vsel %vm1786, %v1785, 0
  %1805 = vmatpush.msra.mxu0 0.0
  %1806 = vmatpush.msra.mxu0 0.0
  %1807 = vmatpush.msra.mxu0 0.0
  %1808 = vmatpush.msra.mxu0 0.0
  %1809 = vmatpush.msra.mxu0 0.0
  %1810 = vmatpush.msra.mxu0 0.0
  %1811 = vmatpush.msra.mxu0 0.0
  %1812 = vmatpush.msra.mxu0 0.0
  %1813 = vmatpush.msra.mxu0 %v1754
  %1814 = vmatpush.msra.mxu0 %v1753
  %1815 = vmatpush.msra.mxu0 %v1752
  %1816 = vmatpush.msra.mxu0 %v1751
  %1817 = vmatpush.msra.mxu0 %v1750
  %1818 = vmatpush.msra.mxu0 %v1749
  %1819 = vmatpush.msra.mxu0 %v1748
  %1820 = vmatpush.msra.mxu0 %v1747
  %1821 = vmatmul.f32.gmra.mxu0 %v1787
  %v1822 = vpop.f32.mrf.mxu0
  %v1823 = vadd.f32 %v1757, %v1822
  %1824 = vmatmul.f32.gmra.mxu0 %v1789
  %v1825 = vpop.f32.mrf.mxu0
  %v1826 = vadd.f32 %v1757, %v1825
  %1827 = vmatmul.f32.gmra.mxu0 %v1791
  %v1828 = vpop.f32.mrf.mxu0
  %v1829 = vadd.f32 %v1757, %v1828
  %1830 = vmatmul.f32.gmra.mxu0 %v1793
  %v1831 = vpop.f32.mrf.mxu0
  %v1832 = vadd.f32 %v1757, %v1831
  %1833 = vmatmul.f32.gmra.mxu0 %v1795
  %v1834 = vpop.f32.mrf.mxu0
  %v1835 = vadd.f32 %v1757, %v1834
  %1836 = vmatmul.f32.gmra.mxu0 %v1797
  %v1837 = vpop.f32.mrf.mxu0
  %v1838 = vadd.f32 %v1757, %v1837
  %1839 = vmatmul.f32.gmra.mxu0 %v1799
  %v1840 = vpop.f32.mrf.mxu0
  %v1841 = vadd.f32 %v1757, %v1840
  %1842 = vmatmul.f32.gmra.mxu0 %v1801
  %v1843 = vpop.f32.mrf.mxu0
  %v1844 = vadd.f32 %v1757, %v1843
  %1845 = vmatmul.f32.gmra.mxu0 %v1803
  %v1846 = vpop.f32.mrf.mxu0
  %v1847 = vadd.f32 %v1757, %v1846
  %1848 = vdwg.mxu0
  %v1849 = vmax.f32 %v1823, 0.0
  %v1850 = vmax.f32 %v1826, 0.0
  %v1851 = vmax.f32 %v1829, 0.0
  %v1852 = vmax.f32 %v1832, 0.0
  %v1853 = vmax.f32 %v1835, 0.0
  %v1854 = vmax.f32 %v1838, 0.0
  %v1855 = vmax.f32 %v1841, 0.0
  %v1856 = vmax.f32 %v1844, 0.0
  %v1857 = vmax.f32 %v1847, 0.0
  %v1858 = vld [vmem:[%s7] sm:$0xff]
  %v1859 = vld [vmem:[%s7 + $0x8] sm:$0xff]
  %v1860 = vld [vmem:[%s7 + $0x10] sm:$0xff]
  %v1861 = vld [vmem:[%s7 + $0x18] sm:$0xff]
  %v1862 = vld [vmem:[%s7 + $0x20] sm:$0xff]
  %v1863 = vld [vmem:[%s7 + $0x28] sm:$0xff]
  %v1864 = vld [vmem:[%s7 + $0x30] sm:$0xff]
  %v1865 = vld [vmem:[%s7 + $0x38] sm:$0xff]
  %v1866 = vld [vmem:[%s12 + $0x9] sm:$0x1]
  %v1868 = vperm.slane %v1866, 0
  %v1871 = vsel %vm1786, %v1849, 0
  %v1874 = vsel %vm1786, %v1850, 0
  %v1877 = vsel %vm1786, %v1851, 0
  %v1880 = vsel %vm1786, %v1852, 0
  %v1883 = vsel %vm1786, %v1853, 0
  %v1886 = vsel %vm1786, %v1854, 0
  %v1889 = vsel %vm1786, %v1855, 0
  %v1892 = vsel %vm1786, %v1856, 0
  %v1895 = vsel %vm1786, %v1857, 0
  %1897 = vmatpush.msra.mxu0 0.0
  %1898 = vmatpush.msra.mxu0 0.0
  %1899 = vmatpush.msra.mxu0 0.0
  %1900 = vmatpush.msra.mxu0 0.0
  %1901 = vmatpush.msra.mxu0 0.0
  %1902 = vmatpush.msra.mxu0 0.0
  %1903 = vmatpush.msra.mxu0 0.0
  %1904 = vmatpush.msra.mxu0 0.0
  %1905 = vmatpush.msra.mxu0 %v1865
  %1906 = vmatpush.msra.mxu0 %v1864
  %1907 = vmatpush.msra.mxu0 %v1863
  %1908 = vmatpush.msra.mxu0 %v1862
  %1909 = vmatpush.msra.mxu0 %v1861
  %1910 = vmatpush.msra.mxu0 %v1860
  %1911 = vmatpush.msra.mxu0 %v1859
  %1912 = vmatpush.msra.mxu0 %v1858
  %1913 = vmatmul.f32.gmra.mxu0 %v1871
  %v1914 = vpop.f32.mrf.mxu0
  %v1915 = vadd.f32 %v1868, %v1914
  %1916 = vmatmul.f32.gmra.mxu0 %v1874
  %v1917 = vpop.f32.mrf.mxu0
  %v1918 = vadd.f32 %v1868, %v1917
  %1919 = vmatmul.f32.gmra.mxu0 %v1877
  %v1920 = vpop.f32.mrf.mxu0
  %v1921 = vadd.f32 %v1868, %v1920
  %1922 = vmatmul.f32.gmra.mxu0 %v1880
  %v1923 = vpop.f32.mrf.mxu0
  %v1924 = vadd.f32 %v1868, %v1923
  %1925 = vmatmul.f32.gmra.mxu0 %v1883
  %v1926 = vpop.f32.mrf.mxu0
  %v1927 = vadd.f32 %v1868, %v1926
  %1928 = vmatmul.f32.gmra.mxu0 %v1886
  %v1929 = vpop.f32.mrf.mxu0
  %v1930 = vadd.f32 %v1868, %v1929
  %1931 = vmatmul.f32.gmra.mxu0 %v1889
  %v1932 = vpop.f32.mrf.mxu0
  %v1933 = vadd.f32 %v1868, %v1932
  %1934 = vmatmul.f32.gmra.mxu0 %v1892
  %v1935 = vpop.f32.mrf.mxu0
  %v1936 = vadd.f32 %v1868, %v1935
  %1937 = vmatmul.f32.gmra.mxu0 %v1895
  %v1938 = vpop.f32.mrf.mxu0
  %v1939 = vadd.f32 %v1868, %v1938
  %1940 = vdwg.mxu0
  %v1941 = vtanh.pop %v1915
  %v1942 = vtanh.pop %v1918
  %v1943 = vtanh.pop %v1921
  %v1944 = vtanh.pop %v1924
  %v1945 = vtanh.pop %v1927
  %v1946 = vtanh.pop %v1930
  %v1947 = vtanh.pop %v1933
  %v1948 = vtanh.pop %v1936
  %v1949 = vtanh.pop %v1939
  %v1950 = vld [vmem:[%s1] sm:$0xff]
  %v1951 = vld [vmem:[%s1 + $0x8] sm:$0xff]
  %v1952 = vld [vmem:[%s1 + $0x10] sm:$0xff]
  %v1953 = vld [vmem:[%s1 + $0x18] sm:$0xff]
  %v1954 = vld [vmem:[%s1 + $0x20] sm:$0xff]
  %v1955 = vld [vmem:[%s1 + $0x28] sm:$0xff]
  %v1956 = vld [vmem:[%s1 + $0x30] sm:$0xff]
  %v1957 = vld [vmem:[%s1 + $0x38] sm:$0xff]
  %v1958 = vld [vmem:[%s1 + $0x40] sm:$0xff]
  %1968 = vrot.lane.b32.xlu0 %v1950, 8
  %v1969 = vpop.permute.xlu0 %1968
  %1970 = vrot.lane.b32.xlu0 %v1951, 8
  %v1971 = vpop.permute.xlu0 %1970
  %1972 = vrot.lane.b32.xlu0 %v1952, 8
  %v1973 = vpop.permute.xlu0 %1972
  %1974 = vrot.lane.b32.xlu0 %v1953, 8
  %v1975 = vpop.permute.xlu0 %1974
  %1976 = vrot.lane.b32.xlu0 %v1954, 8
  %v1977 = vpop.permute.xlu0 %1976
  %1978 = vrot.lane.b32.xlu0 %v1955, 8
  %v1979 = vpop.permute.xlu0 %1978
  %1980 = vrot.lane.b32.xlu0 %v1956, 8
  %v1981 = vpop.permute.xlu0 %1980
  %1982 = vrot.lane.b32.xlu0 %v1957, 8
  %v1983 = vpop.permute.xlu0 %1982
  %1984 = vrot.lane.b32.xlu0 %v1958, 8
  %v1985 = vpop.permute.xlu0 %1984
  %vm1995 = vcmask 64512
  %v1996 = vsel %vm1995, %v1941, %v1969
  %v1997 = vsel %vm1995, %v1942, %v1971
  %v1998 = vsel %vm1995, %v1943, %v1973
  %v1999 = vsel %vm1995, %v1944, %v1975
  %v2000 = vsel %vm1995, %v1945, %v1977
  %v2001 = vsel %vm1995, %v1946, %v1979
  %v2002 = vsel %vm1995, %v1947, %v1981
  %v2003 = vsel %vm1995, %v1948, %v1983
  %v2004 = vsel %vm1995, %v1949, %v1985
  %v2005 = vld [vmem:[%s8] sm:$0xff]
  %v2006 = vld [vmem:[%s8 + $0x8] sm:$0xf]
  %v2007 = vld [vmem:[%s12 + $0xa] sm:$0x1]
  %v2009 = vperm.slane %v2007, 0
  %vm2011 = vcmask 97280
  %v2013 = vsel %vm2011, %v1996, 0
  %v2016 = vsel %vm2011, %v1997, 0
  %v2019 = vsel %vm2011, %v1998, 0
  %v2022 = vsel %vm2011, %v1999, 0
  %v2025 = vsel %vm2011, %v2000, 0
  %v2028 = vsel %vm2011, %v2001, 0
  %v2031 = vsel %vm2011, %v2002, 0
  %v2034 = vsel %vm2011, %v2003, 0
  %v2037 = vsel %vm2011, %v2004, 0
  %vm2039 = vcmask 1043456
  %v2041 = vsel %vm2039, %v2006, 0
  %2043 = vmatpush.msra.mxu0 0.0
  %2044 = vmatpush.msra.mxu0 0.0
  %2045 = vmatpush.msra.mxu0 0.0
  %2046 = vmatpush.msra.mxu0 0.0
  %2047 = vmatpush.msra.mxu0 0.0
  %2048 = vmatpush.msra.mxu0 0.0
  %2049 = vmatpush.msra.mxu0 0.0
  %2050 = vmatpush.msra.mxu0 0.0
  %2051 = vmatpush.msra.mxu0 0.0
  %2052 = vmatpush.msra.mxu0 0.0
  %2053 = vmatpush.msra.mxu0 0.0
  %2054 = vmatpush.msra.mxu0 0.0
  %2055 = vmatpush.msra.mxu0 0.0
  %2056 = vmatpush.msra.mxu0 0.0
  %2057 = vmatpush.msra.mxu0 %v2041
  %2058 = vmatpush.msra.mxu0 %v2005
  %2059 = vmatmul.f32.gmra.mxu0 %v2013
  %v2060 = vpop.f32.mrf.mxu0
  %v2061 = vadd.f32 %v2009, %v2060
  %2062 = vmatmul.f32.gmra.mxu0 %v2016
  %v2063 = vpop.f32.mrf.mxu0
  %v2064 = vadd.f32 %v2009, %v2063
  %2065 = vmatmul.f32.gmra.mxu0 %v2019
  %v2066 = vpop.f32.mrf.mxu0
  %v2067 = vadd.f32 %v2009, %v2066
  %2068 = vmatmul.f32.gmra.mxu0 %v2022
  %v2069 = vpop.f32.mrf.mxu0
  %v2070 = vadd.f32 %v2009, %v2069
  %2071 = vmatmul.f32.gmra.mxu0 %v2025
  %v2072 = vpop.f32.mrf.mxu0
  %v2073 = vadd.f32 %v2009, %v2072
  %2074 = vmatmul.f32.gmra.mxu0 %v2028
  %v2075 = vpop.f32.mrf.mxu0
  %v2076 = vadd.f32 %v2009, %v2075
  %2077 = vmatmul.f32.gmra.mxu0 %v2031
  %v2078 = vpop.f32.mrf.mxu0
  %v2079 = vadd.f32 %v2009, %v2078
  %2080 = vmatmul.f32.gmra.mxu0 %v2034
  %v2081 = vpop.f32.mrf.mxu0
  %v2082 = vadd.f32 %v2009, %v2081
  %2083 = vmatmul.f32.gmra.mxu0 %v2037
  %v2084 = vpop.f32.mrf.mxu0
  %v2085 = vadd.f32 %v2009, %v2084
  %2086 = vdwg.mxu0
  %v2087 = vmax.f32 %v2061, 0.0
  %v2088 = vmax.f32 %v2064, 0.0
  %v2089 = vmax.f32 %v2067, 0.0
  %v2090 = vmax.f32 %v2070, 0.0
  %v2091 = vmax.f32 %v2073, 0.0
  %v2092 = vmax.f32 %v2076, 0.0
  %v2093 = vmax.f32 %v2079, 0.0
  %v2094 = vmax.f32 %v2082, 0.0
  %v2095 = vmax.f32 %v2085, 0.0
  %v2096 = vld [vmem:[%s9] sm:$0xff]
  %v2097 = vld [vmem:[%s9 + $0x8] sm:$0xff]
  %v2098 = vld [vmem:[%s9 + $0x10] sm:$0xff]
  %v2099 = vld [vmem:[%s9 + $0x18] sm:$0xff]
  %v2100 = vld [vmem:[%s9 + $0x20] sm:$0xff]
  %v2101 = vld [vmem:[%s9 + $0x28] sm:$0xff]
  %vm2102 = vcmask 195584
  %v2104 = vsel %vm2102, %v2087, 0
  %v2107 = vsel %vm2102, %v2088, 0
  %v2110 = vsel %vm2102, %v2089, 0
  %v2113 = vsel %vm2102, %v2090, 0
  %v2116 = vsel %vm2102, %v2091, 0
  %v2119 = vsel %vm2102, %v2092, 0
  %v2122 = vsel %vm2102, %v2093, 0
  %v2125 = vsel %vm2102, %v2094, 0
  %v2128 = vsel %vm2102, %v2095, 0
  %2130 = vmatpush.msra.mxu0 0.0
  %2131 = vmatpush.msra.mxu0 0.0
  %2132 = vmatpush.msra.mxu0 0.0
  %2133 = vmatpush.msra.mxu0 0.0
  %2134 = vmatpush.msra.mxu0 0.0
  %2135 = vmatpush.msra.mxu0 0.0
  %2136 = vmatpush.msra.mxu0 0.0
  %2137 = vmatpush.msra.mxu0 0.0
  %2138 = vmatpush.msra.mxu0 0.0
  %2139 = vmatpush.msra.mxu0 0.0
  %2140 = vmatpush.msra.mxu0 0.0
  %2141 = vmatpush.msra.mxu0 0.0
  %2142 = vmatpush.msra.mxu0 0.0
  %2143 = vmatpush.msra.mxu0 %v2100
  %2144 = vmatpush.msra.mxu0 %v2098
  %2145 = vmatpush.msra.mxu0 %v2096
  %2146 = vmatmul.f32.gmra.mxu0 %v2104
  %v2147 = vpop.f32.mrf.mxu0
  %v2148 = vadd.f32 0.0, %v2147
  %2149 = vmatmul.f32.gmra.mxu0 %v2107
  %v2150 = vpop.f32.mrf.mxu0
  %v2151 = vadd.f32 0.0, %v2150
  %2152 = vmatmul.f32.gmra.mxu0 %v2110
  %v2153 = vpop.f32.mrf.mxu0
  %v2154 = vadd.f32 0.0, %v2153
  %2155 = vmatmul.f32.gmra.mxu0 %v2113
  %v2156 = vpop.f32.mrf.mxu0
  %v2157 = vadd.f32 0.0, %v2156
  %2158 = vmatmul.f32.gmra.mxu0 %v2116
  %v2159 = vpop.f32.mrf.mxu0
  %v2160 = vadd.f32 0.0, %v2159
  %2161 = vmatmul.f32.gmra.mxu0 %v2119
  %v2162 = vpop.f32.mrf.mxu0
  %v2163 = vadd.f32 0.0, %v2162
  %2164 = vmatmul.f32.gmra.mxu0 %v2122
  %v2165 = vpop.f32.mrf.mxu0
  %v2166 = vadd.f32 0.0, %v2165
  %2167 = vmatmul.f32.gmra.mxu0 %v2125
  %v2168 = vpop.f32.mrf.mxu0
  %v2169 = vadd.f32 0.0, %v2168
  %2170 = vmatmul.f32.gmra.mxu0 %v2128
  %v2171 = vpop.f32.mrf.mxu0
  %v2172 = vadd.f32 0.0, %v2171
  %2173 = vdwg.mxu0
  %2174 = vmatpush.msra.mxu0 0.0
  %2175 = vmatpush.msra.mxu0 0.0
  %2176 = vmatpush.msra.mxu0 0.0
  %2177 = vmatpush.msra.mxu0 0.0
  %2178 = vmatpush.msra.mxu0 0.0
  %2179 = vmatpush.msra.mxu0 0.0
  %2180 = vmatpush.msra.mxu0 0.0
  %2181 = vmatpush.msra.mxu0 0.0
  %2182 = vmatpush.msra.mxu0 0.0
  %2183 = vmatpush.msra.mxu0 0.0
  %2184 = vmatpush.msra.mxu0 0.0
  %2185 = vmatpush.msra.mxu0 0.0
  %2186 = vmatpush.msra.mxu0 0.0
  %2187 = vmatpush.msra.mxu0 %v2101
  %2188 = vmatpush.msra.mxu0 %v2099
  %2189 = vmatpush.msra.mxu0 %v2097
  %2190 = vmatmul.f32.gmra.mxu0 %v2104
  %v2191 = vpop.f32.mrf.mxu0
  %v2192 = vadd.f32 0.0, %v2191
  %2193 = vmatmul.f32.gmra.mxu0 %v2107
  %v2194 = vpop.f32.mrf.mxu0
  %v2195 = vadd.f32 0.0, %v2194
  %2196 = vmatmul.f32.gmra.mxu0 %v2110
  %v2197 = vpop.f32.mrf.mxu0
  %v2198 = vadd.f32 0.0, %v2197
  %2199 = vmatmul.f32.gmra.mxu0 %v2113
  %v2200 = vpop.f32.mrf.mxu0
  %v2201 = vadd.f32 0.0, %v2200
  %2202 = vmatmul.f32.gmra.mxu0 %v2116
  %v2203 = vpop.f32.mrf.mxu0
  %v2204 = vadd.f32 0.0, %v2203
  %2205 = vmatmul.f32.gmra.mxu0 %v2119
  %v2206 = vpop.f32.mrf.mxu0
  %v2207 = vadd.f32 0.0, %v2206
  %2208 = vmatmul.f32.gmra.mxu0 %v2122
  %v2209 = vpop.f32.mrf.mxu0
  %v2210 = vadd.f32 0.0, %v2209
  %2211 = vmatmul.f32.gmra.mxu0 %v2125
  %v2212 = vpop.f32.mrf.mxu0
  %v2213 = vadd.f32 0.0, %v2212
  %2214 = vmatmul.f32.gmra.mxu0 %v2128
  %v2215 = vpop.f32.mrf.mxu0
  %v2216 = vadd.f32 0.0, %v2215
  %2217 = vdwg.mxu0
  %v2218 = vadd.f32 %v1624, %v2148
  %v2219 = vadd.f32 %v1712, %v2192
  %v2220 = vadd.f32 %v1627, %v2151
  %v2221 = vadd.f32 %v1715, %v2195
  %v2222 = vadd.f32 %v1630, %v2154
  %v2223 = vadd.f32 %v1718, %v2198
  %v2224 = vadd.f32 %v1633, %v2157
  %v2225 = vadd.f32 %v1721, %v2201
  %v2226 = vadd.f32 %v1636, %v2160
  %v2227 = vadd.f32 %v1724, %v2204
  %v2228 = vadd.f32 %v1639, %v2163
  %v2229 = vadd.f32 %v1727, %v2207
  %v2230 = vadd.f32 %v1642, %v2166
  %v2231 = vadd.f32 %v1730, %v2210
  %v2232 = vadd.f32 %v1645, %v2169
  %v2233 = vadd.f32 %v1733, %v2213
  %v2234 = vadd.f32 %v1648, %v2172
  %v2235 = vadd.f32 %v1736, %v2216
  %v2236 = vmax.f32 %v2218, 0.0
  %v2237 = vmax.f32 %v2219, 0.0
  %v2238 = vmax.f32 %v2220, 0.0
  %v2239 = vmax.f32 %v2221, 0.0
  %v2240 = vmax.f32 %v2222, 0.0
  %v2241 = vmax.f32 %v2223, 0.0
  %v2242 = vmax.f32 %v2224, 0.0
  %v2243 = vmax.f32 %v2225, 0.0
  %v2244 = vmax.f32 %v2226, 0.0
  %v2245 = vmax.f32 %v2227, 0.0
  %v2246 = vmax.f32 %v2228, 0.0
  %v2247 = vmax.f32 %v2229, 0.0
  %v2248 = vmax.f32 %v2230, 0.0
  %v2249 = vmax.f32 %v2231, 0.0
  %v2250 = vmax.f32 %v2232, 0.0
  %v2251 = vmax.f32 %v2233, 0.0
  %v2252 = vmax.f32 %v2234, 0.0
  %v2253 = vmax.f32 %v2235, 0.0
  %v2254 = vld [vmem:[%s10] sm:$0xff]
  %v2255 = vld [vmem:[%s10 + $0x8] sm:$0xff]
  %v2256 = vld [vmem:[%s10 + $0x10] sm:$0xff]
  %v2257 = vld [vmem:[%s10 + $0x18] sm:$0xff]
  %v2258 = vld [vmem:[%s10 + $0x20] sm:$0xff]
  %v2259 = vld [vmem:[%s10 + $0x28] sm:$0xff]
  %v2260 = vld [vmem:[%s10 + $0x30] sm:$0xff]
  %v2261 = vld [vmem:[%s10 + $0x38] sm:$0xff]
  %v2262 = vld [vmem:[%s10 + $0x40] sm:$0xff]
  %v2263 = vld [vmem:[%s10 + $0x48] sm:$0xff]
  %v2264 = vld [vmem:[%s10 + $0x50] sm:$0xff]
  %v2265 = vld [vmem:[%s10 + $0x58] sm:$0xff]
  %v2266 = vld [vmem:[%s10 + $0x60] sm:$0xff]
  %v2267 = vld [vmem:[%s10 + $0x68] sm:$0xff]
  %v2268 = vld [vmem:[%s10 + $0x70] sm:$0xff]
  %v2269 = vld [vmem:[%s10 + $0x78] sm:$0xff]
  %v2270 = vld [vmem:[%s10 + $0x80] sm:$0xff]
  %v2271 = vld [vmem:[%s10 + $0x88] sm:$0xff]
  %v2272 = vld [vmem:[%s10 + $0x90] sm:$0xff]
  %v2273 = vld [vmem:[%s10 + $0x98] sm:$0xff]
  %v2274 = vld [vmem:[%s10 + $0xa0] sm:$0xff]
  %v2275 = vld [vmem:[%s10 + $0xa8] sm:$0xff]
  %v2276 = vld [vmem:[%s10 + $0xb0] sm:$0xff]
  %v2277 = vld [vmem:[%s10 + $0xb8] sm:$0xff]
  %v2278 = vld [vmem:[%s10 + $0xc0] sm:$0xff]
  %v2279 = vld [vmem:[%s10 + $0xc8] sm:$0xff]
  %v2280 = vld [vmem:[%s10 + $0xd0] sm:$0xff]
  %v2281 = vld [vmem:[%s10 + $0xd8] sm:$0xff]
  %v2282 = vld [vmem:[%s10 + $0xe0] sm:$0xff]
  %v2283 = vld [vmem:[%s10 + $0xe8] sm:$0xff]
  %v2284 = vld [vmem:[%s10 + $0xf0] sm:$0xff]
  %v2285 = vld [vmem:[%s10 + $0xf8] sm:$0xff]
  %v2286 = vld [vmem:[%s10 + $0x100] sm:$0xff]
  %v2287 = vld [vmem:[%s10 + $0x108] sm:$0xff]
  %v2288 = vld [vmem:[%s10 + $0x110] sm:$0xff]
  %v2289 = vld [vmem:[%s10 + $0x118] sm:$0xff]
  %v2290 = vld [vmem:[%s10 + $0x120] sm:$0xff]
  %v2291 = vld [vmem:[%s10 + $0x128] sm:$0xff]
  %v2292 = vld [vmem:[%s10 + $0x130] sm:$0xff]
  %v2293 = vld [vmem:[%s10 + $0x138] sm:$0xff]
  %v2294 = vld [vmem:[%s10 + $0x140] sm:$0xff]
  %v2295 = vld [vmem:[%s10 + $0x148] sm:$0xff]
  %v2296 = vld [vmem:[%s10 + $0x150] sm:$0xff]
  %v2297 = vld [vmem:[%s10 + $0x158] sm:$0xff]
  %v2298 = vld [vmem:[%s10 + $0x160] sm:$0xff]
  %v2299 = vld [vmem:[%s10 + $0x168] sm:$0xff]
  %v2300 = vld [vmem:[%s10 + $0x170] sm:$0xff]
  %v2301 = vld [vmem:[%s10 + $0x178] sm:$0xff]
  %v2302 = vld [vmem:[%s12 + $0xb] sm:$0x3]
  %v2304 = vperm.slane %v2302, 0
  %v2305 = vperm.slane %v2302, 1
  %v2309 = vsel %vm1786, %v2237, 0
  %v2312 = vsel %vm1786, %v2239, 0
  %v2315 = vsel %vm1786, %v2241, 0
  %v2318 = vsel %vm1786, %v2243, 0
  %v2321 = vsel %vm1786, %v2245, 0
  %v2324 = vsel %vm1786, %v2247, 0
  %v2327 = vsel %vm1786, %v2249, 0
  %v2330 = vsel %vm1786, %v2251, 0
  %v2333 = vsel %vm1786, %v2253, 0
  %2335 = vmatpush.msra.mxu0 %v2284
  %2336 = vmatpush.msra.mxu0 %v2282
  %2337 = vmatpush.msra.mxu0 %v2280
  %2338 = vmatpush.msra.mxu0 %v2278
  %2339 = vmatpush.msra.mxu0 %v2276
  %2340 = vmatpush.msra.mxu0 %v2274
  %2341 = vmatpush.msra.mxu0 %v2272
  %2342 = vmatpush.msra.mxu0 %v2270
  %2343 = vmatpush.msra.mxu0 %v2268
  %2344 = vmatpush.msra.mxu0 %v2266
  %2345 = vmatpush.msra.mxu0 %v2264
  %2346 = vmatpush.msra.mxu0 %v2262
  %2347 = vmatpush.msra.mxu0 %v2260
  %2348 = vmatpush.msra.mxu0 %v2258
  %2349 = vmatpush.msra.mxu0 %v2256
  %2350 = vmatpush.msra.mxu0 %v2254
  %2351 = vmatmul.f32.gmra.mxu0 %v2236
  %v2352 = vpop.f32.mrf.mxu0
  %v2353 = vadd.f32 %v2304, %v2352
  %2354 = vmatmul.f32.gmra.mxu0 %v2238
  %v2355 = vpop.f32.mrf.mxu0
  %v2356 = vadd.f32 %v2304, %v2355
  %2357 = vmatmul.f32.gmra.mxu0 %v2240
  %v2358 = vpop.f32.mrf.mxu0
  %v2359 = vadd.f32 %v2304, %v2358
  %2360 = vmatmul.f32.gmra.mxu0 %v2242
  %v2361 = vpop.f32.mrf.mxu0
  %v2362 = vadd.f32 %v2304, %v2361
  %2363 = vmatmul.f32.gmra.mxu0 %v2244
  %v2364 = vpop.f32.mrf.mxu0
  %v2365 = vadd.f32 %v2304, %v2364
  %2366 = vmatmul.f32.gmra.mxu0 %v2246
  %v2367 = vpop.f32.mrf.mxu0
  %v2368 = vadd.f32 %v2304, %v2367
  %2369 = vmatmul.f32.gmra.mxu0 %v2248
  %v2370 = vpop.f32.mrf.mxu0
  %v2371 = vadd.f32 %v2304, %v2370
  %2372 = vmatmul.f32.gmra.mxu0 %v2250
  %v2373 = vpop.f32.mrf.mxu0
  %v2374 = vadd.f32 %v2304, %v2373
  %2375 = vmatmul.f32.gmra.mxu0 %v2252
  %v2376 = vpop.f32.mrf.mxu0
  %v2377 = vadd.f32 %v2304, %v2376
  %2378 = vdwg.mxu0
  %2379 = vmatpush.msra.mxu0 0.0
  %2380 = vmatpush.msra.mxu0 0.0
  %2381 = vmatpush.msra.mxu0 0.0
  %2382 = vmatpush.msra.mxu0 0.0
  %2383 = vmatpush.msra.mxu0 0.0
  %2384 = vmatpush.msra.mxu0 0.0
  %2385 = vmatpush.msra.mxu0 0.0
  %2386 = vmatpush.msra.mxu0 0.0
  %2387 = vmatpush.msra.mxu0 %v2300
  %2388 = vmatpush.msra.mxu0 %v2298
  %2389 = vmatpush.msra.mxu0 %v2296
  %2390 = vmatpush.msra.mxu0 %v2294
  %2391 = vmatpush.msra.mxu0 %v2292
  %2392 = vmatpush.msra.mxu0 %v2290
  %2393 = vmatpush.msra.mxu0 %v2288
  %2394 = vmatpush.msra.mxu0 %v2286
  %2395 = vmatmul.f32.gmra.mxu0 %v2309
  %v2396 = vpop.f32.mrf.mxu0
  %v2397 = vadd.f32 %v2353, %v2396
  %2398 = vmatmul.f32.gmra.mxu0 %v2312
  %v2399 = vpop.f32.mrf.mxu0
  %v2400 = vadd.f32 %v2356, %v2399
  %2401 = vmatmul.f32.gmra.mxu0 %v2315
  %v2402 = vpop.f32.mrf.mxu0
  %v2403 = vadd.f32 %v2359, %v2402
  %2404 = vmatmul.f32.gmra.mxu0 %v2318
  %v2405 = vpop.f32.mrf.mxu0
  %v2406 = vadd.f32 %v2362, %v2405
  %2407 = vmatmul.f32.gmra.mxu0 %v2321
  %v2408 = vpop.f32.mrf.mxu0
  %v2409 = vadd.f32 %v2365, %v2408
  %2410 = vmatmul.f32.gmra.mxu0 %v2324
  %v2411 = vpop.f32.mrf.mxu0
  %v2412 = vadd.f32 %v2368, %v2411
  %2413 = vmatmul.f32.gmra.mxu0 %v2327
  %v2414 = vpop.f32.mrf.mxu0
  %v2415 = vadd.f32 %v2371, %v2414
  %2416 = vmatmul.f32.gmra.mxu0 %v2330
  %v2417 = vpop.f32.mrf.mxu0
  %v2418 = vadd.f32 %v2374, %v2417
  %2419 = vmatmul.f32.gmra.mxu0 %v2333
  %v2420 = vpop.f32.mrf.mxu0
  %v2421 = vadd.f32 %v2377, %v2420
  %2422 = vdwg.mxu0
  %2423 = vmatpush.msra.mxu0 %v2285
  %2424 = vmatpush.msra.mxu0 %v2283
  %2425 = vmatpush.msra.mxu0 %v2281
  %2426 = vmatpush.msra.mxu0 %v2279
  %2427 = vmatpush.msra.mxu0 %v2277
  %2428 = vmatpush.msra.mxu0 %v2275
  %2429 = vmatpush.msra.mxu0 %v2273
  %2430 = vmatpush.msra.mxu0 %v2271
  %2431 = vmatpush.msra.mxu0 %v2269
  %2432 = vmatpush.msra.mxu0 %v2267
  %2433 = vmatpush.msra.mxu0 %v2265
  %2434 = vmatpush.msra.mxu0 %v2263
  %2435 = vmatpush.msra.mxu0 %v2261
  %2436 = vmatpush.msra.mxu0 %v2259
  %2437 = vmatpush.msra.mxu0 %v2257
  %2438 = vmatpush.msra.mxu0 %v2255
  %2439 = vmatmul.f32.gmra.mxu0 %v2236
  %v2440 = vpop.f32.mrf.mxu0
  %v2441 = vadd.f32 %v2305, %v2440
  %2442 = vmatmul.f32.gmra.mxu0 %v2238
  %v2443 = vpop.f32.mrf.mxu0
  %v2444 = vadd.f32 %v2305, %v2443
  %2445 = vmatmul.f32.gmra.mxu0 %v2240
  %v2446 = vpop.f32.mrf.mxu0
  %v2447 = vadd.f32 %v2305, %v2446
  %2448 = vmatmul.f32.gmra.mxu0 %v2242
  %v2449 = vpop.f32.mrf.mxu0
  %v2450 = vadd.f32 %v2305, %v2449
  %2451 = vmatmul.f32.gmra.mxu0 %v2244
  %v2452 = vpop.f32.mrf.mxu0
  %v2453 = vadd.f32 %v2305, %v2452
  %2454 = vmatmul.f32.gmra.mxu0 %v2246
  %v2455 = vpop.f32.mrf.mxu0
  %v2456 = vadd.f32 %v2305, %v2455
  %2457 = vmatmul.f32.gmra.mxu0 %v2248
  %v2458 = vpop.f32.mrf.mxu0
  %v2459 = vadd.f32 %v2305, %v2458
  %2460 = vmatmul.f32.gmra.mxu0 %v2250
  %v2461 = vpop.f32.mrf.mxu0
  %v2462 = vadd.f32 %v2305, %v2461
  %2463 = vmatmul.f32.gmra.mxu0 %v2252
  %v2464 = vpop.f32.mrf.mxu0
  %v2465 = vadd.f32 %v2305, %v2464
  %2466 = vdwg.mxu0
  %2467 = vmatpush.msra.mxu0 0.0
  %2468 = vmatpush.msra.mxu0 0.0
  %2469 = vmatpush.msra.mxu0 0.0
  %2470 = vmatpush.msra.mxu0 0.0
  %2471 = vmatpush.msra.mxu0 0.0
  %2472 = vmatpush.msra.mxu0 0.0
  %2473 = vmatpush.msra.mxu0 0.0
  %2474 = vmatpush.msra.mxu0 0.0
  %2475 = vmatpush.msra.mxu0 %v2301
  %2476 = vmatpush.msra.mxu0 %v2299
  %2477 = vmatpush.msra.mxu0 %v2297
  %2478 = vmatpush.msra.mxu0 %v2295
  %2479 = vmatpush.msra.mxu0 %v2293
  %2480 = vmatpush.msra.mxu0 %v2291
  %2481 = vmatpush.msra.mxu0 %v2289
  %2482 = vmatpush.msra.mxu0 %v2287
  %2483 = vmatmul.f32.gmra.mxu0 %v2309
  %v2484 = vpop.f32.mrf.mxu0
  %v2485 = vadd.f32 %v2441, %v2484
  %2486 = vmatmul.f32.gmra.mxu0 %v2312
  %v2487 = vpop.f32.mrf.mxu0
  %v2488 = vadd.f32 %v2444, %v2487
  %2489 = vmatmul.f32.gmra.mxu0 %v2315
  %v2490 = vpop.f32.mrf.mxu0
  %v2491 = vadd.f32 %v2447, %v2490
  %2492 = vmatmul.f32.gmra.mxu0 %v2318
  %v2493 = vpop.f32.mrf.mxu0
  %v2494 = vadd.f32 %v2450, %v2493
  %2495 = vmatmul.f32.gmra.mxu0 %v2321
  %v2496 = vpop.f32.mrf.mxu0
  %v2497 = vadd.f32 %v2453, %v2496
  %2498 = vmatmul.f32.gmra.mxu0 %v2324
  %v2499 = vpop.f32.mrf.mxu0
  %v2500 = vadd.f32 %v2456, %v2499
  %2501 = vmatmul.f32.gmra.mxu0 %v2327
  %v2502 = vpop.f32.mrf.mxu0
  %v2503 = vadd.f32 %v2459, %v2502
  %2504 = vmatmul.f32.gmra.mxu0 %v2330
  %v2505 = vpop.f32.mrf.mxu0
  %v2506 = vadd.f32 %v2462, %v2505
  %2507 = vmatmul.f32.gmra.mxu0 %v2333
  %v2508 = vpop.f32.mrf.mxu0
  %v2509 = vadd.f32 %v2465, %v2508
  %2510 = vdwg.mxu0
  %v2511 = vmax.f32 %v2397, 0.0
  %v2512 = vmax.f32 %v2485, 0.0
  %v2513 = vmax.f32 %v2400, 0.0
  %v2514 = vmax.f32 %v2488, 0.0
  %v2515 = vmax.f32 %v2403, 0.0
  %v2516 = vmax.f32 %v2491, 0.0
  %v2517 = vmax.f32 %v2406, 0.0
  %v2518 = vmax.f32 %v2494, 0.0
  %v2519 = vmax.f32 %v2409, 0.0
  %v2520 = vmax.f32 %v2497, 0.0
  %v2521 = vmax.f32 %v2412, 0.0
  %v2522 = vmax.f32 %v2500, 0.0
  %v2523 = vmax.f32 %v2415, 0.0
  %v2524 = vmax.f32 %v2503, 0.0
  %v2525 = vmax.f32 %v2418, 0.0
  %v2526 = vmax.f32 %v2506, 0.0
  %v2527 = vmax.f32 %v2421, 0.0
  %v2528 = vmax.f32 %v2509, 0.0
  %v2529 = vld [vmem:[%s11] sm:$0xff]
  %v2530 = vld [vmem:[%s11 + $0x8] sm:$0xff]
  %v2531 = vld [vmem:[%s11 + $0x10] sm:$0xff]
  %v2532 = vld [vmem:[%s11 + $0x18] sm:$0xff]
  %v2533 = vld [vmem:[%s11 + $0x20] sm:$0xff]
  %v2534 = vld [vmem:[%s11 + $0x28] sm:$0xff]
  %v2535 = vld [vmem:[%s11 + $0x30] sm:$0xff]
  %v2536 = vld [vmem:[%s11 + $0x38] sm:$0xff]
  %v2537 = vld [vmem:[%s11 + $0x40] sm:$0xff]
  %v2538 = vld [vmem:[%s11 + $0x48] sm:$0xff]
  %v2539 = vld [vmem:[%s11 + $0x50] sm:$0xff]
  %v2540 = vld [vmem:[%s11 + $0x58] sm:$0xff]
  %v2541 = vld [vmem:[%s11 + $0x60] sm:$0xff]
  %v2542 = vld [vmem:[%s11 + $0x68] sm:$0xff]
  %v2543 = vld [vmem:[%s11 + $0x70] sm:$0xff]
  %v2544 = vld [vmem:[%s11 + $0x78] sm:$0xff]
  %v2545 = vld [vmem:[%s11 + $0x80] sm:$0xff]
  %v2546 = vld [vmem:[%s11 + $0x88] sm:$0xff]
  %v2547 = vld [vmem:[%s11 + $0x90] sm:$0xff]
  %v2548 = vld [vmem:[%s11 + $0x98] sm:$0xff]
  %v2549 = vld [vmem:[%s11 + $0xa0] sm:$0xff]
  %v2550 = vld [vmem:[%s11 + $0xa8] sm:$0xff]
  %v2551 = vld [vmem:[%s11 + $0xb0] sm:$0xff]
  %v2552 = vld [vmem:[%s11 + $0xb8] sm:$0xff]
  %v2553 = vld [vmem:[%s12 + $0xd] sm:$0x1]
  %v2555 = vperm.slane %v2553, 0
  %v2558 = vsel %vm1786, %v2512, 0
  %v2561 = vsel %vm1786, %v2514, 0
  %v2564 = vsel %vm1786, %v2516, 0
  %v2567 = vsel %vm1786, %v2518, 0
  %v2570 = vsel %vm1786, %v2520, 0
  %v2573 = vsel %vm1786, %v2522, 0
  %v2576 = vsel %vm1786, %v2524, 0
  %v2579 = vsel %vm1786, %v2526, 0
  %v2582 = vsel %vm1786, %v2528, 0
  %2584 = vmatpush.msra.mxu0 %v2544
  %2585 = vmatpush.msra.mxu0 %v2543
  %2586 = vmatpush.msra.mxu0 %v2542
  %2587 = vmatpush.msra.mxu0 %v2541
  %2588 = vmatpush.msra.mxu0 %v2540
  %2589 = vmatpush.msra.mxu0 %v2539
  %2590 = vmatpush.msra.mxu0 %v2538
  %2591 = vmatpush.msra.mxu0 %v2537
  %2592 = vmatpush.msra.mxu0 %v2536
  %2593 = vmatpush.msra.mxu0 %v2535
  %2594 = vmatpush.msra.mxu0 %v2534
  %2595 = vmatpush.msra.mxu0 %v2533
  %2596 = vmatpush.msra.mxu0 %v2532
  %2597 = vmatpush.msra.mxu0 %v2531
  %2598 = vmatpush.msra.mxu0 %v2530
  %2599 = vmatpush.msra.mxu0 %v2529
  %2600 = vmatmul.f32.gmra.mxu0 %v2511
  %v2601 = vpop.f32.mrf.mxu0
  %v2602 = vadd.f32 %v2555, %v2601
  %2603 = vmatmul.f32.gmra.mxu0 %v2513
  %v2604 = vpop.f32.mrf.mxu0
  %v2605 = vadd.f32 %v2555, %v2604
  %2606 = vmatmul.f32.gmra.mxu0 %v2515
  %v2607 = vpop.f32.mrf.mxu0
  %v2608 = vadd.f32 %v2555, %v2607
  %2609 = vmatmul.f32.gmra.mxu0 %v2517
  %v2610 = vpop.f32.mrf.mxu0
  %v2611 = vadd.f32 %v2555, %v2610
  %2612 = vmatmul.f32.gmra.mxu0 %v2519
  %v2613 = vpop.f32.mrf.mxu0
  %v2614 = vadd.f32 %v2555, %v2613
  %2615 = vmatmul.f32.gmra.mxu0 %v2521
  %v2616 = vpop.f32.mrf.mxu0
  %v2617 = vadd.f32 %v2555, %v2616
  %2618 = vmatmul.f32.gmra.mxu0 %v2523
  %v2619 = vpop.f32.mrf.mxu0
  %v2620 = vadd.f32 %v2555, %v2619
  %2621 = vmatmul.f32.gmra.mxu0 %v2525
  %v2622 = vpop.f32.mrf.mxu0
  %v2623 = vadd.f32 %v2555, %v2622
  %2624 = vmatmul.f32.gmra.mxu0 %v2527
  %v2625 = vpop.f32.mrf.mxu0
  %v2626 = vadd.f32 %v2555, %v2625
  %2627 = vdwg.mxu0
  %2628 = vmatpush.msra.mxu0 0.0
  %2629 = vmatpush.msra.mxu0 0.0
  %2630 = vmatpush.msra.mxu0 0.0
  %2631 = vmatpush.msra.mxu0 0.0
  %2632 = vmatpush.msra.mxu0 0.0
  %2633 = vmatpush.msra.mxu0 0.0
  %2634 = vmatpush.msra.mxu0 0.0
  %2635 = vmatpush.msra.mxu0 0.0
  %2636 = vmatpush.msra.mxu0 %v2552
  %2637 = vmatpush.msra.mxu0 %v2551
  %2638 = vmatpush.msra.mxu0 %v2550
  %2639 = vmatpush.msra.mxu0 %v2549
  %2640 = vmatpush.msra.mxu0 %v2548
  %2641 = vmatpush.msra.mxu0 %v2547
  %2642 = vmatpush.msra.mxu0 %v2546
  %2643 = vmatpush.msra.mxu0 %v2545
  %2644 = vmatmul.f32.gmra.mxu0 %v2558
  %v2645 = vpop.f32.mrf.mxu0
  %v2646 = vadd.f32 %v2602, %v2645
  %2647 = vmatmul.f32.gmra.mxu0 %v2561
  %v2648 = vpop.f32.mrf.mxu0
  %v2649 = vadd.f32 %v2605, %v2648
  %2650 = vmatmul.f32.gmra.mxu0 %v2564
  %v2651 = vpop.f32.mrf.mxu0
  %v2652 = vadd.f32 %v2608, %v2651
  %2653 = vmatmul.f32.gmra.mxu0 %v2567
  %v2654 = vpop.f32.mrf.mxu0
  %v2655 = vadd.f32 %v2611, %v2654
  %2656 = vmatmul.f32.gmra.mxu0 %v2570
  %v2657 = vpop.f32.mrf.mxu0
  %v2658 = vadd.f32 %v2614, %v2657
  %2659 = vmatmul.f32.gmra.mxu0 %v2573
  %v2660 = vpop.f32.mrf.mxu0
  %v2661 = vadd.f32 %v2617, %v2660
  %2662 = vmatmul.f32.gmra.mxu0 %v2576
  %v2663 = vpop.f32.mrf.mxu0
  %v2664 = vadd.f32 %v2620, %v2663
  %2665 = vmatmul.f32.gmra.mxu0 %v2579
  %v2666 = vpop.f32.mrf.mxu0
  %v2667 = vadd.f32 %v2623, %v2666
  %2668 = vmatmul.f32.gmra.mxu0 %v2582
  %v2669 = vpop.f32.mrf.mxu0
  %v2670 = vadd.f32 %v2626, %v2669
  %2671 = vdwg.mxu0
  %2672 = vst.msk [vmem:[%s13] sm:$0xff] %vm1995, %v2646
  %2673 = vst.msk [vmem:[%s13 + $0x8] sm:$0xff] %vm1995, %v2649
  %2674 = vst.msk [vmem:[%s13 + $0x10] sm:$0xff] %vm1995, %v2652
  %2675 = vst.msk [vmem:[%s13 + $0x18] sm:$0xff] %vm1995, %v2655
  %2676 = vst.msk [vmem:[%s13 + $0x20] sm:$0xff] %vm1995, %v2658
  %2677 = vst.msk [vmem:[%s13 + $0x28] sm:$0xff] %vm1995, %v2661
  %2678 = vst.msk [vmem:[%s13 + $0x30] sm:$0xff] %vm1995, %v2664
  %2679 = vst.msk [vmem:[%s13 + $0x38] sm:$0xff] %vm1995, %v2667
  %2680 = vst.msk [vmem:[%s13 + $0x40] sm:$0xff] %vm1995, %v2670
  // Predicated region
  $region54: #{model_forward.1} parent=0 // pred_check
    _
  $region55: #{model_forward.1} parent=0 // pred_check_branch
    %2682 = sbr.rel (0) target = $region57
  $region56: #{model_forward.1} parent=0 // pred_region
    _
  $region57: #{model_forward.1} parent=0 // pred_fallthru
    _
  // Predicated region
  $region58: #{model_forward.1} parent=0 // pred_check
    _
  $region59: #{model_forward.1} parent=0 // pred_check_branch
    %2684 = sbr.rel (0) target = $region61
  $region60: #{model_forward.1} parent=0 // pred_region
    _
  $region61: #{model_forward.1} parent=0 // pred_fallthru
    _

</llo_original>
